<compile_context>
chip_gen: v5e
topology: v5e:2x2
jax: 0.10.0
libtpu: 0.0.40
codegen_flags: <defaults>
</compile_context>

<pallas_src>
import math

import jax
import jax.numpy as jnp
from jax.experimental import pallas as pl
from jax.experimental.pallas import tpu as pltpu


def _erf(x):
    # Abramowitz & Stegun 7.1.26 rational approximation, |error| <= 1.5e-7.
    a1, a2, a3, a4, a5 = 0.254829592, -0.284496736, 1.421413741, -1.453152027, 1.061405429
    p = 0.3275911
    ax = jnp.abs(x)
    t = 1.0 / (1.0 + p * ax)
    poly = ((((a5 * t + a4) * t + a3) * t + a2) * t + a1) * t
    y = 1.0 - poly * jnp.exp(-ax * ax)
    return jnp.where(x < 0.0, -y, y)


def _gelu_exact(x):
    return 0.5 * x * (1.0 + _erf(x * (1.0 / math.sqrt(2.0))))


def _layernorm(h, gamma, beta, eps):
    # Single-pass statistics: var = E[h^2] - mean^2 (f32, eps=1e-6).
    mean = jnp.mean(h, axis=-1, keepdims=True)
    msq = jnp.mean(h * h, axis=-1, keepdims=True)
    var = jnp.maximum(msq - mean * mean, 0.0)
    return (h - mean) * jax.lax.rsqrt(var + eps) * gamma + beta


def _make_kernel(num_heads, head_dim, scale, eps):
    def kernel(x_ref, wqkv_ref, wproj_ref, bproj_ref, g1_ref, b1_ref,
               w1_ref, bf1_ref, w2_ref, bf2_ref, g2_ref, b2_ref, o_ref):
        # x_ref : (1, N, C)  sequence tile for this batch element
        # wqkv  : (C, 3C)    fused QKV weight (pre-transposed, no bias)
        # wproj : (C, C), bproj/g*/b* : (1, C), w1:(C, Hd), bf1:(1, Hd), w2:(Hd, C)
        C = num_heads * head_dim
        x = x_ref[0]                                                      # (N, C)

        # ---- multi-head self-attention (on raw x: post-norm block) ---------
        qkv = jnp.dot(x, wqkv_ref[...], preferred_element_type=jnp.float32)  # (N, 3C)
        heads = []
        for h in range(num_heads):                                        # static unroll
            lo = h * head_dim
            q_h = qkv[:, lo:lo + head_dim]
            k_h = qkv[:, C + lo:C + lo + head_dim]
            v_h = qkv[:, 2 * C + lo:2 * C + lo + head_dim]
            s = jnp.einsum("nd,md->nm", q_h, k_h,
                           preferred_element_type=jnp.float32) * scale    # (N, N)
            s = s - jnp.max(s, axis=-1, keepdims=True)
            p = jnp.exp(s)
            p = p / jnp.sum(p, axis=-1, keepdims=True)
            heads.append(jnp.dot(p, v_h, preferred_element_type=jnp.float32))
        attn = jnp.concatenate(heads, axis=-1)                            # (N, C)
        attn = jnp.dot(attn, wproj_ref[...],
                       preferred_element_type=jnp.float32) + bproj_ref[...]

        h1 = _layernorm(x.astype(jnp.float32) + attn, g1_ref[...], b1_ref[...], eps)

        # ---- MLP: fc1 -> GELU(exact) -> fc2 --------------------------------
        m = jnp.dot(h1, w1_ref[...], preferred_element_type=jnp.float32) + bf1_ref[...]
        m = _gelu_exact(m)
        m = jnp.dot(m, w2_ref[...], preferred_element_type=jnp.float32) + bf2_ref[...]

        y = _layernorm(h1 + m, g2_ref[...], b2_ref[...], eps)
        o_ref[0] = y.astype(o_ref.dtype)

    return kernel


def flatten_block_re2d(x_bchw, params, *, num_heads, eps=1e-6):
    """x_bchw: [B, C, H, W]; params hold PyTorch-layout weights (Linear: [out,in])."""
    B, C, H, W = x_bchw.shape
    N = H * W
    assert C % num_heads == 0
    head_dim = C // num_heads
    scale = head_dim ** (-0.5)
    hidden = params["fc1_w"].shape[0]

    # Glue: NCHW -> (B, N, C); pre-transpose weights to (in, out) so the kernel
    # issues plain row-major matmuls.
    x_seq = jnp.transpose(x_bchw.reshape(B, C, N), (0, 2, 1))
    wqkv_t = jnp.transpose(params["qkv_w"])          # (C, 3C)
    wproj_t = jnp.transpose(params["proj_w"])        # (C, C)
    w1_t = jnp.transpose(params["fc1_w"])            # (C, hidden)
    w2_t = jnp.transpose(params["fc2_w"])            # (hidden, C)
    bproj = params["proj_b"].reshape(1, C)
    bf1 = params["fc1_b"].reshape(1, hidden)
    bf2 = params["fc2_b"].reshape(1, C)
    g1 = params["ln1_g"].reshape(1, C)
    b1 = params["ln1_b"].reshape(1, C)
    g2 = params["ln2_g"].reshape(1, C)
    b2 = params["ln2_b"].reshape(1, C)

    rep2 = lambda b: (0, 0)   # weights/biases: same block every grid step (stay resident)
    kernel = _make_kernel(num_heads, head_dim, scale, eps)

    out = pl.pallas_call(
        kernel,
        out_shape=jax.ShapeDtypeStruct((B, N, C), x_seq.dtype),
        grid_spec=pltpu.PrefetchScalarGridSpec(
            num_scalar_prefetch=0,
            grid=(B,),
            in_specs=[
                pl.BlockSpec((1, N, C), lambda b: (b, 0, 0)),
                pl.BlockSpec((C, 3 * C), rep2),
                pl.BlockSpec((C, C), rep2),
                pl.BlockSpec((1, C), rep2),
                pl.BlockSpec((1, C), rep2),
                pl.BlockSpec((1, C), rep2),
                pl.BlockSpec((C, hidden), rep2),
                pl.BlockSpec((1, hidden), rep2),
                pl.BlockSpec((hidden, C), rep2),
                pl.BlockSpec((1, C), rep2),
                pl.BlockSpec((1, C), rep2),
                pl.BlockSpec((1, C), rep2),
            ],
            out_specs=pl.BlockSpec((1, N, C), lambda b: (b, 0, 0)),
        ),
        compiler_params=pltpu.CompilerParams(
            dimension_semantics=("parallel",),   # batch is independent -> megacore on v7x
        ),
    )(x_seq, wqkv_t, wproj_t, bproj, g1, b1, w1_t, bf1, w2_t, bf2, g2, b2)

    return jnp.transpose(out, (0, 2, 1)).reshape(B, C, H, W)


def _reference(x_bchw, params, *, num_heads, eps=1e-6):
    B, C, H, W = x_bchw.shape
    N = H * W
    head_dim = C // num_heads
    scale = head_dim ** (-0.5)
    x = jnp.transpose(x_bchw.reshape(B, C, N), (0, 2, 1))              # (B, N, C)

    qkv = x @ params["qkv_w"].T                                        # (B, N, 3C)
    qkv = qkv.reshape(B, N, 3, num_heads, head_dim).transpose(2, 0, 3, 1, 4)
    q, k, v = qkv[0], qkv[1], qkv[2]                                   # (B, nh, N, hd)
    attn = jnp.einsum("bhnd,bhmd->bhnm", q, k) * scale
    attn = jax.nn.softmax(attn, axis=-1)
    o = jnp.einsum("bhnm,bhmd->bhnd", attn, v)
    o = jnp.transpose(o, (0, 2, 1, 3)).reshape(B, N, C)
    o = o @ params["proj_w"].T + params["proj_b"]

    def ln(h, g, b):
        mu = jnp.mean(h, axis=-1, keepdims=True)
        var = jnp.mean((h - mu) ** 2, axis=-1, keepdims=True)
        return (h - mu) * jax.lax.rsqrt(var + eps) * g + b

    h = ln(x + o, params["ln1_g"], params["ln1_b"])
    m = h @ params["fc1_w"].T + params["fc1_b"]
    m = jax.nn.gelu(m, approximate=False)                              # torch nn.GELU (exact)
    m = m @ params["fc2_w"].T + params["fc2_b"]
    y = ln(h + m, params["ln2_g"], params["ln2_b"])
    return jnp.transpose(y, (0, 2, 1)).reshape(B, C, H, W)


if __name__ == "__main__":
    key = jax.random.PRNGKey(0)
    keys = jax.random.split(key, 8)

    B, C, H, W = 2, 128, 8, 8          # dim=128 (lane-dense), N = H*W = 64
    num_heads = 4                      # head_dim = 32
    hidden = 4 * C                     # mlp_ratio = 4 -> 512

    x = jax.random.normal(keys[0], (B, C, H, W), dtype=jnp.float32)
    params = {
        # PyTorch layouts: Linear weight [out, in], bias [out]; LN gamma/beta [C].
        "qkv_w": 0.1 * jax.random.normal(keys[1], (3 * C, C), jnp.float32),
        "proj_w": 0.05 * jax.random.normal(keys[2], (C, C), jnp.float32),
        "proj_b": 0.01 * jax.random.normal(keys[3], (C,), jnp.float32),
        "fc1_w": 0.05 * jax.random.normal(keys[4], (hidden, C), jnp.float32),
        "fc1_b": 0.01 * jax.random.normal(keys[5], (hidden,), jnp.float32),
        "fc2_w": 0.05 * jax.random.normal(keys[6], (C, hidden), jnp.float32),
        "fc2_b": 0.01 * jax.random.normal(keys[7], (C,), jnp.float32),
        "ln1_g": jnp.ones((C,), jnp.float32),
        "ln1_b": jnp.zeros((C,), jnp.float32),
        "ln2_g": jnp.ones((C,), jnp.float32),
        "ln2_b": jnp.zeros((C,), jnp.float32),
    }

    out = flatten_block_re2d(x, params, num_heads=num_heads)
    out = jax.block_until_ready(out)

    ref = _reference(x, params, num_heads=num_heads)
    assert out.shape == ref.shape == (B, C, H, W), (out.shape, ref.shape)
    max_err = float(jnp.max(jnp.abs(out - ref)))
    assert jnp.allclose(out, ref, atol=2e-3, rtol=2e-3), max_err

    print("KERNEL_OK")
</pallas_src>

<mosaic_0001>
module attributes {stable_mosaic.version = 11 : i64} {
  func.func @kernel(%arg0: i32, %arg1: memref<1x64x128xf32, #tpu.memory_space<vmem>>, %arg2: memref<128x384xf32, #tpu.memory_space<vmem>>, %arg3: memref<128x128xf32, #tpu.memory_space<vmem>>, %arg4: memref<1x128xf32, #tpu.memory_space<vmem>>, %arg5: memref<1x128xf32, #tpu.memory_space<vmem>>, %arg6: memref<1x128xf32, #tpu.memory_space<vmem>>, %arg7: memref<128x512xf32, #tpu.memory_space<vmem>>, %arg8: memref<1x512xf32, #tpu.memory_space<vmem>>, %arg9: memref<512x128xf32, #tpu.memory_space<vmem>>, %arg10: memref<1x128xf32, #tpu.memory_space<vmem>>, %arg11: memref<1x128xf32, #tpu.memory_space<vmem>>, %arg12: memref<1x128xf32, #tpu.memory_space<vmem>>, %arg13: memref<1x64x128xf32, #tpu.memory_space<vmem>>) attributes {dimension_semantics = [#tpu.dimension_semantics<parallel>], iteration_bounds = array<i64: 2>, scalar_prefetch = 0 : i64, scratch_operands = 0 : i64, tpu.core_type = #tpu.core_type<tc>, window_params = [{transform_indices = @transform_0, window_bounds = array<i64: 1, 64, 128>}, {pipeline_mode = #tpu.pipeline_mode<synchronous>, transform_indices = @transform_1, window_bounds = array<i64: 128, 384>}, {pipeline_mode = #tpu.pipeline_mode<synchronous>, transform_indices = @transform_2, window_bounds = array<i64: 128, 128>}, {pipeline_mode = #tpu.pipeline_mode<synchronous>, transform_indices = @transform_3, window_bounds = array<i64: 1, 128>}, {pipeline_mode = #tpu.pipeline_mode<synchronous>, transform_indices = @transform_4, window_bounds = array<i64: 1, 128>}, {pipeline_mode = #tpu.pipeline_mode<synchronous>, transform_indices = @transform_5, window_bounds = array<i64: 1, 128>}, {pipeline_mode = #tpu.pipeline_mode<synchronous>, transform_indices = @transform_6, window_bounds = array<i64: 128, 512>}, {pipeline_mode = #tpu.pipeline_mode<synchronous>, transform_indices = @transform_7, window_bounds = array<i64: 1, 512>}, {pipeline_mode = #tpu.pipeline_mode<synchronous>, transform_indices = @transform_8, window_bounds = array<i64: 512, 128>}, {pipeline_mode = #tpu.pipeline_mode<synchronous>, transform_indices = @transform_9, window_bounds = array<i64: 1, 128>}, {pipeline_mode = #tpu.pipeline_mode<synchronous>, transform_indices = @transform_10, window_bounds = array<i64: 1, 128>}, {pipeline_mode = #tpu.pipeline_mode<synchronous>, transform_indices = @transform_11, window_bounds = array<i64: 1, 128>}, {transform_indices = @transform_12, window_bounds = array<i64: 1, 64, 128>}]} {
    %c0 = arith.constant 0 : index
    %c0_0 = arith.constant 0 : index
    %c0_1 = arith.constant 0 : index
    %0 = vector.load %arg1[%c0, %c0_0, %c0_1] : memref<1x64x128xf32, #tpu.memory_space<vmem>>, vector<1x64x128xf32>
    %1 = vector.shape_cast %0 : vector<1x64x128xf32> to vector<64x128xf32>
    %c0_2 = arith.constant 0 : index
    %c0_3 = arith.constant 0 : index
    %2 = vector.load %arg2[%c0_2, %c0_3] : memref<128x384xf32, #tpu.memory_space<vmem>>, vector<128x384xf32>
    %cst = arith.constant dense<0.000000e+00> : vector<64x384xf32>
    %3 = tpu.matmul %1, %2, %cst {dimension_numbers = #tpu.dot_dimension_numbers<[1], [0], [0], [1], [0, 0, 1, 1], [], []>} : vector<64x128xf32>, vector<128x384xf32>, vector<64x384xf32> -> vector<64x384xf32>
    %4 = vector.extract_strided_slice %3 {offsets = [0, 0], sizes = [64, 32], strides = [1, 1]} : vector<64x384xf32> to vector<64x32xf32>
    %5 = vector.extract_strided_slice %3 {offsets = [0, 128], sizes = [64, 32], strides = [1, 1]} : vector<64x384xf32> to vector<64x32xf32>
    %6 = vector.extract_strided_slice %3 {offsets = [0, 256], sizes = [64, 32], strides = [1, 1]} : vector<64x384xf32> to vector<64x32xf32>
    "tpu.trace_start"() <{level = 10 : i32, message = "nd,md->nm"}> : () -> ()
    %cst_4 = arith.constant dense<0.000000e+00> : vector<64x64xf32>
    %7 = tpu.matmul %4, %5, %cst_4 {dimension_numbers = #tpu.dot_dimension_numbers<[1], [1], [0], [0], [0, 0, 1, 0], [], []>} : vector<64x32xf32>, vector<64x32xf32>, vector<64x64xf32> -> vector<64x64xf32>
    "tpu.trace_stop"() : () -> ()
    %cst_5 = arith.constant 0.176776692 : f32
    %8 = vector.broadcast %cst_5 : f32 to vector<64x64xf32>
    %9 = arith.mulf %7, %8 : vector<64x64xf32>
    %cst_6 = arith.constant dense<0xFF800000> : vector<64xf32>
    %10 = vector.multi_reduction <maximumf>, %9, %cst_6 [1] : vector<64x64xf32> to vector<64xf32>
    %11 = vector.shape_cast %10 : vector<64xf32> to vector<64x1xf32>
    %12 = vector.broadcast %11 : vector<64x1xf32> to vector<64x64xf32>
    %13 = arith.subf %9, %12 : vector<64x64xf32>
    %14 = math.exp %13 : vector<64x64xf32>
    %cst_7 = arith.constant dense<0.000000e+00> : vector<64xf32>
    %15 = vector.multi_reduction <add>, %14, %cst_7 [1] : vector<64x64xf32> to vector<64xf32>
    %16 = vector.shape_cast %15 : vector<64xf32> to vector<64x1xf32>
    %17 = vector.broadcast %16 : vector<64x1xf32> to vector<64x64xf32>
    %18 = arith.divf %14, %17 : vector<64x64xf32>
    %cst_8 = arith.constant dense<0.000000e+00> : vector<64x32xf32>
    %19 = tpu.matmul %18, %6, %cst_8 {dimension_numbers = #tpu.dot_dimension_numbers<[1], [0], [0], [1], [0, 0, 1, 1], [], []>} : vector<64x64xf32>, vector<64x32xf32>, vector<64x32xf32> -> vector<64x32xf32>
    %20 = vector.extract_strided_slice %3 {offsets = [0, 32], sizes = [64, 32], strides = [1, 1]} : vector<64x384xf32> to vector<64x32xf32>
    %21 = vector.extract_strided_slice %3 {offsets = [0, 160], sizes = [64, 32], strides = [1, 1]} : vector<64x384xf32> to vector<64x32xf32>
    %22 = vector.extract_strided_slice %3 {offsets = [0, 288], sizes = [64, 32], strides = [1, 1]} : vector<64x384xf32> to vector<64x32xf32>
    "tpu.trace_start"() <{level = 10 : i32, message = "nd,md->nm"}> : () -> ()
    %cst_9 = arith.constant dense<0.000000e+00> : vector<64x64xf32>
    %23 = tpu.matmul %20, %21, %cst_9 {dimension_numbers = #tpu.dot_dimension_numbers<[1], [1], [0], [0], [0, 0, 1, 0], [], []>} : vector<64x32xf32>, vector<64x32xf32>, vector<64x64xf32> -> vector<64x64xf32>
    "tpu.trace_stop"() : () -> ()
    %cst_10 = arith.constant 0.176776692 : f32
    %24 = vector.broadcast %cst_10 : f32 to vector<64x64xf32>
    %25 = arith.mulf %23, %24 : vector<64x64xf32>
    %cst_11 = arith.constant dense<0xFF800000> : vector<64xf32>
    %26 = vector.multi_reduction <maximumf>, %25, %cst_11 [1] : vector<64x64xf32> to vector<64xf32>
    %27 = vector.shape_cast %26 : vector<64xf32> to vector<64x1xf32>
    %28 = vector.broadcast %27 : vector<64x1xf32> to vector<64x64xf32>
    %29 = arith.subf %25, %28 : vector<64x64xf32>
    %30 = math.exp %29 : vector<64x64xf32>
    %cst_12 = arith.constant dense<0.000000e+00> : vector<64xf32>
    %31 = vector.multi_reduction <add>, %30, %cst_12 [1] : vector<64x64xf32> to vector<64xf32>
    %32 = vector.shape_cast %31 : vector<64xf32> to vector<64x1xf32>
    %33 = vector.broadcast %32 : vector<64x1xf32> to vector<64x64xf32>
    %34 = arith.divf %30, %33 : vector<64x64xf32>
    %cst_13 = arith.constant dense<0.000000e+00> : vector<64x32xf32>
    %35 = tpu.matmul %34, %22, %cst_13 {dimension_numbers = #tpu.dot_dimension_numbers<[1], [0], [0], [1], [0, 0, 1, 1], [], []>} : vector<64x64xf32>, vector<64x32xf32>, vector<64x32xf32> -> vector<64x32xf32>
    %36 = vector.extract_strided_slice %3 {offsets = [0, 64], sizes = [64, 32], strides = [1, 1]} : vector<64x384xf32> to vector<64x32xf32>
    %37 = vector.extract_strided_slice %3 {offsets = [0, 192], sizes = [64, 32], strides = [1, 1]} : vector<64x384xf32> to vector<64x32xf32>
    %38 = vector.extract_strided_slice %3 {offsets = [0, 320], sizes = [64, 32], strides = [1, 1]} : vector<64x384xf32> to vector<64x32xf32>
    "tpu.trace_start"() <{level = 10 : i32, message = "nd,md->nm"}> : () -> ()
    %cst_14 = arith.constant dense<0.000000e+00> : vector<64x64xf32>
    %39 = tpu.matmul %36, %37, %cst_14 {dimension_numbers = #tpu.dot_dimension_numbers<[1], [1], [0], [0], [0, 0, 1, 0], [], []>} : vector<64x32xf32>, vector<64x32xf32>, vector<64x64xf32> -> vector<64x64xf32>
    "tpu.trace_stop"() : () -> ()
    %cst_15 = arith.constant 0.176776692 : f32
    %40 = vector.broadcast %cst_15 : f32 to vector<64x64xf32>
    %41 = arith.mulf %39, %40 : vector<64x64xf32>
    %cst_16 = arith.constant dense<0xFF800000> : vector<64xf32>
    %42 = vector.multi_reduction <maximumf>, %41, %cst_16 [1] : vector<64x64xf32> to vector<64xf32>
    %43 = vector.shape_cast %42 : vector<64xf32> to vector<64x1xf32>
    %44 = vector.broadcast %43 : vector<64x1xf32> to vector<64x64xf32>
    %45 = arith.subf %41, %44 : vector<64x64xf32>
    %46 = math.exp %45 : vector<64x64xf32>
    %cst_17 = arith.constant dense<0.000000e+00> : vector<64xf32>
    %47 = vector.multi_reduction <add>, %46, %cst_17 [1] : vector<64x64xf32> to vector<64xf32>
    %48 = vector.shape_cast %47 : vector<64xf32> to vector<64x1xf32>
    %49 = vector.broadcast %48 : vector<64x1xf32> to vector<64x64xf32>
    %50 = arith.divf %46, %49 : vector<64x64xf32>
    %cst_18 = arith.constant dense<0.000000e+00> : vector<64x32xf32>
    %51 = tpu.matmul %50, %38, %cst_18 {dimension_numbers = #tpu.dot_dimension_numbers<[1], [0], [0], [1], [0, 0, 1, 1], [], []>} : vector<64x64xf32>, vector<64x32xf32>, vector<64x32xf32> -> vector<64x32xf32>
    %52 = vector.extract_strided_slice %3 {offsets = [0, 96], sizes = [64, 32], strides = [1, 1]} : vector<64x384xf32> to vector<64x32xf32>
    %53 = vector.extract_strided_slice %3 {offsets = [0, 224], sizes = [64, 32], strides = [1, 1]} : vector<64x384xf32> to vector<64x32xf32>
    %54 = vector.extract_strided_slice %3 {offsets = [0, 352], sizes = [64, 32], strides = [1, 1]} : vector<64x384xf32> to vector<64x32xf32>
    "tpu.trace_start"() <{level = 10 : i32, message = "nd,md->nm"}> : () -> ()
    %cst_19 = arith.constant dense<0.000000e+00> : vector<64x64xf32>
    %55 = tpu.matmul %52, %53, %cst_19 {dimension_numbers = #tpu.dot_dimension_numbers<[1], [1], [0], [0], [0, 0, 1, 0], [], []>} : vector<64x32xf32>, vector<64x32xf32>, vector<64x64xf32> -> vector<64x64xf32>
    "tpu.trace_stop"() : () -> ()
    %cst_20 = arith.constant 0.176776692 : f32
    %56 = vector.broadcast %cst_20 : f32 to vector<64x64xf32>
    %57 = arith.mulf %55, %56 : vector<64x64xf32>
    %cst_21 = arith.constant dense<0xFF800000> : vector<64xf32>
    %58 = vector.multi_reduction <maximumf>, %57, %cst_21 [1] : vector<64x64xf32> to vector<64xf32>
    %59 = vector.shape_cast %58 : vector<64xf32> to vector<64x1xf32>
    %60 = vector.broadcast %59 : vector<64x1xf32> to vector<64x64xf32>
    %61 = arith.subf %57, %60 : vector<64x64xf32>
    %62 = math.exp %61 : vector<64x64xf32>
    %cst_22 = arith.constant dense<0.000000e+00> : vector<64xf32>
    %63 = vector.multi_reduction <add>, %62, %cst_22 [1] : vector<64x64xf32> to vector<64xf32>
    %64 = vector.shape_cast %63 : vector<64xf32> to vector<64x1xf32>
    %65 = vector.broadcast %64 : vector<64x1xf32> to vector<64x64xf32>
    %66 = arith.divf %62, %65 : vector<64x64xf32>
    %cst_23 = arith.constant dense<0.000000e+00> : vector<64x32xf32>
    %67 = tpu.matmul %66, %54, %cst_23 {dimension_numbers = #tpu.dot_dimension_numbers<[1], [0], [0], [1], [0, 0, 1, 1], [], []>} : vector<64x64xf32>, vector<64x32xf32>, vector<64x32xf32> -> vector<64x32xf32>
    %68 = tpu.concatenate %19, %35, %51, %67 in 1 : vector<64x32xf32>, vector<64x32xf32>, vector<64x32xf32>, vector<64x32xf32> -> vector<64x128xf32>
    %c0_24 = arith.constant 0 : index
    %c0_25 = arith.constant 0 : index
    %69 = vector.load %arg3[%c0_24, %c0_25] : memref<128x128xf32, #tpu.memory_space<vmem>>, vector<128x128xf32>
    %cst_26 = arith.constant dense<0.000000e+00> : vector<64x128xf32>
    %70 = tpu.matmul %68, %69, %cst_26 {dimension_numbers = #tpu.dot_dimension_numbers<[1], [0], [0], [1], [0, 0, 1, 1], [], []>} : vector<64x128xf32>, vector<128x128xf32>, vector<64x128xf32> -> vector<64x128xf32>
    %c0_27 = arith.constant 0 : index
    %c0_28 = arith.constant 0 : index
    %71 = vector.load %arg4[%c0_27, %c0_28] : memref<1x128xf32, #tpu.memory_space<vmem>>, vector<1x128xf32>
    %72 = vector.broadcast %71 : vector<1x128xf32> to vector<64x128xf32>
    %73 = arith.addf %70, %72 : vector<64x128xf32>
    %74 = arith.addf %1, %73 : vector<64x128xf32>
    %c0_29 = arith.constant 0 : index
    %c0_30 = arith.constant 0 : index
    %75 = vector.load %arg5[%c0_29, %c0_30] : memref<1x128xf32, #tpu.memory_space<vmem>>, vector<1x128xf32>
    %c0_31 = arith.constant 0 : index
    %c0_32 = arith.constant 0 : index
    %76 = vector.load %arg6[%c0_31, %c0_32] : memref<1x128xf32, #tpu.memory_space<vmem>>, vector<1x128xf32>
    %cst_33 = arith.constant dense<0.000000e+00> : vector<64xf32>
    %77 = vector.multi_reduction <add>, %74, %cst_33 [1] : vector<64x128xf32> to vector<64xf32>
    %78 = vector.shape_cast %77 : vector<64xf32> to vector<64x1xf32>
    %cst_34 = arith.constant 1.280000e+02 : f32
    %79 = vector.broadcast %cst_34 : f32 to vector<64x1xf32>
    %80 = arith.divf %78, %79 : vector<64x1xf32>
    %81 = arith.mulf %74, %74 : vector<64x128xf32>
    %cst_35 = arith.constant dense<0.000000e+00> : vector<64xf32>
    %82 = vector.multi_reduction <add>, %81, %cst_35 [1] : vector<64x128xf32> to vector<64xf32>
    %83 = vector.shape_cast %82 : vector<64xf32> to vector<64x1xf32>
    %cst_36 = arith.constant 1.280000e+02 : f32
    %84 = vector.broadcast %cst_36 : f32 to vector<64x1xf32>
    %85 = arith.divf %83, %84 : vector<64x1xf32>
    %86 = arith.mulf %80, %80 : vector<64x1xf32>
    %87 = arith.subf %85, %86 : vector<64x1xf32>
    %cst_37 = arith.constant 0.000000e+00 : f32
    %88 = vector.broadcast %cst_37 : f32 to vector<64x1xf32>
    %89 = arith.maximumf %87, %88 : vector<64x1xf32>
    %90 = vector.broadcast %80 : vector<64x1xf32> to vector<64x128xf32>
    %91 = arith.subf %74, %90 : vector<64x128xf32>
    %cst_38 = arith.constant 9.99999997E-7 : f32
    %92 = vector.broadcast %cst_38 : f32 to vector<64x1xf32>
    %93 = arith.addf %89, %92 : vector<64x1xf32>
    %94 = math.rsqrt %93 : vector<64x1xf32>
    %95 = vector.broadcast %94 : vector<64x1xf32> to vector<64x128xf32>
    %96 = arith.mulf %91, %95 : vector<64x128xf32>
    %97 = vector.broadcast %75 : vector<1x128xf32> to vector<64x128xf32>
    %98 = arith.mulf %96, %97 : vector<64x128xf32>
    %99 = vector.broadcast %76 : vector<1x128xf32> to vector<64x128xf32>
    %100 = arith.addf %98, %99 : vector<64x128xf32>
    %c0_39 = arith.constant 0 : index
    %c0_40 = arith.constant 0 : index
    %101 = vector.load %arg7[%c0_39, %c0_40] : memref<128x512xf32, #tpu.memory_space<vmem>>, vector<128x512xf32>
    %cst_41 = arith.constant dense<0.000000e+00> : vector<64x512xf32>
    %102 = tpu.matmul %100, %101, %cst_41 {dimension_numbers = #tpu.dot_dimension_numbers<[1], [0], [0], [1], [0, 0, 1, 1], [], []>} : vector<64x128xf32>, vector<128x512xf32>, vector<64x512xf32> -> vector<64x512xf32>
    %c0_42 = arith.constant 0 : index
    %c0_43 = arith.constant 0 : index
    %103 = vector.load %arg8[%c0_42, %c0_43] : memref<1x512xf32, #tpu.memory_space<vmem>>, vector<1x512xf32>
    %104 = vector.broadcast %103 : vector<1x512xf32> to vector<64x512xf32>
    %105 = arith.addf %102, %104 : vector<64x512xf32>
    %cst_44 = arith.constant 5.000000e-01 : f32
    %106 = vector.broadcast %cst_44 : f32 to vector<64x512xf32>
    %107 = arith.mulf %106, %105 : vector<64x512xf32>
    %cst_45 = arith.constant 0.707106769 : f32
    %108 = vector.broadcast %cst_45 : f32 to vector<64x512xf32>
    %109 = arith.mulf %105, %108 : vector<64x512xf32>
    %110 = math.absf %109 : vector<64x512xf32>
    %cst_46 = arith.constant 0.327591091 : f32
    %111 = vector.broadcast %cst_46 : f32 to vector<64x512xf32>
    %112 = arith.mulf %111, %110 : vector<64x512xf32>
    %cst_47 = arith.constant 1.000000e+00 : f32
    %113 = vector.broadcast %cst_47 : f32 to vector<64x512xf32>
    %114 = arith.addf %113, %112 : vector<64x512xf32>
    %cst_48 = arith.constant 1.000000e+00 : f32
    %115 = vector.broadcast %cst_48 : f32 to vector<64x512xf32>
    %116 = arith.divf %115, %114 : vector<64x512xf32>
    %cst_49 = arith.constant 1.06140542 : f32
    %117 = vector.broadcast %cst_49 : f32 to vector<64x512xf32>
    %118 = arith.mulf %117, %116 : vector<64x512xf32>
    %cst_50 = arith.constant -1.45315206 : f32
    %119 = vector.broadcast %cst_50 : f32 to vector<64x512xf32>
    %120 = arith.addf %118, %119 : vector<64x512xf32>
    %121 = arith.mulf %120, %116 : vector<64x512xf32>
    %cst_51 = arith.constant 1.42141378 : f32
    %122 = vector.broadcast %cst_51 : f32 to vector<64x512xf32>
    %123 = arith.addf %121, %122 : vector<64x512xf32>
    %124 = arith.mulf %123, %116 : vector<64x512xf32>
    %cst_52 = arith.constant -0.284496725 : f32
    %125 = vector.broadcast %cst_52 : f32 to vector<64x512xf32>
    %126 = arith.addf %124, %125 : vector<64x512xf32>
    %127 = arith.mulf %126, %116 : vector<64x512xf32>
    %cst_53 = arith.constant 0.254829586 : f32
    %128 = vector.broadcast %cst_53 : f32 to vector<64x512xf32>
    %129 = arith.addf %127, %128 : vector<64x512xf32>
    %130 = arith.mulf %129, %116 : vector<64x512xf32>
    %cst_54 = arith.constant 0.000000e+00 : f32
    %131 = vector.broadcast %cst_54 : f32 to vector<64x512xf32>
    %132 = arith.subf %131, %110 : vector<64x512xf32>
    %133 = arith.mulf %132, %110 : vector<64x512xf32>
    %134 = math.exp %133 : vector<64x512xf32>
    %135 = arith.mulf %130, %134 : vector<64x512xf32>
    %cst_55 = arith.constant 1.000000e+00 : f32
    %136 = vector.broadcast %cst_55 : f32 to vector<64x512xf32>
    %137 = arith.subf %136, %135 : vector<64x512xf32>
    %cst_56 = arith.constant 0.000000e+00 : f32
    %138 = vector.broadcast %cst_56 : f32 to vector<64x512xf32>
    %139 = arith.cmpf olt, %109, %138 : vector<64x512xf32>
    %cst_57 = arith.constant 0.000000e+00 : f32
    %140 = vector.broadcast %cst_57 : f32 to vector<64x512xf32>
    %141 = arith.subf %140, %137 : vector<64x512xf32>
    %142 = arith.select %139, %141, %137 : vector<64x512xi1>, vector<64x512xf32>
    %cst_58 = arith.constant 1.000000e+00 : f32
    %143 = vector.broadcast %cst_58 : f32 to vector<64x512xf32>
    %144 = arith.addf %143, %142 : vector<64x512xf32>
    %145 = arith.mulf %107, %144 : vector<64x512xf32>
    %c0_59 = arith.constant 0 : index
    %c0_60 = arith.constant 0 : index
    %146 = vector.load %arg9[%c0_59, %c0_60] : memref<512x128xf32, #tpu.memory_space<vmem>>, vector<512x128xf32>
    %cst_61 = arith.constant dense<0.000000e+00> : vector<64x128xf32>
    %147 = tpu.matmul %145, %146, %cst_61 {dimension_numbers = #tpu.dot_dimension_numbers<[1], [0], [0], [1], [0, 0, 1, 1], [], []>} : vector<64x512xf32>, vector<512x128xf32>, vector<64x128xf32> -> vector<64x128xf32>
    %c0_62 = arith.constant 0 : index
    %c0_63 = arith.constant 0 : index
    %148 = vector.load %arg10[%c0_62, %c0_63] : memref<1x128xf32, #tpu.memory_space<vmem>>, vector<1x128xf32>
    %149 = vector.broadcast %148 : vector<1x128xf32> to vector<64x128xf32>
    %150 = arith.addf %147, %149 : vector<64x128xf32>
    %151 = arith.addf %100, %150 : vector<64x128xf32>
    %c0_64 = arith.constant 0 : index
    %c0_65 = arith.constant 0 : index
    %152 = vector.load %arg11[%c0_64, %c0_65] : memref<1x128xf32, #tpu.memory_space<vmem>>, vector<1x128xf32>
    %c0_66 = arith.constant 0 : index
    %c0_67 = arith.constant 0 : index
    %153 = vector.load %arg12[%c0_66, %c0_67] : memref<1x128xf32, #tpu.memory_space<vmem>>, vector<1x128xf32>
    %cst_68 = arith.constant dense<0.000000e+00> : vector<64xf32>
    %154 = vector.multi_reduction <add>, %151, %cst_68 [1] : vector<64x128xf32> to vector<64xf32>
    %155 = vector.shape_cast %154 : vector<64xf32> to vector<64x1xf32>
    %cst_69 = arith.constant 1.280000e+02 : f32
    %156 = vector.broadcast %cst_69 : f32 to vector<64x1xf32>
    %157 = arith.divf %155, %156 : vector<64x1xf32>
    %158 = arith.mulf %151, %151 : vector<64x128xf32>
    %cst_70 = arith.constant dense<0.000000e+00> : vector<64xf32>
    %159 = vector.multi_reduction <add>, %158, %cst_70 [1] : vector<64x128xf32> to vector<64xf32>
    %160 = vector.shape_cast %159 : vector<64xf32> to vector<64x1xf32>
    %cst_71 = arith.constant 1.280000e+02 : f32
    %161 = vector.broadcast %cst_71 : f32 to vector<64x1xf32>
    %162 = arith.divf %160, %161 : vector<64x1xf32>
    %163 = arith.mulf %157, %157 : vector<64x1xf32>
    %164 = arith.subf %162, %163 : vector<64x1xf32>
    %cst_72 = arith.constant 0.000000e+00 : f32
    %165 = vector.broadcast %cst_72 : f32 to vector<64x1xf32>
    %166 = arith.maximumf %164, %165 : vector<64x1xf32>
    %167 = vector.broadcast %157 : vector<64x1xf32> to vector<64x128xf32>
    %168 = arith.subf %151, %167 : vector<64x128xf32>
    %cst_73 = arith.constant 9.99999997E-7 : f32
    %169 = vector.broadcast %cst_73 : f32 to vector<64x1xf32>
    %170 = arith.addf %166, %169 : vector<64x1xf32>
    %171 = math.rsqrt %170 : vector<64x1xf32>
    %172 = vector.broadcast %171 : vector<64x1xf32> to vector<64x128xf32>
    %173 = arith.mulf %168, %172 : vector<64x128xf32>
    %174 = vector.broadcast %152 : vector<1x128xf32> to vector<64x128xf32>
    %175 = arith.mulf %173, %174 : vector<64x128xf32>
    %176 = vector.broadcast %153 : vector<1x128xf32> to vector<64x128xf32>
    %177 = arith.addf %175, %176 : vector<64x128xf32>
    %c0_74 = arith.constant 0 : index
    %c0_75 = arith.constant 0 : index
    %c0_76 = arith.constant 0 : index
    %178 = vector.load %arg13[%c0_74, %c0_75, %c0_76] : memref<1x64x128xf32, #tpu.memory_space<vmem>>, vector<1x64x128xf32>
    %179 = vector.shape_cast %178 : vector<1x64x128xf32> to vector<64x128xf32>
    %180 = vector.shape_cast %177 : vector<64x128xf32> to vector<1x64x128xf32>
    tpu.vector_store %arg13[%c0_74, %c0_75, %c0_76], %180 {strides = array<i32>} : memref<1x64x128xf32, #tpu.memory_space<vmem>>, vector<1x64x128xf32>,
    return
  }
  func.func @transform_0(%arg0: i32) -> (i32, i32, i32) {
    %c0_i32 = arith.constant 0 : i32
    %c0_i32_0 = arith.constant 0 : i32
    %c0_i32_1 = arith.constant 0 : i32
    return %arg0, %c0_i32, %c0_i32_0 : i32, i32, i32
  }
  func.func @transform_1(%arg0: i32) -> (i32, i32) {
    %c0_i32 = arith.constant 0 : i32
    %c0_i32_0 = arith.constant 0 : i32
    %c0_i32_1 = arith.constant 0 : i32
    return %c0_i32, %c0_i32_0 : i32, i32
  }
  func.func @transform_2(%arg0: i32) -> (i32, i32) {
    %c0_i32 = arith.constant 0 : i32
    %c0_i32_0 = arith.constant 0 : i32
    %c0_i32_1 = arith.constant 0 : i32
    return %c0_i32, %c0_i32_0 : i32, i32
  }
  func.func @transform_3(%arg0: i32) -> (i32, i32) {
    %c0_i32 = arith.constant 0 : i32
    %c0_i32_0 = arith.constant 0 : i32
    %c0_i32_1 = arith.constant 0 : i32
    return %c0_i32, %c0_i32_0 : i32, i32
  }
  func.func @transform_4(%arg0: i32) -> (i32, i32) {
    %c0_i32 = arith.constant 0 : i32
    %c0_i32_0 = arith.constant 0 : i32
    %c0_i32_1 = arith.constant 0 : i32
    return %c0_i32, %c0_i32_0 : i32, i32
  }
  func.func @transform_5(%arg0: i32) -> (i32, i32) {
    %c0_i32 = arith.constant 0 : i32
    %c0_i32_0 = arith.constant 0 : i32
    %c0_i32_1 = arith.constant 0 : i32
    return %c0_i32, %c0_i32_0 : i32, i32
  }
  func.func @transform_6(%arg0: i32) -> (i32, i32) {
    %c0_i32 = arith.constant 0 : i32
    %c0_i32_0 = arith.constant 0 : i32
    %c0_i32_1 = arith.constant 0 : i32
    return %c0_i32, %c0_i32_0 : i32, i32
  }
  func.func @transform_7(%arg0: i32) -> (i32, i32) {
    %c0_i32 = arith.constant 0 : i32
    %c0_i32_0 = arith.constant 0 : i32
    %c0_i32_1 = arith.constant 0 : i32
    return %c0_i32, %c0_i32_0 : i32, i32
  }
  func.func @transform_8(%arg0: i32) -> (i32, i32) {
    %c0_i32 = arith.constant 0 : i32
    %c0_i32_0 = arith.constant 0 : i32
    %c0_i32_1 = arith.constant 0 : i32
    return %c0_i32, %c0_i32_0 : i32, i32
  }
  func.func @transform_9(%arg0: i32) -> (i32, i32) {
    %c0_i32 = arith.constant 0 : i32
    %c0_i32_0 = arith.constant 0 : i32
    %c0_i32_1 = arith.constant 0 : i32
    return %c0_i32, %c0_i32_0 : i32, i32
  }
  func.func @transform_10(%arg0: i32) -> (i32, i32) {
    %c0_i32 = arith.constant 0 : i32
    %c0_i32_0 = arith.constant 0 : i32
    %c0_i32_1 = arith.constant 0 : i32
    return %c0_i32, %c0_i32_0 : i32, i32
  }
  func.func @transform_11(%arg0: i32) -> (i32, i32) {
    %c0_i32 = arith.constant 0 : i32
    %c0_i32_0 = arith.constant 0 : i32
    %c0_i32_1 = arith.constant 0 : i32
    return %c0_i32, %c0_i32_0 : i32, i32
  }
  func.func @transform_12(%arg0: i32) -> (i32, i32, i32) {
    %c0_i32 = arith.constant 0 : i32
    %c0_i32_0 = arith.constant 0 : i32
    %c0_i32_1 = arith.constant 0 : i32
    return %arg0, %c0_i32, %c0_i32_0 : i32, i32, i32
  }
}

</mosaic_0001>

<llo_original>
// kernel: tpu_custom_call.1
$region0: #{tpu_custom_call.1}
  #allocation0 [shape = 'u32[]', space=smem, size = 0x4, offset = 0x4, fixed_abs, tag = 'smem constant byte address 0x4 - core index']
  #allocation1 [shape = 'u32[72,128]{1,0:T(1,128)}', space=vmem, size = 0x9000, scoped, tag = 'internal scratch']
  %s0 = inlined_call_operand.hbm [shape: f32[2,64,128], index: 0, kind: input, shape index: {}]
  %s1 = inlined_call_operand.hbm [shape: f32[128,384], index: 1, kind: input, shape index: {}]
  %s2 = inlined_call_operand.hbm [shape: f32[128,128], index: 2, kind: input, shape index: {}]
  %s3 = inlined_call_operand.vmem [shape: f32[1,128], index: 3, kind: input, shape index: {}]
  %s4 = inlined_call_operand.vmem [shape: f32[1,128], index: 4, kind: input, shape index: {}]
  %s5 = inlined_call_operand.hbm [shape: f32[1,128], index: 5, kind: input, shape index: {}]
  %s6 = inlined_call_operand.hbm [shape: f32[128,512], index: 6, kind: input, shape index: {}]
  %s7 = inlined_call_operand.vmem [shape: f32[1,512], index: 7, kind: input, shape index: {}]
  %s8 = inlined_call_operand.hbm [shape: f32[512,128], index: 8, kind: input, shape index: {}]
  %s9 = inlined_call_operand.vmem [shape: f32[1,128], index: 9, kind: input, shape index: {}]
  %s10 = inlined_call_operand.vmem [shape: f32[1,128], index: 10, kind: input, shape index: {}]
  %s11 = inlined_call_operand.vmem [shape: f32[1,128], index: 11, kind: input, shape index: {}]
  %s12 = inlined_call_operand.hbm [shape: f32[2,64,128], index: 12, kind: output, shape index: {}]
  %s13 = sld [smem:[#allocation0]]
  $region105: #{tpu_custom_call.1} parent=0
    _
  %s15 = ssub.s32 1, %s13
  %s16 = scalar_select 0, %s15, %s13
  $region1: #{tpu_custom_call.1} parent=0
    #allocation2 [shape = 'u8[65536]{0}', space=vmem, size = 0x10000, scoped, tag = 'input window, operand 0']
    #allocation3 [shape = 's32[2]{0}', space=sflag, size = 0x8, scoped, tag = 'scoped memory for tpu_custom_call.1']
    #allocation4 [shape = 's32[2]{0}', space=sflag, size = 0x8, scoped, tag = 'scoped memory for tpu_custom_call.1']
    #allocation5 [shape = 'u8[196608]{0}', space=vmem, size = 0x30000, scoped, tag = 'input window, operand 1, single buffered']
    #allocation6 [shape = 's32[1]{0}', space=sflag, size = 0x4, scoped, tag = 'scoped memory for tpu_custom_call.1']
    #allocation7 [shape = 'u8[65536]{0}', space=vmem, size = 0x10000, scoped, tag = 'input window, operand 2, single buffered']
    #allocation8 [shape = 'u8[512]{0}', space=vmem, size = 0x400, scoped, tag = 'input window, operand 5, single buffered']
    #allocation9 [shape = 's32[1]{0}', space=sflag, size = 0x4, scoped, tag = 'scoped memory for tpu_custom_call.1']
    #allocation10 [shape = 'u8[262144]{0}', space=vmem, size = 0x40000, scoped, tag = 'input window, operand 6, single buffered']
    #allocation11 [shape = 'u8[262144]{0}', space=vmem, size = 0x40000, scoped, tag = 'input window, operand 8, single buffered']
    #allocation12 [shape = 's32[1]{0}', space=sflag, size = 0x4, scoped, tag = 'scoped memory for tpu_custom_call.1']
    #allocation13 [shape = 'u8[65536]{0}', space=vmem, size = 0x10000, scoped, tag = 'output window, operand 0']
    %17 = vsyncpa [#allocation3], 0
    %s18 = scalar_lea.sflag [#allocation3], 1
    %19 = vsyncpa %s18, 0
    %20 = vsyncpa [#allocation6], 0
    %21 = vsyncpa [#allocation9], 0
    %22 = vsyncpa [#allocation12], 0
    %23 = vsyncpa [#allocation4], 0
    %s24 = scalar_lea.sflag [#allocation4], 1
    %25 = vsyncpa %s24, 0
    loop: start=0, step=1, limit=4
    $region2: #{tpu_custom_call.1} parent=1 // loop_pre_header
      _
    $region3: #{tpu_custom_call.1} parent=1 // loop_header
      %s27 = sphi 0, %s31
      %p28 = scmp.ge.s32.totalorder %s27, 4
      %s37 = sphi 0, %s39
      %s40 = sphi 0, %s37
      %s41 = sphi 0, %s40
      %s57 = sphi 0, %s41
      %s61 = sphi 0, %s61
      %s63 = sphi 0, %s61
      %s64 = sphi 0, %s63
      %s78 = sphi 0, %s64
      %s82 = sphi 0, %s82
      %s84 = sphi 0, %s82
      %s85 = sphi 0, %s84
      %s99 = sphi 0, %s85
      %s103 = sphi 0, %s103
      %s105 = sphi 0, %s103
      %s106 = sphi 0, %s105
      %s120 = sphi 0, %s106
      %s124 = sphi 0, %s124
      %s126 = sphi 0, %s124
      %s127 = sphi 0, %s126
      %s141 = sphi 0, %s127
      %s145 = sphi 0, %s145
      %s147 = sphi 0, %s145
      %s148 = sphi 0, %s147
      %s162 = sphi 0, %s148
      %s166 = sphi 0, %s166
      %s168 = sphi 0, %s166
      %s169 = sphi 0, %s168
      %s183 = sphi 0, %s169
      %s187 = sphi 0, %s187
      %s189 = sphi 0, %s187
      %s190 = sphi 0, %s189
      %s204 = sphi 0, %s190
      %s208 = sphi 0, %s208
      %s210 = sphi 0, %s208
      %s211 = sphi 0, %s210
      %s225 = sphi 0, %s211
      %s229 = sphi 0, %s229
      %s231 = sphi 0, %s229
      %s232 = sphi 0, %s231
      %s246 = sphi 0, %s232
      %s250 = sphi 0, %s250
      %s252 = sphi 0, %s250
      %s253 = sphi 0, %s252
      %s267 = sphi 0, %s253
      %s271 = sphi 0, %s271
      %s273 = sphi 0, %s271
      %s274 = sphi 0, %s273
      %s288 = sphi 0, %s274
      %s294 = sphi 0, %s296
      %s297 = sphi 0, %s294
      %s298 = sphi 0, %s297
      %s314 = sphi 0, %s298
    $region4: #{tpu_custom_call.1} parent=1 // loop_header_branch
      %30 = sbr.rel (%p28) target = $region8
    $region5: #{tpu_custom_call.1} parent=1 // loop_body
      %s32 = ssub.s32 %s27, 1
      %s33 = ssub.s32 %s27, 2
      %s34 = sadd.s32 %s27, 1
      %s35 = ssub.s32 %s27, %s34
      %p36 = scmp.eq.s32.totalorder %s35, 0
      %s38 = sadd.s32 %s37, 1
      %s39 = scalar_select %p36, %s37, %s38
      %p42 = pneg %p36
      %p43 = scmp.eq.s32.totalorder %s27, 1
      %p44 = por %p42, %p43
      %p45 = scmp.ne.s32.totalorder %s37, %s40
      %p46 = scmp.eq.s32.totalorder %s27, 0
      %p47 = por %p45, %p46
      %p48 = scmp.ne.s32.totalorder %s37, %s40
      %p49 = scmp.eq.s32.totalorder %s32, 1
      %p50 = por %p48, %p49
      %p51 = scmp.ne.s32.totalorder %s40, %s41
      %p52 = scmp.eq.s32.totalorder %s32, 0
      %p53 = por %p51, %p52
      %p54 = scmp.ne.s32.totalorder %s40, %s41
      %p55 = scmp.eq.s32.totalorder %s33, 1
      %p56 = por %p54, %p55
      %p58 = scmp.ne.s32.totalorder %s41, %s57
      %p59 = scmp.eq.s32.totalorder %s33, 0
      %p60 = por %p58, %p59
      %s62 = sadd.s32 %s61, 1
      %p65 = scmp.eq.s32.totalorder %s27, 1
      %p66 = scmp.ne.s32.totalorder %s61, %s63
      %p67 = scmp.eq.s32.totalorder %s27, 0
      %p68 = por %p66, %p67
      %p69 = scmp.ne.s32.totalorder %s61, %s63
      %p70 = scmp.eq.s32.totalorder %s32, 1
      %p71 = por %p69, %p70
      %p72 = scmp.ne.s32.totalorder %s63, %s64
      %p73 = scmp.eq.s32.totalorder %s32, 0
      %p74 = por %p72, %p73
      %p75 = scmp.ne.s32.totalorder %s63, %s64
      %p76 = scmp.eq.s32.totalorder %s33, 1
      %p77 = por %p75, %p76
      %p79 = scmp.ne.s32.totalorder %s64, %s78
      %p80 = scmp.eq.s32.totalorder %s33, 0
      %p81 = por %p79, %p80
      %s83 = sadd.s32 %s82, 1
      %p86 = scmp.eq.s32.totalorder %s27, 1
      %p87 = scmp.ne.s32.totalorder %s82, %s84
      %p88 = scmp.eq.s32.totalorder %s27, 0
      %p89 = por %p87, %p88
      %p90 = scmp.ne.s32.totalorder %s82, %s84
      %p91 = scmp.eq.s32.totalorder %s32, 1
      %p92 = por %p90, %p91
      %p93 = scmp.ne.s32.totalorder %s84, %s85
      %p94 = scmp.eq.s32.totalorder %s32, 0
      %p95 = por %p93, %p94
      %p96 = scmp.ne.s32.totalorder %s84, %s85
      %p97 = scmp.eq.s32.totalorder %s33, 1
      %p98 = por %p96, %p97
      %p100 = scmp.ne.s32.totalorder %s85, %s99
      %p101 = scmp.eq.s32.totalorder %s33, 0
      %p102 = por %p100, %p101
      %s104 = sadd.s32 %s103, 1
      %p107 = scmp.eq.s32.totalorder %s27, 1
      %p108 = scmp.ne.s32.totalorder %s103, %s105
      %p109 = scmp.eq.s32.totalorder %s27, 0
      %p110 = por %p108, %p109
      %p111 = scmp.ne.s32.totalorder %s103, %s105
      %p112 = scmp.eq.s32.totalorder %s32, 1
      %p113 = por %p111, %p112
      %p114 = scmp.ne.s32.totalorder %s105, %s106
      %p115 = scmp.eq.s32.totalorder %s32, 0
      %p116 = por %p114, %p115
      %p117 = scmp.ne.s32.totalorder %s105, %s106
      %p118 = scmp.eq.s32.totalorder %s33, 1
      %p119 = por %p117, %p118
      %p121 = scmp.ne.s32.totalorder %s106, %s120
      %p122 = scmp.eq.s32.totalorder %s33, 0
      %p123 = por %p121, %p122
      %s125 = sadd.s32 %s124, 1
      %p128 = scmp.eq.s32.totalorder %s27, 1
      %p129 = scmp.ne.s32.totalorder %s124, %s126
      %p130 = scmp.eq.s32.totalorder %s27, 0
      %p131 = por %p129, %p130
      %p132 = scmp.ne.s32.totalorder %s124, %s126
      %p133 = scmp.eq.s32.totalorder %s32, 1
      %p134 = por %p132, %p133
      %p135 = scmp.ne.s32.totalorder %s126, %s127
      %p136 = scmp.eq.s32.totalorder %s32, 0
      %p137 = por %p135, %p136
      %p138 = scmp.ne.s32.totalorder %s126, %s127
      %p139 = scmp.eq.s32.totalorder %s33, 1
      %p140 = por %p138, %p139
      %p142 = scmp.ne.s32.totalorder %s127, %s141
      %p143 = scmp.eq.s32.totalorder %s33, 0
      %p144 = por %p142, %p143
      %s146 = sadd.s32 %s145, 1
      %p149 = scmp.eq.s32.totalorder %s27, 1
      %p150 = scmp.ne.s32.totalorder %s145, %s147
      %p151 = scmp.eq.s32.totalorder %s27, 0
      %p152 = por %p150, %p151
      %p153 = scmp.ne.s32.totalorder %s145, %s147
      %p154 = scmp.eq.s32.totalorder %s32, 1
      %p155 = por %p153, %p154
      %p156 = scmp.ne.s32.totalorder %s147, %s148
      %p157 = scmp.eq.s32.totalorder %s32, 0
      %p158 = por %p156, %p157
      %p159 = scmp.ne.s32.totalorder %s147, %s148
      %p160 = scmp.eq.s32.totalorder %s33, 1
      %p161 = por %p159, %p160
      %p163 = scmp.ne.s32.totalorder %s148, %s162
      %p164 = scmp.eq.s32.totalorder %s33, 0
      %p165 = por %p163, %p164
      %s167 = sadd.s32 %s166, 1
      %p170 = scmp.eq.s32.totalorder %s27, 1
      %p171 = scmp.ne.s32.totalorder %s166, %s168
      %p172 = scmp.eq.s32.totalorder %s27, 0
      %p173 = por %p171, %p172
      %p174 = scmp.ne.s32.totalorder %s166, %s168
      %p175 = scmp.eq.s32.totalorder %s32, 1
      %p176 = por %p174, %p175
      %p177 = scmp.ne.s32.totalorder %s168, %s169
      %p178 = scmp.eq.s32.totalorder %s32, 0
      %p179 = por %p177, %p178
      %p180 = scmp.ne.s32.totalorder %s168, %s169
      %p181 = scmp.eq.s32.totalorder %s33, 1
      %p182 = por %p180, %p181
      %p184 = scmp.ne.s32.totalorder %s169, %s183
      %p185 = scmp.eq.s32.totalorder %s33, 0
      %p186 = por %p184, %p185
      %s188 = sadd.s32 %s187, 1
      %p191 = scmp.eq.s32.totalorder %s27, 1
      %p192 = scmp.ne.s32.totalorder %s187, %s189
      %p193 = scmp.eq.s32.totalorder %s27, 0
      %p194 = por %p192, %p193
      %p195 = scmp.ne.s32.totalorder %s187, %s189
      %p196 = scmp.eq.s32.totalorder %s32, 1
      %p197 = por %p195, %p196
      %p198 = scmp.ne.s32.totalorder %s189, %s190
      %p199 = scmp.eq.s32.totalorder %s32, 0
      %p200 = por %p198, %p199
      %p201 = scmp.ne.s32.totalorder %s189, %s190
      %p202 = scmp.eq.s32.totalorder %s33, 1
      %p203 = por %p201, %p202
      %p205 = scmp.ne.s32.totalorder %s190, %s204
      %p206 = scmp.eq.s32.totalorder %s33, 0
      %p207 = por %p205, %p206
      %s209 = sadd.s32 %s208, 1
      %p212 = scmp.eq.s32.totalorder %s27, 1
      %p213 = scmp.ne.s32.totalorder %s208, %s210
      %p214 = scmp.eq.s32.totalorder %s27, 0
      %p215 = por %p213, %p214
      %p216 = scmp.ne.s32.totalorder %s208, %s210
      %p217 = scmp.eq.s32.totalorder %s32, 1
      %p218 = por %p216, %p217
      %p219 = scmp.ne.s32.totalorder %s210, %s211
      %p220 = scmp.eq.s32.totalorder %s32, 0
      %p221 = por %p219, %p220
      %p222 = scmp.ne.s32.totalorder %s210, %s211
      %p223 = scmp.eq.s32.totalorder %s33, 1
      %p224 = por %p222, %p223
      %p226 = scmp.ne.s32.totalorder %s211, %s225
      %p227 = scmp.eq.s32.totalorder %s33, 0
      %p228 = por %p226, %p227
      %s230 = sadd.s32 %s229, 1
      %p233 = scmp.eq.s32.totalorder %s27, 1
      %p234 = scmp.ne.s32.totalorder %s229, %s231
      %p235 = scmp.eq.s32.totalorder %s27, 0
      %p236 = por %p234, %p235
      %p237 = scmp.ne.s32.totalorder %s229, %s231
      %p238 = scmp.eq.s32.totalorder %s32, 1
      %p239 = por %p237, %p238
      %p240 = scmp.ne.s32.totalorder %s231, %s232
      %p241 = scmp.eq.s32.totalorder %s32, 0
      %p242 = por %p240, %p241
      %p243 = scmp.ne.s32.totalorder %s231, %s232
      %p244 = scmp.eq.s32.totalorder %s33, 1
      %p245 = por %p243, %p244
      %p247 = scmp.ne.s32.totalorder %s232, %s246
      %p248 = scmp.eq.s32.totalorder %s33, 0
      %p249 = por %p247, %p248
      %s251 = sadd.s32 %s250, 1
      %p254 = scmp.eq.s32.totalorder %s27, 1
      %p255 = scmp.ne.s32.totalorder %s250, %s252
      %p256 = scmp.eq.s32.totalorder %s27, 0
      %p257 = por %p255, %p256
      %p258 = scmp.ne.s32.totalorder %s250, %s252
      %p259 = scmp.eq.s32.totalorder %s32, 1
      %p260 = por %p258, %p259
      %p261 = scmp.ne.s32.totalorder %s252, %s253
      %p262 = scmp.eq.s32.totalorder %s32, 0
      %p263 = por %p261, %p262
      %p264 = scmp.ne.s32.totalorder %s252, %s253
      %p265 = scmp.eq.s32.totalorder %s33, 1
      %p266 = por %p264, %p265
      %p268 = scmp.ne.s32.totalorder %s253, %s267
      %p269 = scmp.eq.s32.totalorder %s33, 0
      %p270 = por %p268, %p269
      %s272 = sadd.s32 %s271, 1
      %p275 = scmp.eq.s32.totalorder %s27, 1
      %p276 = scmp.ne.s32.totalorder %s271, %s273
      %p277 = scmp.eq.s32.totalorder %s27, 0
      %p278 = por %p276, %p277
      %p279 = scmp.ne.s32.totalorder %s271, %s273
      %p280 = scmp.eq.s32.totalorder %s32, 1
      %p281 = por %p279, %p280
      %p282 = scmp.ne.s32.totalorder %s273, %s274
      %p283 = scmp.eq.s32.totalorder %s32, 0
      %p284 = por %p282, %p283
      %p285 = scmp.ne.s32.totalorder %s273, %s274
      %p286 = scmp.eq.s32.totalorder %s33, 1
      %p287 = por %p285, %p286
      %p289 = scmp.ne.s32.totalorder %s274, %s288
      %p290 = scmp.eq.s32.totalorder %s33, 0
      %p291 = por %p289, %p290
      %s292 = ssub.s32 %s27, %s34
      %p293 = scmp.eq.s32.totalorder %s292, 0
      %s295 = sadd.s32 %s294, 1
      %s296 = scalar_select %p293, %s294, %s295
      %p299 = pneg %p293
      %p300 = scmp.eq.s32.totalorder %s27, 1
      %p301 = por %p299, %p300
      %p302 = scmp.ne.s32.totalorder %s294, %s297
      %p303 = scmp.eq.s32.totalorder %s27, 0
      %p304 = por %p302, %p303
      %p305 = scmp.ne.s32.totalorder %s294, %s297
      %p306 = scmp.eq.s32.totalorder %s32, 1
      %p307 = por %p305, %p306
      %p308 = scmp.ne.s32.totalorder %s297, %s298
      %p309 = scmp.eq.s32.totalorder %s32, 0
      %p310 = por %p308, %p309
      %p311 = scmp.ne.s32.totalorder %s297, %s298
      %p312 = scmp.eq.s32.totalorder %s33, 1
      %p313 = por %p311, %p312
      %p315 = scmp.ne.s32.totalorder %s298, %s314
      %p316 = scmp.eq.s32.totalorder %s33, 0
      %p317 = por %p315, %p316
      %p318 = scmp.le.s32.totalorder 1, %s27
      %p319 = scmp.lt.s32.totalorder %s27, 3
      %p320 = pnand %p318, %p319
      %p321 = pneg %p320
      // Predicated region
      $region9: #{tpu_custom_call.1} parent=5 // pred_check
        _
      $region10: #{tpu_custom_call.1} parent=5 // pred_check_branch
        %323 = sbr.rel (%p320) target = $region12
      $region11: #{tpu_custom_call.1} parent=5 // pred_region
        %s324 = ssub.s32 %s27, 1
        // Predicated region
        $region13: #{tpu_custom_call.1} parent=11 // pred_check
          %p325 = pneg %p74
        $region14: #{tpu_custom_call.1} parent=11 // pred_check_branch
          %327 = sbr.rel (%p325) target = $region16
        $region15: #{tpu_custom_call.1} parent=11 // pred_region
          %329 = vsyncadd [#allocation6], 0
          %s330 = sshll.u32 %s1, 4
          %s331 = int_to_ptr.hbm [resolvable:$true] %s330
          %s332 = sshll.u32 [#allocation5], 4
          %s333 = int_to_ptr.vmem [resolvable:$true] %s332
          %338 = dma.hbm_to_vmem [thread:$0]  %s331, 6144, %s333, [#allocation6], 384, 384, 24
        $region16: #{tpu_custom_call.1} parent=11 // pred_fallthru
          _
        // Predicated region
        $region17: #{tpu_custom_call.1} parent=11 // pred_check
          %p339 = pneg %p95
        $region18: #{tpu_custom_call.1} parent=11 // pred_check_branch
          %341 = sbr.rel (%p339) target = $region20
        $region19: #{tpu_custom_call.1} parent=11 // pred_region
          %343 = vsyncadd [#allocation6], 0
          %s344 = sshll.u32 %s2, 4
          %s345 = int_to_ptr.hbm [resolvable:$true] %s344
          %s346 = sshll.u32 [#allocation7], 4
          %s347 = int_to_ptr.vmem [resolvable:$true] %s346
          %352 = dma.hbm_to_vmem [thread:$0]  %s345, 2048, %s347, [#allocation6], 128, 128, 8
        $region20: #{tpu_custom_call.1} parent=11 // pred_fallthru
          _
        // Predicated region
        $region21: #{tpu_custom_call.1} parent=11 // pred_check
          %p353 = pneg %p116
        $region22: #{tpu_custom_call.1} parent=11 // pred_check_branch
          %355 = sbr.rel (%p353) target = $region24
        $region23: #{tpu_custom_call.1} parent=11 // pred_region
          _
        $region24: #{tpu_custom_call.1} parent=11 // pred_fallthru
          _
        // Predicated region
        $region25: #{tpu_custom_call.1} parent=11 // pred_check
          %p356 = pneg %p137
        $region26: #{tpu_custom_call.1} parent=11 // pred_check_branch
          %358 = sbr.rel (%p356) target = $region28
        $region27: #{tpu_custom_call.1} parent=11 // pred_region
          _
        $region28: #{tpu_custom_call.1} parent=11 // pred_fallthru
          _
        // Predicated region
        $region29: #{tpu_custom_call.1} parent=11 // pred_check
          %p359 = pneg %p158
        $region30: #{tpu_custom_call.1} parent=11 // pred_check_branch
          %361 = sbr.rel (%p359) target = $region32
        $region31: #{tpu_custom_call.1} parent=11 // pred_region
          %363 = vsyncadd [#allocation9], 0
          %s365 = sshll.u32 %s5, 4
          %s366 = int_to_ptr.hbm [resolvable:$true] %s365
          %s367 = sshll.u32 [#allocation8], 4
          %s368 = int_to_ptr.vmem [resolvable:$true] %s367
          %370 = dma.hbm_to_vmem [thread:$0]  %s366, 16, %s368, [#allocation9]
        $region32: #{tpu_custom_call.1} parent=11 // pred_fallthru
          _
        // Predicated region
        $region33: #{tpu_custom_call.1} parent=11 // pred_check
          %p371 = pneg %p179
        $region34: #{tpu_custom_call.1} parent=11 // pred_check_branch
          %373 = sbr.rel (%p371) target = $region36
        $region35: #{tpu_custom_call.1} parent=11 // pred_region
          %375 = vsyncadd [#allocation9], 0
          %s376 = sshll.u32 %s6, 4
          %s377 = int_to_ptr.hbm [resolvable:$true] %s376
          %s378 = sshll.u32 [#allocation10], 4
          %s379 = int_to_ptr.vmem [resolvable:$true] %s378
          %384 = dma.hbm_to_vmem [thread:$0]  %s377, 8192, %s379, [#allocation9], 512, 512, 32
        $region36: #{tpu_custom_call.1} parent=11 // pred_fallthru
          _
        // Predicated region
        $region37: #{tpu_custom_call.1} parent=11 // pred_check
          %p385 = pneg %p200
        $region38: #{tpu_custom_call.1} parent=11 // pred_check_branch
          %387 = sbr.rel (%p385) target = $region40
        $region39: #{tpu_custom_call.1} parent=11 // pred_region
          _
        $region40: #{tpu_custom_call.1} parent=11 // pred_fallthru
          _
        // Predicated region
        $region41: #{tpu_custom_call.1} parent=11 // pred_check
          %p388 = pneg %p221
        $region42: #{tpu_custom_call.1} parent=11 // pred_check_branch
          %390 = sbr.rel (%p388) target = $region44
        $region43: #{tpu_custom_call.1} parent=11 // pred_region
          %392 = vsyncadd [#allocation12], 0
          %s393 = sshll.u32 %s8, 4
          %s394 = int_to_ptr.hbm [resolvable:$true] %s393
          %s395 = sshll.u32 [#allocation11], 4
          %s396 = int_to_ptr.vmem [resolvable:$true] %s395
          %401 = dma.hbm_to_vmem [thread:$0]  %s394, 8192, %s396, [#allocation12], 128, 128, 8
        $region44: #{tpu_custom_call.1} parent=11 // pred_fallthru
          _
        // Predicated region
        $region45: #{tpu_custom_call.1} parent=11 // pred_check
          %p402 = pneg %p242
        $region46: #{tpu_custom_call.1} parent=11 // pred_check_branch
          %404 = sbr.rel (%p402) target = $region48
        $region47: #{tpu_custom_call.1} parent=11 // pred_region
          _
        $region48: #{tpu_custom_call.1} parent=11 // pred_fallthru
          _
        // Predicated region
        $region49: #{tpu_custom_call.1} parent=11 // pred_check
          %p405 = pneg %p263
        $region50: #{tpu_custom_call.1} parent=11 // pred_check_branch
          %407 = sbr.rel (%p405) target = $region52
        $region51: #{tpu_custom_call.1} parent=11 // pred_region
          _
        $region52: #{tpu_custom_call.1} parent=11 // pred_fallthru
          _
        // Predicated region
        $region53: #{tpu_custom_call.1} parent=11 // pred_check
          %p408 = pneg %p284
        $region54: #{tpu_custom_call.1} parent=11 // pred_check_branch
          %410 = sbr.rel (%p408) target = $region56
        $region55: #{tpu_custom_call.1} parent=11 // pred_region
          _
        $region56: #{tpu_custom_call.1} parent=11 // pred_fallthru
          _
      $region12: #{tpu_custom_call.1} parent=5 // pred_fallthru
        _
      %p411 = scmp.lt.s32.totalorder %s27, 2
      // Predicated region
      $region57: #{tpu_custom_call.1} parent=5 // pred_check
        %p412 = pneg %p411
      $region58: #{tpu_custom_call.1} parent=5 // pred_check_branch
        %414 = sbr.rel (%p412) target = $region60
      $region59: #{tpu_custom_call.1} parent=5 // pred_region
        // Predicated region
        $region61: #{tpu_custom_call.1} parent=59 // pred_check
          %p415 = pneg %p47
        $region62: #{tpu_custom_call.1} parent=59 // pred_check_branch
          %417 = sbr.rel (%p415) target = $region64
        $region63: #{tpu_custom_call.1} parent=59 // pred_region
          %s418 = sand.u32 %s37, 1
          %s419 = scalar_lea.sflag [#allocation3], %s418
          %s420 = sand.u32 %s37, 1
          %s421 = smul.addr %s420, 64
          %s422 = scalar_lea.vmem [#allocation2], %s421
          %424 = vsyncadd %s419, 0
          %s425 = smul.addr %s27, 8
          %s426 = smul.addr %s425, 8
          %s427 = scalar_lea.hbm %s0, %s426
          %s428 = sshll.u32 %s427, 4
          %s429 = int_to_ptr.hbm [resolvable:$true] %s428
          %s430 = sshll.u32 %s422, 4
          %s431 = int_to_ptr.vmem [resolvable:$true] %s430
          %436 = dma.hbm_to_vmem [thread:$0]  %s429, 1024, %s431, %s419, 128, 128, 8
        $region64: #{tpu_custom_call.1} parent=59 // pred_fallthru
          _
      $region60: #{tpu_custom_call.1} parent=5 // pred_fallthru
        _
      %p437 = scmp.le.s32.totalorder 1, %s27
      %p438 = scmp.lt.s32.totalorder %s27, 3
      %p439 = pnand %p437, %p438
      %p440 = pneg %p439
      // Predicated region
      $region65: #{tpu_custom_call.1} parent=5 // pred_check
        _
      $region66: #{tpu_custom_call.1} parent=5 // pred_check_branch
        %442 = sbr.rel (%p439) target = $region68
      $region67: #{tpu_custom_call.1} parent=5 // pred_region
        %s443 = ssub.s32 %s27, 1
        %s444 = sand.u32 %s40, 1
        %s445 = scalar_lea.sflag [#allocation3], %s444
        %s446 = sand.u32 %s40, 1
        %s447 = smul.addr %s446, 64
        %s448 = scalar_lea.vmem [#allocation2], %s447
        // Predicated region
        $region69: #{tpu_custom_call.1} parent=67 // pred_check
          %p449 = pneg %p53
        $region70: #{tpu_custom_call.1} parent=67 // pred_check_branch
          %451 = sbr.rel (%p449) target = $region72
        $region71: #{tpu_custom_call.1} parent=67 // pred_region
          %453 = dma.done %s445, 1024
        $region72: #{tpu_custom_call.1} parent=67 // pred_fallthru
          _
        // Predicated region
        $region73: #{tpu_custom_call.1} parent=67 // pred_check
          %p454 = pneg %p74
        $region74: #{tpu_custom_call.1} parent=67 // pred_check_branch
          %456 = sbr.rel (%p454) target = $region76
        $region75: #{tpu_custom_call.1} parent=67 // pred_region
          %458 = dma.done [#allocation6], 6144
        $region76: #{tpu_custom_call.1} parent=67 // pred_fallthru
          _
        // Predicated region
        $region77: #{tpu_custom_call.1} parent=67 // pred_check
          %p459 = pneg %p95
        $region78: #{tpu_custom_call.1} parent=67 // pred_check_branch
          %461 = sbr.rel (%p459) target = $region80
        $region79: #{tpu_custom_call.1} parent=67 // pred_region
          %463 = dma.done [#allocation6], 2048
        $region80: #{tpu_custom_call.1} parent=67 // pred_fallthru
          _
        // Predicated region
        $region81: #{tpu_custom_call.1} parent=67 // pred_check
          %p464 = pneg %p158
        $region82: #{tpu_custom_call.1} parent=67 // pred_check_branch
          %466 = sbr.rel (%p464) target = $region84
        $region83: #{tpu_custom_call.1} parent=67 // pred_region
          %468 = dma.done [#allocation9], 16
        $region84: #{tpu_custom_call.1} parent=67 // pred_fallthru
          _
        // Predicated region
        $region85: #{tpu_custom_call.1} parent=67 // pred_check
          %p469 = pneg %p179
        $region86: #{tpu_custom_call.1} parent=67 // pred_check_branch
          %471 = sbr.rel (%p469) target = $region88
        $region87: #{tpu_custom_call.1} parent=67 // pred_region
          %473 = dma.done [#allocation9], 8192
        $region88: #{tpu_custom_call.1} parent=67 // pred_fallthru
          _
        // Predicated region
        $region89: #{tpu_custom_call.1} parent=67 // pred_check
          %p474 = pneg %p221
        $region90: #{tpu_custom_call.1} parent=67 // pred_check_branch
          %476 = sbr.rel (%p474) target = $region92
        $region91: #{tpu_custom_call.1} parent=67 // pred_region
          %478 = dma.done [#allocation12], 8192
        $region92: #{tpu_custom_call.1} parent=67 // pred_fallthru
          _
        %s479 = sand.u32 %s40, 1
        %s480 = scalar_lea.sflag [#allocation3], %s479
        %s481 = sand.u32 %s40, 1
        %s482 = smul.addr %s481, 64
        %s483 = scalar_lea.vmem [#allocation2], %s482
        %p484 = pneg %p53
        %p485 = pneg %p50
        %p486 = pneg %p74
        %p487 = pneg %p71
        %p488 = pneg %p95
        %p489 = pneg %p92
        %p490 = pneg %p116
        %p491 = pneg %p113
        %p492 = pneg %p137
        %p493 = pneg %p134
        %p494 = pneg %p158
        %p495 = pneg %p155
        %p496 = pneg %p179
        %p497 = pneg %p176
        %p498 = pneg %p200
        %p499 = pneg %p197
        %p500 = pneg %p221
        %p501 = pneg %p218
        %p502 = pneg %p242
        %p503 = pneg %p239
        %p504 = pneg %p263
        %p505 = pneg %p260
        %p506 = pneg %p284
        %p507 = pneg %p281
        %p508 = pneg %p310
        %p509 = pneg %p307
        %s510 = sand.u32 %s297, 1
        %s511 = scalar_lea.sflag [#allocation4], %s510
        %s512 = sand.u32 %s297, 1
        %s513 = smul.addr %s512, 64
        %s514 = scalar_lea.vmem [#allocation13], %s513
        %v515 = vld [vmem:[%s448] sm:$0xff]
        %v516 = vld [vmem:[%s448 + $0x8] sm:$0xff]
        %v517 = vld [vmem:[%s448 + $0x10] sm:$0xff]
        %v518 = vld [vmem:[%s448 + $0x18] sm:$0xff]
        %v519 = vld [vmem:[%s448 + $0x20] sm:$0xff]
        %v520 = vld [vmem:[%s448 + $0x28] sm:$0xff]
        %v521 = vld [vmem:[%s448 + $0x30] sm:$0xff]
        %v522 = vld [vmem:[%s448 + $0x38] sm:$0xff]
        %v523 = vld [vmem:[#allocation5] sm:$0xff]
        %v524 = vld [vmem:[#allocation5 + $0x8] sm:$0xff]
        %v525 = vld [vmem:[#allocation5 + $0x10] sm:$0xff]
        %v526 = vld [vmem:[#allocation5 + $0x18] sm:$0xff]
        %v527 = vld [vmem:[#allocation5 + $0x20] sm:$0xff]
        %v528 = vld [vmem:[#allocation5 + $0x28] sm:$0xff]
        %v529 = vld [vmem:[#allocation5 + $0x30] sm:$0xff]
        %v530 = vld [vmem:[#allocation5 + $0x38] sm:$0xff]
        %v531 = vld [vmem:[#allocation5 + $0x40] sm:$0xff]
        %v532 = vld [vmem:[#allocation5 + $0x48] sm:$0xff]
        %v533 = vld [vmem:[#allocation5 + $0x50] sm:$0xff]
        %v534 = vld [vmem:[#allocation5 + $0x58] sm:$0xff]
        %v535 = vld [vmem:[#allocation5 + $0x60] sm:$0xff]
        %v536 = vld [vmem:[#allocation5 + $0x68] sm:$0xff]
        %v537 = vld [vmem:[#allocation5 + $0x70] sm:$0xff]
        %v538 = vld [vmem:[#allocation5 + $0x78] sm:$0xff]
        %v539 = vld [vmem:[#allocation5 + $0x80] sm:$0xff]
        %v540 = vld [vmem:[#allocation5 + $0x88] sm:$0xff]
        %v541 = vld [vmem:[#allocation5 + $0x90] sm:$0xff]
        %v542 = vld [vmem:[#allocation5 + $0x98] sm:$0xff]
        %v543 = vld [vmem:[#allocation5 + $0xa0] sm:$0xff]
        %v544 = vld [vmem:[#allocation5 + $0xa8] sm:$0xff]
        %v545 = vld [vmem:[#allocation5 + $0xb0] sm:$0xff]
        %v546 = vld [vmem:[#allocation5 + $0xb8] sm:$0xff]
        %v547 = vld [vmem:[#allocation5 + $0xc0] sm:$0xff]
        %v548 = vld [vmem:[#allocation5 + $0xc8] sm:$0xff]
        %v549 = vld [vmem:[#allocation5 + $0xd0] sm:$0xff]
        %v550 = vld [vmem:[#allocation5 + $0xd8] sm:$0xff]
        %v551 = vld [vmem:[#allocation5 + $0xe0] sm:$0xff]
        %v552 = vld [vmem:[#allocation5 + $0xe8] sm:$0xff]
        %v553 = vld [vmem:[#allocation5 + $0xf0] sm:$0xff]
        %v554 = vld [vmem:[#allocation5 + $0xf8] sm:$0xff]
        %v555 = vld [vmem:[#allocation5 + $0x100] sm:$0xff]
        %v556 = vld [vmem:[#allocation5 + $0x108] sm:$0xff]
        %v557 = vld [vmem:[#allocation5 + $0x110] sm:$0xff]
        %v558 = vld [vmem:[#allocation5 + $0x118] sm:$0xff]
        %v559 = vld [vmem:[#allocation5 + $0x120] sm:$0xff]
        %v560 = vld [vmem:[#allocation5 + $0x128] sm:$0xff]
        %v561 = vld [vmem:[#allocation5 + $0x130] sm:$0xff]
        %v562 = vld [vmem:[#allocation5 + $0x138] sm:$0xff]
        %v563 = vld [vmem:[#allocation5 + $0x140] sm:$0xff]
        %v564 = vld [vmem:[#allocation5 + $0x148] sm:$0xff]
        %v565 = vld [vmem:[#allocation5 + $0x150] sm:$0xff]
        %v566 = vld [vmem:[#allocation5 + $0x158] sm:$0xff]
        %v567 = vld [vmem:[#allocation5 + $0x160] sm:$0xff]
        %v568 = vld [vmem:[#allocation5 + $0x168] sm:$0xff]
        %v569 = vld [vmem:[#allocation5 + $0x170] sm:$0xff]
        %v570 = vld [vmem:[#allocation5 + $0x178] sm:$0xff]
        %571 = vmatpush.msra.mxu0 %v568
        %572 = vmatpush.msra.mxu0 %v565
        %573 = vmatpush.msra.mxu0 %v562
        %574 = vmatpush.msra.mxu0 %v559
        %575 = vmatpush.msra.mxu0 %v556
        %576 = vmatpush.msra.mxu0 %v553
        %577 = vmatpush.msra.mxu0 %v550
        %578 = vmatpush.msra.mxu0 %v547
        %579 = vmatpush.msra.mxu0 %v544
        %580 = vmatpush.msra.mxu0 %v541
        %581 = vmatpush.msra.mxu0 %v538
        %582 = vmatpush.msra.mxu0 %v535
        %583 = vmatpush.msra.mxu0 %v532
        %584 = vmatpush.msra.mxu0 %v529
        %585 = vmatpush.msra.mxu0 %v526
        %586 = vmatpush.msra.mxu0 %v523
        %587 = vmatmul.f32.gmra.mxu0 %v515
        %v588 = vpop.f32.mrf.mxu0
        %v589 = vadd.f32 0.0, %v588
        %590 = vmatmul.f32.gmra.mxu0 %v516
        %v591 = vpop.f32.mrf.mxu0
        %v592 = vadd.f32 0.0, %v591
        %593 = vmatmul.f32.gmra.mxu0 %v517
        %v594 = vpop.f32.mrf.mxu0
        %v595 = vadd.f32 0.0, %v594
        %596 = vmatmul.f32.gmra.mxu0 %v518
        %v597 = vpop.f32.mrf.mxu0
        %v598 = vadd.f32 0.0, %v597
        %599 = vmatmul.f32.gmra.mxu0 %v519
        %v600 = vpop.f32.mrf.mxu0
        %v601 = vadd.f32 0.0, %v600
        %602 = vmatmul.f32.gmra.mxu0 %v520
        %v603 = vpop.f32.mrf.mxu0
        %v604 = vadd.f32 0.0, %v603
        %605 = vmatmul.f32.gmra.mxu0 %v521
        %v606 = vpop.f32.mrf.mxu0
        %v607 = vadd.f32 0.0, %v606
        %608 = vmatmul.f32.gmra.mxu0 %v522
        %v609 = vpop.f32.mrf.mxu0
        %v610 = vadd.f32 0.0, %v609
        %611 = vdwg.mxu0
        %612 = vmatpush.msra.mxu0 %v569
        %613 = vmatpush.msra.mxu0 %v566
        %614 = vmatpush.msra.mxu0 %v563
        %615 = vmatpush.msra.mxu0 %v560
        %616 = vmatpush.msra.mxu0 %v557
        %617 = vmatpush.msra.mxu0 %v554
        %618 = vmatpush.msra.mxu0 %v551
        %619 = vmatpush.msra.mxu0 %v548
        %620 = vmatpush.msra.mxu0 %v545
        %621 = vmatpush.msra.mxu0 %v542
        %622 = vmatpush.msra.mxu0 %v539
        %623 = vmatpush.msra.mxu0 %v536
        %624 = vmatpush.msra.mxu0 %v533
        %625 = vmatpush.msra.mxu0 %v530
        %626 = vmatpush.msra.mxu0 %v527
        %627 = vmatpush.msra.mxu0 %v524
        %628 = vmatmul.f32.gmra.mxu0 %v515
        %v629 = vpop.f32.mrf.mxu0
        %v630 = vadd.f32 0.0, %v629
        %631 = vmatmul.f32.gmra.mxu0 %v516
        %v632 = vpop.f32.mrf.mxu0
        %v633 = vadd.f32 0.0, %v632
        %634 = vmatmul.f32.gmra.mxu0 %v517
        %v635 = vpop.f32.mrf.mxu0
        %v636 = vadd.f32 0.0, %v635
        %637 = vmatmul.f32.gmra.mxu0 %v518
        %v638 = vpop.f32.mrf.mxu0
        %v639 = vadd.f32 0.0, %v638
        %640 = vmatmul.f32.gmra.mxu0 %v519
        %v641 = vpop.f32.mrf.mxu0
        %v642 = vadd.f32 0.0, %v641
        %643 = vmatmul.f32.gmra.mxu0 %v520
        %v644 = vpop.f32.mrf.mxu0
        %v645 = vadd.f32 0.0, %v644
        %646 = vmatmul.f32.gmra.mxu0 %v521
        %v647 = vpop.f32.mrf.mxu0
        %v648 = vadd.f32 0.0, %v647
        %649 = vmatmul.f32.gmra.mxu0 %v522
        %v650 = vpop.f32.mrf.mxu0
        %v651 = vadd.f32 0.0, %v650
        %652 = vdwg.mxu0
        %653 = vmatpush.msra.mxu0 %v570
        %654 = vmatpush.msra.mxu0 %v567
        %655 = vmatpush.msra.mxu0 %v564
        %656 = vmatpush.msra.mxu0 %v561
        %657 = vmatpush.msra.mxu0 %v558
        %658 = vmatpush.msra.mxu0 %v555
        %659 = vmatpush.msra.mxu0 %v552
        %660 = vmatpush.msra.mxu0 %v549
        %661 = vmatpush.msra.mxu0 %v546
        %662 = vmatpush.msra.mxu0 %v543
        %663 = vmatpush.msra.mxu0 %v540
        %664 = vmatpush.msra.mxu0 %v537
        %665 = vmatpush.msra.mxu0 %v534
        %666 = vmatpush.msra.mxu0 %v531
        %667 = vmatpush.msra.mxu0 %v528
        %668 = vmatpush.msra.mxu0 %v525
        %669 = vmatmul.f32.gmra.mxu0 %v515
        %v670 = vpop.f32.mrf.mxu0
        %v671 = vadd.f32 0.0, %v670
        %672 = vmatmul.f32.gmra.mxu0 %v516
        %v673 = vpop.f32.mrf.mxu0
        %v674 = vadd.f32 0.0, %v673
        %675 = vmatmul.f32.gmra.mxu0 %v517
        %v676 = vpop.f32.mrf.mxu0
        %v677 = vadd.f32 0.0, %v676
        %678 = vmatmul.f32.gmra.mxu0 %v518
        %v679 = vpop.f32.mrf.mxu0
        %v680 = vadd.f32 0.0, %v679
        %681 = vmatmul.f32.gmra.mxu0 %v519
        %v682 = vpop.f32.mrf.mxu0
        %v683 = vadd.f32 0.0, %v682
        %684 = vmatmul.f32.gmra.mxu0 %v520
        %v685 = vpop.f32.mrf.mxu0
        %v686 = vadd.f32 0.0, %v685
        %687 = vmatmul.f32.gmra.mxu0 %v521
        %v688 = vpop.f32.mrf.mxu0
        %v689 = vadd.f32 0.0, %v688
        %690 = vmatmul.f32.gmra.mxu0 %v522
        %v691 = vpop.f32.mrf.mxu0
        %v692 = vadd.f32 0.0, %v691
        %693 = vdwg.mxu0
        %vm694 = vcmask 261120
        %v696 = vsel %vm694, %v589, 0
        %v699 = vsel %vm694, %v592, 0
        %v702 = vsel %vm694, %v595, 0
        %v705 = vsel %vm694, %v598, 0
        %v708 = vsel %vm694, %v601, 0
        %v711 = vsel %vm694, %v604, 0
        %v714 = vsel %vm694, %v607, 0
        %v717 = vsel %vm694, %v610, 0
        %v720 = vsel %vm694, %v630, 0
        %v723 = vsel %vm694, %v633, 0
        %v726 = vsel %vm694, %v636, 0
        %v729 = vsel %vm694, %v639, 0
        %v732 = vsel %vm694, %v642, 0
        %v735 = vsel %vm694, %v645, 0
        %v738 = vsel %vm694, %v648, 0
        %v741 = vsel %vm694, %v651, 0
        %743 = vmatpush.xpose.msra.mxu0 0.0
        %744 = vmatpush.xpose.msra.mxu0 0.0
        %745 = vmatpush.xpose.msra.mxu0 0.0
        %746 = vmatpush.xpose.msra.mxu0 0.0
        %747 = vmatpush.xpose.msra.mxu0 0.0
        %748 = vmatpush.xpose.msra.mxu0 0.0
        %749 = vmatpush.xpose.msra.mxu0 0.0
        %750 = vmatpush.xpose.msra.mxu0 0.0
        %751 = vmatpush.xpose.msra.mxu0 %v741
        %752 = vmatpush.xpose.msra.mxu0 %v738
        %753 = vmatpush.xpose.msra.mxu0 %v735
        %754 = vmatpush.xpose.msra.mxu0 %v732
        %755 = vmatpush.xpose.msra.mxu0 %v729
        %756 = vmatpush.xpose.msra.mxu0 %v726
        %757 = vmatpush.xpose.msra.mxu0 %v723
        %758 = vmatpush.xpose.msra.mxu0 %v720
        %759 = vmatmul.f32.gmra.mxu0 %v696
        %v760 = vpop.f32.mrf.mxu0
        %v761 = vadd.f32 0.0, %v760
        %762 = vmatmul.f32.gmra.mxu0 %v699
        %v763 = vpop.f32.mrf.mxu0
        %v764 = vadd.f32 0.0, %v763
        %765 = vmatmul.f32.gmra.mxu0 %v702
        %v766 = vpop.f32.mrf.mxu0
        %v767 = vadd.f32 0.0, %v766
        %768 = vmatmul.f32.gmra.mxu0 %v705
        %v769 = vpop.f32.mrf.mxu0
        %v770 = vadd.f32 0.0, %v769
        %771 = vmatmul.f32.gmra.mxu0 %v708
        %v772 = vpop.f32.mrf.mxu0
        %v773 = vadd.f32 0.0, %v772
        %774 = vmatmul.f32.gmra.mxu0 %v711
        %v775 = vpop.f32.mrf.mxu0
        %v776 = vadd.f32 0.0, %v775
        %777 = vmatmul.f32.gmra.mxu0 %v714
        %v778 = vpop.f32.mrf.mxu0
        %v779 = vadd.f32 0.0, %v778
        %780 = vmatmul.f32.gmra.mxu0 %v717
        %v781 = vpop.f32.mrf.mxu0
        %v782 = vadd.f32 0.0, %v781
        %783 = vdwg.mxu0
        %v784 = vmul.f32 %v761, 0.17677669
        %v785 = vmul.f32 %v764, 0.17677669
        %v786 = vmul.f32 %v767, 0.17677669
        %v787 = vmul.f32 %v770, 0.17677669
        %v788 = vmul.f32 %v773, 0.17677669
        %v789 = vmul.f32 %v776, 0.17677669
        %v790 = vmul.f32 %v779, 0.17677669
        %v791 = vmul.f32 %v782, 0.17677669
        %vm792 = vcmask 523264
        %v793 = vsel %vm792, %v784, -inf
        %794 = vmax.xlane.f32.xlu0 %v793
        %v795 = vpop.xlane.xlu0 %794
        %v796 = vsel %vm792, %v785, -inf
        %797 = vmax.xlane.f32.xlu0 %v796
        %v798 = vpop.xlane.xlu0 %797
        %v799 = vsel %vm792, %v786, -inf
        %800 = vmax.xlane.f32.xlu0 %v799
        %v801 = vpop.xlane.xlu0 %800
        %v802 = vsel %vm792, %v787, -inf
        %803 = vmax.xlane.f32.xlu0 %v802
        %v804 = vpop.xlane.xlu0 %803
        %v805 = vsel %vm792, %v788, -inf
        %806 = vmax.xlane.f32.xlu0 %v805
        %v807 = vpop.xlane.xlu0 %806
        %v808 = vsel %vm792, %v789, -inf
        %809 = vmax.xlane.f32.xlu0 %v808
        %v810 = vpop.xlane.xlu0 %809
        %v811 = vsel %vm792, %v790, -inf
        %812 = vmax.xlane.f32.xlu0 %v811
        %v813 = vpop.xlane.xlu0 %812
        %v814 = vsel %vm792, %v791, -inf
        %815 = vmax.xlane.f32.xlu0 %v814
        %v816 = vpop.xlane.xlu0 %815
        %v817 = vsub.f32 %v784, %v795
        %v818 = vsub.f32 %v785, %v798
        %v819 = vsub.f32 %v786, %v801
        %v820 = vsub.f32 %v787, %v804
        %v821 = vsub.f32 %v788, %v807
        %v822 = vsub.f32 %v789, %v810
        %v823 = vsub.f32 %v790, %v813
        %v824 = vsub.f32 %v791, %v816
        %v825 = vmul.f32 %v817, 1.442695
        %v826 = vpow.pop %v825
        %v827 = vmul.f32 %v818, 1.442695
        %v828 = vpow.pop %v827
        %v829 = vmul.f32 %v819, 1.442695
        %v830 = vpow.pop %v829
        %v831 = vmul.f32 %v820, 1.442695
        %v832 = vpow.pop %v831
        %v833 = vmul.f32 %v821, 1.442695
        %v834 = vpow.pop %v833
        %v835 = vmul.f32 %v822, 1.442695
        %v836 = vpow.pop %v835
        %v837 = vmul.f32 %v823, 1.442695
        %v838 = vpow.pop %v837
        %v839 = vmul.f32 %v824, 1.442695
        %v840 = vpow.pop %v839
        %v841 = vsel %vm792, %v826, 0.0
        %842 = vadd.xlane.f32.xlu0 %v841
        %v843 = vpop.xlane.xlu0 %842
        %v844 = vsel %vm792, %v828, 0.0
        %845 = vadd.xlane.f32.xlu0 %v844
        %v846 = vpop.xlane.xlu0 %845
        %v847 = vsel %vm792, %v830, 0.0
        %848 = vadd.xlane.f32.xlu0 %v847
        %v849 = vpop.xlane.xlu0 %848
        %v850 = vsel %vm792, %v832, 0.0
        %851 = vadd.xlane.f32.xlu0 %v850
        %v852 = vpop.xlane.xlu0 %851
        %v853 = vsel %vm792, %v834, 0.0
        %854 = vadd.xlane.f32.xlu0 %v853
        %v855 = vpop.xlane.xlu0 %854
        %v856 = vsel %vm792, %v836, 0.0
        %857 = vadd.xlane.f32.xlu0 %v856
        %v858 = vpop.xlane.xlu0 %857
        %v859 = vsel %vm792, %v838, 0.0
        %860 = vadd.xlane.f32.xlu0 %v859
        %v861 = vpop.xlane.xlu0 %860
        %v862 = vsel %vm792, %v840, 0.0
        %863 = vadd.xlane.f32.xlu0 %v862
        %v864 = vpop.xlane.xlu0 %863
        %v865 = vrcp.pop %v843
        %v866 = vmul.f32 %v843, %v865
        %v867 = vsub.f32 1.0, %v866
        %v868 = vmul.f32 %v865, %v867
        %v869 = vadd.f32 %v865, %v868
        %vm870 = vweird.f32 %v843
        %vm871 = vweird.f32 %v865
        %vm872 = vmor %vm870, %vm871
        %v873 = vsel %vm872, %v865, %v869
        %v874 = vand.u32 2147483647, %v843
        %vm875 = vcmp.eq.f32.partialorder %v874, 8.507059e+37
        %v876 = vand.u32 %v843, 2147483648
        %v877 = vor.u32 1.1754944e-38, %v876
        %v878 = vsel %vm875, %v877, %v873
        %v879 = vmul.f32 %v826, %v878
        %v880 = vrcp.pop %v846
        %v881 = vmul.f32 %v846, %v880
        %v882 = vsub.f32 1.0, %v881
        %v883 = vmul.f32 %v880, %v882
        %v884 = vadd.f32 %v880, %v883
        %vm885 = vweird.f32 %v846
        %vm886 = vweird.f32 %v880
        %vm887 = vmor %vm885, %vm886
        %v888 = vsel %vm887, %v880, %v884
        %v889 = vand.u32 2147483647, %v846
        %vm890 = vcmp.eq.f32.partialorder %v889, 8.507059e+37
        %v891 = vand.u32 %v846, 2147483648
        %v892 = vor.u32 1.1754944e-38, %v891
        %v893 = vsel %vm890, %v892, %v888
        %v894 = vmul.f32 %v828, %v893
        %v895 = vrcp.pop %v849
        %v896 = vmul.f32 %v849, %v895
        %v897 = vsub.f32 1.0, %v896
        %v898 = vmul.f32 %v895, %v897
        %v899 = vadd.f32 %v895, %v898
        %vm900 = vweird.f32 %v849
        %vm901 = vweird.f32 %v895
        %vm902 = vmor %vm900, %vm901
        %v903 = vsel %vm902, %v895, %v899
        %v904 = vand.u32 2147483647, %v849
        %vm905 = vcmp.eq.f32.partialorder %v904, 8.507059e+37
        %v906 = vand.u32 %v849, 2147483648
        %v907 = vor.u32 1.1754944e-38, %v906
        %v908 = vsel %vm905, %v907, %v903
        %v909 = vmul.f32 %v830, %v908
        %v910 = vrcp.pop %v852
        %v911 = vmul.f32 %v852, %v910
        %v912 = vsub.f32 1.0, %v911
        %v913 = vmul.f32 %v910, %v912
        %v914 = vadd.f32 %v910, %v913
        %vm915 = vweird.f32 %v852
        %vm916 = vweird.f32 %v910
        %vm917 = vmor %vm915, %vm916
        %v918 = vsel %vm917, %v910, %v914
        %v919 = vand.u32 2147483647, %v852
        %vm920 = vcmp.eq.f32.partialorder %v919, 8.507059e+37
        %v921 = vand.u32 %v852, 2147483648
        %v922 = vor.u32 1.1754944e-38, %v921
        %v923 = vsel %vm920, %v922, %v918
        %v924 = vmul.f32 %v832, %v923
        %v925 = vrcp.pop %v855
        %v926 = vmul.f32 %v855, %v925
        %v927 = vsub.f32 1.0, %v926
        %v928 = vmul.f32 %v925, %v927
        %v929 = vadd.f32 %v925, %v928
        %vm930 = vweird.f32 %v855
        %vm931 = vweird.f32 %v925
        %vm932 = vmor %vm930, %vm931
        %v933 = vsel %vm932, %v925, %v929
        %v934 = vand.u32 2147483647, %v855
        %vm935 = vcmp.eq.f32.partialorder %v934, 8.507059e+37
        %v936 = vand.u32 %v855, 2147483648
        %v937 = vor.u32 1.1754944e-38, %v936
        %v938 = vsel %vm935, %v937, %v933
        %v939 = vmul.f32 %v834, %v938
        %v940 = vrcp.pop %v858
        %v941 = vmul.f32 %v858, %v940
        %v942 = vsub.f32 1.0, %v941
        %v943 = vmul.f32 %v940, %v942
        %v944 = vadd.f32 %v940, %v943
        %vm945 = vweird.f32 %v858
        %vm946 = vweird.f32 %v940
        %vm947 = vmor %vm945, %vm946
        %v948 = vsel %vm947, %v940, %v944
        %v949 = vand.u32 2147483647, %v858
        %vm950 = vcmp.eq.f32.partialorder %v949, 8.507059e+37
        %v951 = vand.u32 %v858, 2147483648
        %v952 = vor.u32 1.1754944e-38, %v951
        %v953 = vsel %vm950, %v952, %v948
        %v954 = vmul.f32 %v836, %v953
        %v955 = vrcp.pop %v861
        %v956 = vmul.f32 %v861, %v955
        %v957 = vsub.f32 1.0, %v956
        %v958 = vmul.f32 %v955, %v957
        %v959 = vadd.f32 %v955, %v958
        %vm960 = vweird.f32 %v861
        %vm961 = vweird.f32 %v955
        %vm962 = vmor %vm960, %vm961
        %v963 = vsel %vm962, %v955, %v959
        %v964 = vand.u32 2147483647, %v861
        %vm965 = vcmp.eq.f32.partialorder %v964, 8.507059e+37
        %v966 = vand.u32 %v861, 2147483648
        %v967 = vor.u32 1.1754944e-38, %v966
        %v968 = vsel %vm965, %v967, %v963
        %v969 = vmul.f32 %v838, %v968
        %v970 = vrcp.pop %v864
        %v971 = vmul.f32 %v864, %v970
        %v972 = vsub.f32 1.0, %v971
        %v973 = vmul.f32 %v970, %v972
        %v974 = vadd.f32 %v970, %v973
        %vm975 = vweird.f32 %v864
        %vm976 = vweird.f32 %v970
        %vm977 = vmor %vm975, %vm976
        %v978 = vsel %vm977, %v970, %v974
        %v979 = vand.u32 2147483647, %v864
        %vm980 = vcmp.eq.f32.partialorder %v979, 8.507059e+37
        %v981 = vand.u32 %v864, 2147483648
        %v982 = vor.u32 1.1754944e-38, %v981
        %v983 = vsel %vm980, %v982, %v978
        %v984 = vmul.f32 %v840, %v983
        %v986 = vsel %vm792, %v879, 0
        %v989 = vsel %vm792, %v894, 0
        %v992 = vsel %vm792, %v909, 0
        %v995 = vsel %vm792, %v924, 0
        %v998 = vsel %vm792, %v939, 0
        %v1001 = vsel %vm792, %v954, 0
        %v1004 = vsel %vm792, %v969, 0
        %v1007 = vsel %vm792, %v984, 0
        %1009 = vmatpush.msra.mxu0 0.0
        %1010 = vmatpush.msra.mxu0 0.0
        %1011 = vmatpush.msra.mxu0 0.0
        %1012 = vmatpush.msra.mxu0 0.0
        %1013 = vmatpush.msra.mxu0 0.0
        %1014 = vmatpush.msra.mxu0 0.0
        %1015 = vmatpush.msra.mxu0 0.0
        %1016 = vmatpush.msra.mxu0 0.0
        %1017 = vmatpush.msra.mxu0 %v692
        %1018 = vmatpush.msra.mxu0 %v689
        %1019 = vmatpush.msra.mxu0 %v686
        %1020 = vmatpush.msra.mxu0 %v683
        %1021 = vmatpush.msra.mxu0 %v680
        %1022 = vmatpush.msra.mxu0 %v677
        %1023 = vmatpush.msra.mxu0 %v674
        %1024 = vmatpush.msra.mxu0 %v671
        %1025 = vmatmul.f32.gmra.mxu0 %v986
        %v1026 = vpop.f32.mrf.mxu0
        %v1027 = vadd.f32 0.0, %v1026
        %1028 = vmatmul.f32.gmra.mxu0 %v989
        %v1029 = vpop.f32.mrf.mxu0
        %v1030 = vadd.f32 0.0, %v1029
        %1031 = vmatmul.f32.gmra.mxu0 %v992
        %v1032 = vpop.f32.mrf.mxu0
        %v1033 = vadd.f32 0.0, %v1032
        %1034 = vmatmul.f32.gmra.mxu0 %v995
        %v1035 = vpop.f32.mrf.mxu0
        %v1036 = vadd.f32 0.0, %v1035
        %1037 = vmatmul.f32.gmra.mxu0 %v998
        %v1038 = vpop.f32.mrf.mxu0
        %v1039 = vadd.f32 0.0, %v1038
        %1040 = vmatmul.f32.gmra.mxu0 %v1001
        %v1041 = vpop.f32.mrf.mxu0
        %v1042 = vadd.f32 0.0, %v1041
        %1043 = vmatmul.f32.gmra.mxu0 %v1004
        %v1044 = vpop.f32.mrf.mxu0
        %v1045 = vadd.f32 0.0, %v1044
        %1046 = vmatmul.f32.gmra.mxu0 %v1007
        %v1047 = vpop.f32.mrf.mxu0
        %v1048 = vadd.f32 0.0, %v1047
        %1049 = vdwg.mxu0
        %1050 = vrot.lane.b32.xlu0 %v589, 96
        %v1051 = vpop.permute.xlu0 %1050
        %1052 = vrot.lane.b32.xlu0 %v592, 96
        %v1053 = vpop.permute.xlu0 %1052
        %1054 = vrot.lane.b32.xlu0 %v595, 96
        %v1055 = vpop.permute.xlu0 %1054
        %1056 = vrot.lane.b32.xlu0 %v598, 96
        %v1057 = vpop.permute.xlu0 %1056
        %1058 = vrot.lane.b32.xlu0 %v601, 96
        %v1059 = vpop.permute.xlu0 %1058
        %1060 = vrot.lane.b32.xlu0 %v604, 96
        %v1061 = vpop.permute.xlu0 %1060
        %1062 = vrot.lane.b32.xlu0 %v607, 96
        %v1063 = vpop.permute.xlu0 %1062
        %1064 = vrot.lane.b32.xlu0 %v610, 96
        %v1065 = vpop.permute.xlu0 %1064
        %1066 = vrot.lane.b32.xlu0 %v630, 96
        %v1067 = vpop.permute.xlu0 %1066
        %1068 = vrot.lane.b32.xlu0 %v633, 96
        %v1069 = vpop.permute.xlu0 %1068
        %1070 = vrot.lane.b32.xlu0 %v636, 96
        %v1071 = vpop.permute.xlu0 %1070
        %1072 = vrot.lane.b32.xlu0 %v639, 96
        %v1073 = vpop.permute.xlu0 %1072
        %1074 = vrot.lane.b32.xlu0 %v642, 96
        %v1075 = vpop.permute.xlu0 %1074
        %1076 = vrot.lane.b32.xlu0 %v645, 96
        %v1077 = vpop.permute.xlu0 %1076
        %1078 = vrot.lane.b32.xlu0 %v648, 96
        %v1079 = vpop.permute.xlu0 %1078
        %1080 = vrot.lane.b32.xlu0 %v651, 96
        %v1081 = vpop.permute.xlu0 %1080
        %v1082 = vsel %vm694, %v1051, 0
        %v1084 = vsel %vm694, %v1053, 0
        %v1086 = vsel %vm694, %v1055, 0
        %v1088 = vsel %vm694, %v1057, 0
        %v1090 = vsel %vm694, %v1059, 0
        %v1092 = vsel %vm694, %v1061, 0
        %v1094 = vsel %vm694, %v1063, 0
        %v1096 = vsel %vm694, %v1065, 0
        %v1098 = vsel %vm694, %v1067, 0
        %v1100 = vsel %vm694, %v1069, 0
        %v1102 = vsel %vm694, %v1071, 0
        %v1104 = vsel %vm694, %v1073, 0
        %v1106 = vsel %vm694, %v1075, 0
        %v1108 = vsel %vm694, %v1077, 0
        %v1110 = vsel %vm694, %v1079, 0
        %v1112 = vsel %vm694, %v1081, 0
        %1114 = vmatpush.xpose.msra.mxu0 0.0
        %1115 = vmatpush.xpose.msra.mxu0 0.0
        %1116 = vmatpush.xpose.msra.mxu0 0.0
        %1117 = vmatpush.xpose.msra.mxu0 0.0
        %1118 = vmatpush.xpose.msra.mxu0 0.0
        %1119 = vmatpush.xpose.msra.mxu0 0.0
        %1120 = vmatpush.xpose.msra.mxu0 0.0
        %1121 = vmatpush.xpose.msra.mxu0 0.0
        %1122 = vmatpush.xpose.msra.mxu0 %v1112
        %1123 = vmatpush.xpose.msra.mxu0 %v1110
        %1124 = vmatpush.xpose.msra.mxu0 %v1108
        %1125 = vmatpush.xpose.msra.mxu0 %v1106
        %1126 = vmatpush.xpose.msra.mxu0 %v1104
        %1127 = vmatpush.xpose.msra.mxu0 %v1102
        %1128 = vmatpush.xpose.msra.mxu0 %v1100
        %1129 = vmatpush.xpose.msra.mxu0 %v1098
        %1130 = vmatmul.f32.gmra.mxu0 %v1082
        %v1131 = vpop.f32.mrf.mxu0
        %v1132 = vadd.f32 0.0, %v1131
        %1133 = vmatmul.f32.gmra.mxu0 %v1084
        %v1134 = vpop.f32.mrf.mxu0
        %v1135 = vadd.f32 0.0, %v1134
        %1136 = vmatmul.f32.gmra.mxu0 %v1086
        %v1137 = vpop.f32.mrf.mxu0
        %v1138 = vadd.f32 0.0, %v1137
        %1139 = vmatmul.f32.gmra.mxu0 %v1088
        %v1140 = vpop.f32.mrf.mxu0
        %v1141 = vadd.f32 0.0, %v1140
        %1142 = vmatmul.f32.gmra.mxu0 %v1090
        %v1143 = vpop.f32.mrf.mxu0
        %v1144 = vadd.f32 0.0, %v1143
        %1145 = vmatmul.f32.gmra.mxu0 %v1092
        %v1146 = vpop.f32.mrf.mxu0
        %v1147 = vadd.f32 0.0, %v1146
        %1148 = vmatmul.f32.gmra.mxu0 %v1094
        %v1149 = vpop.f32.mrf.mxu0
        %v1150 = vadd.f32 0.0, %v1149
        %1151 = vmatmul.f32.gmra.mxu0 %v1096
        %v1152 = vpop.f32.mrf.mxu0
        %v1153 = vadd.f32 0.0, %v1152
        %1154 = vdwg.mxu0
        %v1155 = vmul.f32 %v1132, 0.17677669
        %v1156 = vmul.f32 %v1135, 0.17677669
        %v1157 = vmul.f32 %v1138, 0.17677669
        %v1158 = vmul.f32 %v1141, 0.17677669
        %v1159 = vmul.f32 %v1144, 0.17677669
        %v1160 = vmul.f32 %v1147, 0.17677669
        %v1161 = vmul.f32 %v1150, 0.17677669
        %v1162 = vmul.f32 %v1153, 0.17677669
        %v1163 = vsel %vm792, %v1155, -inf
        %1164 = vmax.xlane.f32.xlu0 %v1163
        %v1165 = vpop.xlane.xlu0 %1164
        %v1166 = vsel %vm792, %v1156, -inf
        %1167 = vmax.xlane.f32.xlu0 %v1166
        %v1168 = vpop.xlane.xlu0 %1167
        %v1169 = vsel %vm792, %v1157, -inf
        %1170 = vmax.xlane.f32.xlu0 %v1169
        %v1171 = vpop.xlane.xlu0 %1170
        %v1172 = vsel %vm792, %v1158, -inf
        %1173 = vmax.xlane.f32.xlu0 %v1172
        %v1174 = vpop.xlane.xlu0 %1173
        %v1175 = vsel %vm792, %v1159, -inf
        %1176 = vmax.xlane.f32.xlu0 %v1175
        %v1177 = vpop.xlane.xlu0 %1176
        %v1178 = vsel %vm792, %v1160, -inf
        %1179 = vmax.xlane.f32.xlu0 %v1178
        %v1180 = vpop.xlane.xlu0 %1179
        %v1181 = vsel %vm792, %v1161, -inf
        %1182 = vmax.xlane.f32.xlu0 %v1181
        %v1183 = vpop.xlane.xlu0 %1182
        %v1184 = vsel %vm792, %v1162, -inf
        %1185 = vmax.xlane.f32.xlu0 %v1184
        %v1186 = vpop.xlane.xlu0 %1185
        %v1187 = vsub.f32 %v1155, %v1165
        %v1188 = vsub.f32 %v1156, %v1168
        %v1189 = vsub.f32 %v1157, %v1171
        %v1190 = vsub.f32 %v1158, %v1174
        %v1191 = vsub.f32 %v1159, %v1177
        %v1192 = vsub.f32 %v1160, %v1180
        %v1193 = vsub.f32 %v1161, %v1183
        %v1194 = vsub.f32 %v1162, %v1186
        %v1195 = vmul.f32 %v1187, 1.442695
        %v1196 = vpow.pop %v1195
        %v1197 = vmul.f32 %v1188, 1.442695
        %v1198 = vpow.pop %v1197
        %v1199 = vmul.f32 %v1189, 1.442695
        %v1200 = vpow.pop %v1199
        %v1201 = vmul.f32 %v1190, 1.442695
        %v1202 = vpow.pop %v1201
        %v1203 = vmul.f32 %v1191, 1.442695
        %v1204 = vpow.pop %v1203
        %v1205 = vmul.f32 %v1192, 1.442695
        %v1206 = vpow.pop %v1205
        %v1207 = vmul.f32 %v1193, 1.442695
        %v1208 = vpow.pop %v1207
        %v1209 = vmul.f32 %v1194, 1.442695
        %v1210 = vpow.pop %v1209
        %v1211 = vsel %vm792, %v1196, 0.0
        %1212 = vadd.xlane.f32.xlu0 %v1211
        %v1213 = vpop.xlane.xlu0 %1212
        %v1214 = vsel %vm792, %v1198, 0.0
        %1215 = vadd.xlane.f32.xlu0 %v1214
        %v1216 = vpop.xlane.xlu0 %1215
        %v1217 = vsel %vm792, %v1200, 0.0
        %1218 = vadd.xlane.f32.xlu0 %v1217
        %v1219 = vpop.xlane.xlu0 %1218
        %v1220 = vsel %vm792, %v1202, 0.0
        %1221 = vadd.xlane.f32.xlu0 %v1220
        %v1222 = vpop.xlane.xlu0 %1221
        %v1223 = vsel %vm792, %v1204, 0.0
        %1224 = vadd.xlane.f32.xlu0 %v1223
        %v1225 = vpop.xlane.xlu0 %1224
        %v1226 = vsel %vm792, %v1206, 0.0
        %1227 = vadd.xlane.f32.xlu0 %v1226
        %v1228 = vpop.xlane.xlu0 %1227
        %v1229 = vsel %vm792, %v1208, 0.0
        %1230 = vadd.xlane.f32.xlu0 %v1229
        %v1231 = vpop.xlane.xlu0 %1230
        %v1232 = vsel %vm792, %v1210, 0.0
        %1233 = vadd.xlane.f32.xlu0 %v1232
        %v1234 = vpop.xlane.xlu0 %1233
        %v1235 = vrcp.pop %v1213
        %v1236 = vmul.f32 %v1213, %v1235
        %v1237 = vsub.f32 1.0, %v1236
        %v1238 = vmul.f32 %v1235, %v1237
        %v1239 = vadd.f32 %v1235, %v1238
        %vm1240 = vweird.f32 %v1213
        %vm1241 = vweird.f32 %v1235
        %vm1242 = vmor %vm1240, %vm1241
        %v1243 = vsel %vm1242, %v1235, %v1239
        %v1244 = vand.u32 2147483647, %v1213
        %vm1245 = vcmp.eq.f32.partialorder %v1244, 8.507059e+37
        %v1246 = vand.u32 %v1213, 2147483648
        %v1247 = vor.u32 1.1754944e-38, %v1246
        %v1248 = vsel %vm1245, %v1247, %v1243
        %v1249 = vmul.f32 %v1196, %v1248
        %v1250 = vrcp.pop %v1216
        %v1251 = vmul.f32 %v1216, %v1250
        %v1252 = vsub.f32 1.0, %v1251
        %v1253 = vmul.f32 %v1250, %v1252
        %v1254 = vadd.f32 %v1250, %v1253
        %vm1255 = vweird.f32 %v1216
        %vm1256 = vweird.f32 %v1250
        %vm1257 = vmor %vm1255, %vm1256
        %v1258 = vsel %vm1257, %v1250, %v1254
        %v1259 = vand.u32 2147483647, %v1216
        %vm1260 = vcmp.eq.f32.partialorder %v1259, 8.507059e+37
        %v1261 = vand.u32 %v1216, 2147483648
        %v1262 = vor.u32 1.1754944e-38, %v1261
        %v1263 = vsel %vm1260, %v1262, %v1258
        %v1264 = vmul.f32 %v1198, %v1263
        %v1265 = vrcp.pop %v1219
        %v1266 = vmul.f32 %v1219, %v1265
        %v1267 = vsub.f32 1.0, %v1266
        %v1268 = vmul.f32 %v1265, %v1267
        %v1269 = vadd.f32 %v1265, %v1268
        %vm1270 = vweird.f32 %v1219
        %vm1271 = vweird.f32 %v1265
        %vm1272 = vmor %vm1270, %vm1271
        %v1273 = vsel %vm1272, %v1265, %v1269
        %v1274 = vand.u32 2147483647, %v1219
        %vm1275 = vcmp.eq.f32.partialorder %v1274, 8.507059e+37
        %v1276 = vand.u32 %v1219, 2147483648
        %v1277 = vor.u32 1.1754944e-38, %v1276
        %v1278 = vsel %vm1275, %v1277, %v1273
        %v1279 = vmul.f32 %v1200, %v1278
        %v1280 = vrcp.pop %v1222
        %v1281 = vmul.f32 %v1222, %v1280
        %v1282 = vsub.f32 1.0, %v1281
        %v1283 = vmul.f32 %v1280, %v1282
        %v1284 = vadd.f32 %v1280, %v1283
        %vm1285 = vweird.f32 %v1222
        %vm1286 = vweird.f32 %v1280
        %vm1287 = vmor %vm1285, %vm1286
        %v1288 = vsel %vm1287, %v1280, %v1284
        %v1289 = vand.u32 2147483647, %v1222
        %vm1290 = vcmp.eq.f32.partialorder %v1289, 8.507059e+37
        %v1291 = vand.u32 %v1222, 2147483648
        %v1292 = vor.u32 1.1754944e-38, %v1291
        %v1293 = vsel %vm1290, %v1292, %v1288
        %v1294 = vmul.f32 %v1202, %v1293
        %v1295 = vrcp.pop %v1225
        %v1296 = vmul.f32 %v1225, %v1295
        %v1297 = vsub.f32 1.0, %v1296
        %v1298 = vmul.f32 %v1295, %v1297
        %v1299 = vadd.f32 %v1295, %v1298
        %vm1300 = vweird.f32 %v1225
        %vm1301 = vweird.f32 %v1295
        %vm1302 = vmor %vm1300, %vm1301
        %v1303 = vsel %vm1302, %v1295, %v1299
        %v1304 = vand.u32 2147483647, %v1225
        %vm1305 = vcmp.eq.f32.partialorder %v1304, 8.507059e+37
        %v1306 = vand.u32 %v1225, 2147483648
        %v1307 = vor.u32 1.1754944e-38, %v1306
        %v1308 = vsel %vm1305, %v1307, %v1303
        %v1309 = vmul.f32 %v1204, %v1308
        %v1310 = vrcp.pop %v1228
        %v1311 = vmul.f32 %v1228, %v1310
        %v1312 = vsub.f32 1.0, %v1311
        %v1313 = vmul.f32 %v1310, %v1312
        %v1314 = vadd.f32 %v1310, %v1313
        %vm1315 = vweird.f32 %v1228
        %vm1316 = vweird.f32 %v1310
        %vm1317 = vmor %vm1315, %vm1316
        %v1318 = vsel %vm1317, %v1310, %v1314
        %v1319 = vand.u32 2147483647, %v1228
        %vm1320 = vcmp.eq.f32.partialorder %v1319, 8.507059e+37
        %v1321 = vand.u32 %v1228, 2147483648
        %v1322 = vor.u32 1.1754944e-38, %v1321
        %v1323 = vsel %vm1320, %v1322, %v1318
        %v1324 = vmul.f32 %v1206, %v1323
        %v1325 = vrcp.pop %v1231
        %v1326 = vmul.f32 %v1231, %v1325
        %v1327 = vsub.f32 1.0, %v1326
        %v1328 = vmul.f32 %v1325, %v1327
        %v1329 = vadd.f32 %v1325, %v1328
        %vm1330 = vweird.f32 %v1231
        %vm1331 = vweird.f32 %v1325
        %vm1332 = vmor %vm1330, %vm1331
        %v1333 = vsel %vm1332, %v1325, %v1329
        %v1334 = vand.u32 2147483647, %v1231
        %vm1335 = vcmp.eq.f32.partialorder %v1334, 8.507059e+37
        %v1336 = vand.u32 %v1231, 2147483648
        %v1337 = vor.u32 1.1754944e-38, %v1336
        %v1338 = vsel %vm1335, %v1337, %v1333
        %v1339 = vmul.f32 %v1208, %v1338
        %v1340 = vrcp.pop %v1234
        %v1341 = vmul.f32 %v1234, %v1340
        %v1342 = vsub.f32 1.0, %v1341
        %v1343 = vmul.f32 %v1340, %v1342
        %v1344 = vadd.f32 %v1340, %v1343
        %vm1345 = vweird.f32 %v1234
        %vm1346 = vweird.f32 %v1340
        %vm1347 = vmor %vm1345, %vm1346
        %v1348 = vsel %vm1347, %v1340, %v1344
        %v1349 = vand.u32 2147483647, %v1234
        %vm1350 = vcmp.eq.f32.partialorder %v1349, 8.507059e+37
        %v1351 = vand.u32 %v1234, 2147483648
        %v1352 = vor.u32 1.1754944e-38, %v1351
        %v1353 = vsel %vm1350, %v1352, %v1348
        %v1354 = vmul.f32 %v1210, %v1353
        %1363 = vrot.lane.b32.xlu0 %v671, 96
        %v1364 = vpop.permute.xlu0 %1363
        %1365 = vrot.lane.b32.xlu0 %v674, 96
        %v1366 = vpop.permute.xlu0 %1365
        %1367 = vrot.lane.b32.xlu0 %v677, 96
        %v1368 = vpop.permute.xlu0 %1367
        %1369 = vrot.lane.b32.xlu0 %v680, 96
        %v1370 = vpop.permute.xlu0 %1369
        %1371 = vrot.lane.b32.xlu0 %v683, 96
        %v1372 = vpop.permute.xlu0 %1371
        %1373 = vrot.lane.b32.xlu0 %v686, 96
        %v1374 = vpop.permute.xlu0 %1373
        %1375 = vrot.lane.b32.xlu0 %v689, 96
        %v1376 = vpop.permute.xlu0 %1375
        %1377 = vrot.lane.b32.xlu0 %v692, 96
        %v1378 = vpop.permute.xlu0 %1377
        %v1388 = vsel %vm792, %v1249, 0
        %v1391 = vsel %vm792, %v1264, 0
        %v1394 = vsel %vm792, %v1279, 0
        %v1397 = vsel %vm792, %v1294, 0
        %v1400 = vsel %vm792, %v1309, 0
        %v1403 = vsel %vm792, %v1324, 0
        %v1406 = vsel %vm792, %v1339, 0
        %v1409 = vsel %vm792, %v1354, 0
        %1411 = vmatpush.msra.mxu0 0.0
        %1412 = vmatpush.msra.mxu0 0.0
        %1413 = vmatpush.msra.mxu0 0.0
        %1414 = vmatpush.msra.mxu0 0.0
        %1415 = vmatpush.msra.mxu0 0.0
        %1416 = vmatpush.msra.mxu0 0.0
        %1417 = vmatpush.msra.mxu0 0.0
        %1418 = vmatpush.msra.mxu0 0.0
        %1419 = vmatpush.msra.mxu0 %v1378
        %1420 = vmatpush.msra.mxu0 %v1376
        %1421 = vmatpush.msra.mxu0 %v1374
        %1422 = vmatpush.msra.mxu0 %v1372
        %1423 = vmatpush.msra.mxu0 %v1370
        %1424 = vmatpush.msra.mxu0 %v1368
        %1425 = vmatpush.msra.mxu0 %v1366
        %1426 = vmatpush.msra.mxu0 %v1364
        %1427 = vmatmul.f32.gmra.mxu0 %v1388
        %v1428 = vpop.f32.mrf.mxu0
        %v1429 = vadd.f32 0.0, %v1428
        %1430 = vmatmul.f32.gmra.mxu0 %v1391
        %v1431 = vpop.f32.mrf.mxu0
        %v1432 = vadd.f32 0.0, %v1431
        %1433 = vmatmul.f32.gmra.mxu0 %v1394
        %v1434 = vpop.f32.mrf.mxu0
        %v1435 = vadd.f32 0.0, %v1434
        %1436 = vmatmul.f32.gmra.mxu0 %v1397
        %v1437 = vpop.f32.mrf.mxu0
        %v1438 = vadd.f32 0.0, %v1437
        %1439 = vmatmul.f32.gmra.mxu0 %v1400
        %v1440 = vpop.f32.mrf.mxu0
        %v1441 = vadd.f32 0.0, %v1440
        %1442 = vmatmul.f32.gmra.mxu0 %v1403
        %v1443 = vpop.f32.mrf.mxu0
        %v1444 = vadd.f32 0.0, %v1443
        %1445 = vmatmul.f32.gmra.mxu0 %v1406
        %v1446 = vpop.f32.mrf.mxu0
        %v1447 = vadd.f32 0.0, %v1446
        %1448 = vmatmul.f32.gmra.mxu0 %v1409
        %v1449 = vpop.f32.mrf.mxu0
        %v1450 = vadd.f32 0.0, %v1449
        %1451 = vdwg.mxu0
        %1452 = vrot.lane.b32.xlu0 %v589, 64
        %v1453 = vpop.permute.xlu0 %1452
        %1454 = vrot.lane.b32.xlu0 %v592, 64
        %v1455 = vpop.permute.xlu0 %1454
        %1456 = vrot.lane.b32.xlu0 %v595, 64
        %v1457 = vpop.permute.xlu0 %1456
        %1458 = vrot.lane.b32.xlu0 %v598, 64
        %v1459 = vpop.permute.xlu0 %1458
        %1460 = vrot.lane.b32.xlu0 %v601, 64
        %v1461 = vpop.permute.xlu0 %1460
        %1462 = vrot.lane.b32.xlu0 %v604, 64
        %v1463 = vpop.permute.xlu0 %1462
        %1464 = vrot.lane.b32.xlu0 %v607, 64
        %v1465 = vpop.permute.xlu0 %1464
        %1466 = vrot.lane.b32.xlu0 %v610, 64
        %v1467 = vpop.permute.xlu0 %1466
        %1468 = vrot.lane.b32.xlu0 %v630, 64
        %v1469 = vpop.permute.xlu0 %1468
        %1470 = vrot.lane.b32.xlu0 %v633, 64
        %v1471 = vpop.permute.xlu0 %1470
        %1472 = vrot.lane.b32.xlu0 %v636, 64
        %v1473 = vpop.permute.xlu0 %1472
        %1474 = vrot.lane.b32.xlu0 %v639, 64
        %v1475 = vpop.permute.xlu0 %1474
        %1476 = vrot.lane.b32.xlu0 %v642, 64
        %v1477 = vpop.permute.xlu0 %1476
        %1478 = vrot.lane.b32.xlu0 %v645, 64
        %v1479 = vpop.permute.xlu0 %1478
        %1480 = vrot.lane.b32.xlu0 %v648, 64
        %v1481 = vpop.permute.xlu0 %1480
        %1482 = vrot.lane.b32.xlu0 %v651, 64
        %v1483 = vpop.permute.xlu0 %1482
        %v1484 = vsel %vm694, %v1453, 0
        %v1486 = vsel %vm694, %v1455, 0
        %v1488 = vsel %vm694, %v1457, 0
        %v1490 = vsel %vm694, %v1459, 0
        %v1492 = vsel %vm694, %v1461, 0
        %v1494 = vsel %vm694, %v1463, 0
        %v1496 = vsel %vm694, %v1465, 0
        %v1498 = vsel %vm694, %v1467, 0
        %v1500 = vsel %vm694, %v1469, 0
        %v1502 = vsel %vm694, %v1471, 0
        %v1504 = vsel %vm694, %v1473, 0
        %v1506 = vsel %vm694, %v1475, 0
        %v1508 = vsel %vm694, %v1477, 0
        %v1510 = vsel %vm694, %v1479, 0
        %v1512 = vsel %vm694, %v1481, 0
        %v1514 = vsel %vm694, %v1483, 0
        %1516 = vmatpush.xpose.msra.mxu0 0.0
        %1517 = vmatpush.xpose.msra.mxu0 0.0
        %1518 = vmatpush.xpose.msra.mxu0 0.0
        %1519 = vmatpush.xpose.msra.mxu0 0.0
        %1520 = vmatpush.xpose.msra.mxu0 0.0
        %1521 = vmatpush.xpose.msra.mxu0 0.0
        %1522 = vmatpush.xpose.msra.mxu0 0.0
        %1523 = vmatpush.xpose.msra.mxu0 0.0
        %1524 = vmatpush.xpose.msra.mxu0 %v1514
        %1525 = vmatpush.xpose.msra.mxu0 %v1512
        %1526 = vmatpush.xpose.msra.mxu0 %v1510
        %1527 = vmatpush.xpose.msra.mxu0 %v1508
        %1528 = vmatpush.xpose.msra.mxu0 %v1506
        %1529 = vmatpush.xpose.msra.mxu0 %v1504
        %1530 = vmatpush.xpose.msra.mxu0 %v1502
        %1531 = vmatpush.xpose.msra.mxu0 %v1500
        %1532 = vmatmul.f32.gmra.mxu0 %v1484
        %v1533 = vpop.f32.mrf.mxu0
        %v1534 = vadd.f32 0.0, %v1533
        %1535 = vmatmul.f32.gmra.mxu0 %v1486
        %v1536 = vpop.f32.mrf.mxu0
        %v1537 = vadd.f32 0.0, %v1536
        %1538 = vmatmul.f32.gmra.mxu0 %v1488
        %v1539 = vpop.f32.mrf.mxu0
        %v1540 = vadd.f32 0.0, %v1539
        %1541 = vmatmul.f32.gmra.mxu0 %v1490
        %v1542 = vpop.f32.mrf.mxu0
        %v1543 = vadd.f32 0.0, %v1542
        %1544 = vmatmul.f32.gmra.mxu0 %v1492
        %v1545 = vpop.f32.mrf.mxu0
        %v1546 = vadd.f32 0.0, %v1545
        %1547 = vmatmul.f32.gmra.mxu0 %v1494
        %v1548 = vpop.f32.mrf.mxu0
        %v1549 = vadd.f32 0.0, %v1548
        %1550 = vmatmul.f32.gmra.mxu0 %v1496
        %v1551 = vpop.f32.mrf.mxu0
        %v1552 = vadd.f32 0.0, %v1551
        %1553 = vmatmul.f32.gmra.mxu0 %v1498
        %v1554 = vpop.f32.mrf.mxu0
        %v1555 = vadd.f32 0.0, %v1554
        %1556 = vdwg.mxu0
        %v1557 = vmul.f32 %v1534, 0.17677669
        %v1558 = vmul.f32 %v1537, 0.17677669
        %v1559 = vmul.f32 %v1540, 0.17677669
        %v1560 = vmul.f32 %v1543, 0.17677669
        %v1561 = vmul.f32 %v1546, 0.17677669
        %v1562 = vmul.f32 %v1549, 0.17677669
        %v1563 = vmul.f32 %v1552, 0.17677669
        %v1564 = vmul.f32 %v1555, 0.17677669
        %v1565 = vsel %vm792, %v1557, -inf
        %1566 = vmax.xlane.f32.xlu0 %v1565
        %v1567 = vpop.xlane.xlu0 %1566
        %v1568 = vsel %vm792, %v1558, -inf
        %1569 = vmax.xlane.f32.xlu0 %v1568
        %v1570 = vpop.xlane.xlu0 %1569
        %v1571 = vsel %vm792, %v1559, -inf
        %1572 = vmax.xlane.f32.xlu0 %v1571
        %v1573 = vpop.xlane.xlu0 %1572
        %v1574 = vsel %vm792, %v1560, -inf
        %1575 = vmax.xlane.f32.xlu0 %v1574
        %v1576 = vpop.xlane.xlu0 %1575
        %v1577 = vsel %vm792, %v1561, -inf
        %1578 = vmax.xlane.f32.xlu0 %v1577
        %v1579 = vpop.xlane.xlu0 %1578
        %v1580 = vsel %vm792, %v1562, -inf
        %1581 = vmax.xlane.f32.xlu0 %v1580
        %v1582 = vpop.xlane.xlu0 %1581
        %v1583 = vsel %vm792, %v1563, -inf
        %1584 = vmax.xlane.f32.xlu0 %v1583
        %v1585 = vpop.xlane.xlu0 %1584
        %v1586 = vsel %vm792, %v1564, -inf
        %1587 = vmax.xlane.f32.xlu0 %v1586
        %v1588 = vpop.xlane.xlu0 %1587
        %v1589 = vsub.f32 %v1557, %v1567
        %v1590 = vsub.f32 %v1558, %v1570
        %v1591 = vsub.f32 %v1559, %v1573
        %v1592 = vsub.f32 %v1560, %v1576
        %v1593 = vsub.f32 %v1561, %v1579
        %v1594 = vsub.f32 %v1562, %v1582
        %v1595 = vsub.f32 %v1563, %v1585
        %v1596 = vsub.f32 %v1564, %v1588
        %v1597 = vmul.f32 %v1589, 1.442695
        %v1598 = vpow.pop %v1597
        %v1599 = vmul.f32 %v1590, 1.442695
        %v1600 = vpow.pop %v1599
        %v1601 = vmul.f32 %v1591, 1.442695
        %v1602 = vpow.pop %v1601
        %v1603 = vmul.f32 %v1592, 1.442695
        %v1604 = vpow.pop %v1603
        %v1605 = vmul.f32 %v1593, 1.442695
        %v1606 = vpow.pop %v1605
        %v1607 = vmul.f32 %v1594, 1.442695
        %v1608 = vpow.pop %v1607
        %v1609 = vmul.f32 %v1595, 1.442695
        %v1610 = vpow.pop %v1609
        %v1611 = vmul.f32 %v1596, 1.442695
        %v1612 = vpow.pop %v1611
        %v1613 = vsel %vm792, %v1598, 0.0
        %1614 = vadd.xlane.f32.xlu0 %v1613
        %v1615 = vpop.xlane.xlu0 %1614
        %v1616 = vsel %vm792, %v1600, 0.0
        %1617 = vadd.xlane.f32.xlu0 %v1616
        %v1618 = vpop.xlane.xlu0 %1617
        %v1619 = vsel %vm792, %v1602, 0.0
        %1620 = vadd.xlane.f32.xlu0 %v1619
        %v1621 = vpop.xlane.xlu0 %1620
        %v1622 = vsel %vm792, %v1604, 0.0
        %1623 = vadd.xlane.f32.xlu0 %v1622
        %v1624 = vpop.xlane.xlu0 %1623
        %v1625 = vsel %vm792, %v1606, 0.0
        %1626 = vadd.xlane.f32.xlu0 %v1625
        %v1627 = vpop.xlane.xlu0 %1626
        %v1628 = vsel %vm792, %v1608, 0.0
        %1629 = vadd.xlane.f32.xlu0 %v1628
        %v1630 = vpop.xlane.xlu0 %1629
        %v1631 = vsel %vm792, %v1610, 0.0
        %1632 = vadd.xlane.f32.xlu0 %v1631
        %v1633 = vpop.xlane.xlu0 %1632
        %v1634 = vsel %vm792, %v1612, 0.0
        %1635 = vadd.xlane.f32.xlu0 %v1634
        %v1636 = vpop.xlane.xlu0 %1635
        %v1637 = vrcp.pop %v1615
        %v1638 = vmul.f32 %v1615, %v1637
        %v1639 = vsub.f32 1.0, %v1638
        %v1640 = vmul.f32 %v1637, %v1639
        %v1641 = vadd.f32 %v1637, %v1640
        %vm1642 = vweird.f32 %v1615
        %vm1643 = vweird.f32 %v1637
        %vm1644 = vmor %vm1642, %vm1643
        %v1645 = vsel %vm1644, %v1637, %v1641
        %v1646 = vand.u32 2147483647, %v1615
        %vm1647 = vcmp.eq.f32.partialorder %v1646, 8.507059e+37
        %v1648 = vand.u32 %v1615, 2147483648
        %v1649 = vor.u32 1.1754944e-38, %v1648
        %v1650 = vsel %vm1647, %v1649, %v1645
        %v1651 = vmul.f32 %v1598, %v1650
        %v1652 = vrcp.pop %v1618
        %v1653 = vmul.f32 %v1618, %v1652
        %v1654 = vsub.f32 1.0, %v1653
        %v1655 = vmul.f32 %v1652, %v1654
        %v1656 = vadd.f32 %v1652, %v1655
        %vm1657 = vweird.f32 %v1618
        %vm1658 = vweird.f32 %v1652
        %vm1659 = vmor %vm1657, %vm1658
        %v1660 = vsel %vm1659, %v1652, %v1656
        %v1661 = vand.u32 2147483647, %v1618
        %vm1662 = vcmp.eq.f32.partialorder %v1661, 8.507059e+37
        %v1663 = vand.u32 %v1618, 2147483648
        %v1664 = vor.u32 1.1754944e-38, %v1663
        %v1665 = vsel %vm1662, %v1664, %v1660
        %v1666 = vmul.f32 %v1600, %v1665
        %v1667 = vrcp.pop %v1621
        %v1668 = vmul.f32 %v1621, %v1667
        %v1669 = vsub.f32 1.0, %v1668
        %v1670 = vmul.f32 %v1667, %v1669
        %v1671 = vadd.f32 %v1667, %v1670
        %vm1672 = vweird.f32 %v1621
        %vm1673 = vweird.f32 %v1667
        %vm1674 = vmor %vm1672, %vm1673
        %v1675 = vsel %vm1674, %v1667, %v1671
        %v1676 = vand.u32 2147483647, %v1621
        %vm1677 = vcmp.eq.f32.partialorder %v1676, 8.507059e+37
        %v1678 = vand.u32 %v1621, 2147483648
        %v1679 = vor.u32 1.1754944e-38, %v1678
        %v1680 = vsel %vm1677, %v1679, %v1675
        %v1681 = vmul.f32 %v1602, %v1680
        %v1682 = vrcp.pop %v1624
        %v1683 = vmul.f32 %v1624, %v1682
        %v1684 = vsub.f32 1.0, %v1683
        %v1685 = vmul.f32 %v1682, %v1684
        %v1686 = vadd.f32 %v1682, %v1685
        %vm1687 = vweird.f32 %v1624
        %vm1688 = vweird.f32 %v1682
        %vm1689 = vmor %vm1687, %vm1688
        %v1690 = vsel %vm1689, %v1682, %v1686
        %v1691 = vand.u32 2147483647, %v1624
        %vm1692 = vcmp.eq.f32.partialorder %v1691, 8.507059e+37
        %v1693 = vand.u32 %v1624, 2147483648
        %v1694 = vor.u32 1.1754944e-38, %v1693
        %v1695 = vsel %vm1692, %v1694, %v1690
        %v1696 = vmul.f32 %v1604, %v1695
        %v1697 = vrcp.pop %v1627
        %v1698 = vmul.f32 %v1627, %v1697
        %v1699 = vsub.f32 1.0, %v1698
        %v1700 = vmul.f32 %v1697, %v1699
        %v1701 = vadd.f32 %v1697, %v1700
        %vm1702 = vweird.f32 %v1627
        %vm1703 = vweird.f32 %v1697
        %vm1704 = vmor %vm1702, %vm1703
        %v1705 = vsel %vm1704, %v1697, %v1701
        %v1706 = vand.u32 2147483647, %v1627
        %vm1707 = vcmp.eq.f32.partialorder %v1706, 8.507059e+37
        %v1708 = vand.u32 %v1627, 2147483648
        %v1709 = vor.u32 1.1754944e-38, %v1708
        %v1710 = vsel %vm1707, %v1709, %v1705
        %v1711 = vmul.f32 %v1606, %v1710
        %v1712 = vrcp.pop %v1630
        %v1713 = vmul.f32 %v1630, %v1712
        %v1714 = vsub.f32 1.0, %v1713
        %v1715 = vmul.f32 %v1712, %v1714
        %v1716 = vadd.f32 %v1712, %v1715
        %vm1717 = vweird.f32 %v1630
        %vm1718 = vweird.f32 %v1712
        %vm1719 = vmor %vm1717, %vm1718
        %v1720 = vsel %vm1719, %v1712, %v1716
        %v1721 = vand.u32 2147483647, %v1630
        %vm1722 = vcmp.eq.f32.partialorder %v1721, 8.507059e+37
        %v1723 = vand.u32 %v1630, 2147483648
        %v1724 = vor.u32 1.1754944e-38, %v1723
        %v1725 = vsel %vm1722, %v1724, %v1720
        %v1726 = vmul.f32 %v1608, %v1725
        %v1727 = vrcp.pop %v1633
        %v1728 = vmul.f32 %v1633, %v1727
        %v1729 = vsub.f32 1.0, %v1728
        %v1730 = vmul.f32 %v1727, %v1729
        %v1731 = vadd.f32 %v1727, %v1730
        %vm1732 = vweird.f32 %v1633
        %vm1733 = vweird.f32 %v1727
        %vm1734 = vmor %vm1732, %vm1733
        %v1735 = vsel %vm1734, %v1727, %v1731
        %v1736 = vand.u32 2147483647, %v1633
        %vm1737 = vcmp.eq.f32.partialorder %v1736, 8.507059e+37
        %v1738 = vand.u32 %v1633, 2147483648
        %v1739 = vor.u32 1.1754944e-38, %v1738
        %v1740 = vsel %vm1737, %v1739, %v1735
        %v1741 = vmul.f32 %v1610, %v1740
        %v1742 = vrcp.pop %v1636
        %v1743 = vmul.f32 %v1636, %v1742
        %v1744 = vsub.f32 1.0, %v1743
        %v1745 = vmul.f32 %v1742, %v1744
        %v1746 = vadd.f32 %v1742, %v1745
        %vm1747 = vweird.f32 %v1636
        %vm1748 = vweird.f32 %v1742
        %vm1749 = vmor %vm1747, %vm1748
        %v1750 = vsel %vm1749, %v1742, %v1746
        %v1751 = vand.u32 2147483647, %v1636
        %vm1752 = vcmp.eq.f32.partialorder %v1751, 8.507059e+37
        %v1753 = vand.u32 %v1636, 2147483648
        %v1754 = vor.u32 1.1754944e-38, %v1753
        %v1755 = vsel %vm1752, %v1754, %v1750
        %v1756 = vmul.f32 %v1612, %v1755
        %1757 = vrot.lane.b32.xlu0 %v671, 64
        %v1758 = vpop.permute.xlu0 %1757
        %1759 = vrot.lane.b32.xlu0 %v674, 64
        %v1760 = vpop.permute.xlu0 %1759
        %1761 = vrot.lane.b32.xlu0 %v677, 64
        %v1762 = vpop.permute.xlu0 %1761
        %1763 = vrot.lane.b32.xlu0 %v680, 64
        %v1764 = vpop.permute.xlu0 %1763
        %1765 = vrot.lane.b32.xlu0 %v683, 64
        %v1766 = vpop.permute.xlu0 %1765
        %1767 = vrot.lane.b32.xlu0 %v686, 64
        %v1768 = vpop.permute.xlu0 %1767
        %1769 = vrot.lane.b32.xlu0 %v689, 64
        %v1770 = vpop.permute.xlu0 %1769
        %1771 = vrot.lane.b32.xlu0 %v692, 64
        %v1772 = vpop.permute.xlu0 %1771
        %v1782 = vsel %vm792, %v1651, 0
        %v1785 = vsel %vm792, %v1666, 0
        %v1788 = vsel %vm792, %v1681, 0
        %v1791 = vsel %vm792, %v1696, 0
        %v1794 = vsel %vm792, %v1711, 0
        %v1797 = vsel %vm792, %v1726, 0
        %v1800 = vsel %vm792, %v1741, 0
        %v1803 = vsel %vm792, %v1756, 0
        %1805 = vmatpush.msra.mxu0 0.0
        %1806 = vmatpush.msra.mxu0 0.0
        %1807 = vmatpush.msra.mxu0 0.0
        %1808 = vmatpush.msra.mxu0 0.0
        %1809 = vmatpush.msra.mxu0 0.0
        %1810 = vmatpush.msra.mxu0 0.0
        %1811 = vmatpush.msra.mxu0 0.0
        %1812 = vmatpush.msra.mxu0 0.0
        %1813 = vmatpush.msra.mxu0 %v1772
        %1814 = vmatpush.msra.mxu0 %v1770
        %1815 = vmatpush.msra.mxu0 %v1768
        %1816 = vmatpush.msra.mxu0 %v1766
        %1817 = vmatpush.msra.mxu0 %v1764
        %1818 = vmatpush.msra.mxu0 %v1762
        %1819 = vmatpush.msra.mxu0 %v1760
        %1820 = vmatpush.msra.mxu0 %v1758
        %1821 = vmatmul.f32.gmra.mxu0 %v1782
        %v1822 = vpop.f32.mrf.mxu0
        %v1823 = vadd.f32 0.0, %v1822
        %1824 = vmatmul.f32.gmra.mxu0 %v1785
        %v1825 = vpop.f32.mrf.mxu0
        %v1826 = vadd.f32 0.0, %v1825
        %1827 = vmatmul.f32.gmra.mxu0 %v1788
        %v1828 = vpop.f32.mrf.mxu0
        %v1829 = vadd.f32 0.0, %v1828
        %1830 = vmatmul.f32.gmra.mxu0 %v1791
        %v1831 = vpop.f32.mrf.mxu0
        %v1832 = vadd.f32 0.0, %v1831
        %1833 = vmatmul.f32.gmra.mxu0 %v1794
        %v1834 = vpop.f32.mrf.mxu0
        %v1835 = vadd.f32 0.0, %v1834
        %1836 = vmatmul.f32.gmra.mxu0 %v1797
        %v1837 = vpop.f32.mrf.mxu0
        %v1838 = vadd.f32 0.0, %v1837
        %1839 = vmatmul.f32.gmra.mxu0 %v1800
        %v1840 = vpop.f32.mrf.mxu0
        %v1841 = vadd.f32 0.0, %v1840
        %1842 = vmatmul.f32.gmra.mxu0 %v1803
        %v1843 = vpop.f32.mrf.mxu0
        %v1844 = vadd.f32 0.0, %v1843
        %1845 = vdwg.mxu0
        %1846 = vrot.lane.b32.xlu0 %v589, 32
        %v1847 = vpop.permute.xlu0 %1846
        %1848 = vrot.lane.b32.xlu0 %v592, 32
        %v1849 = vpop.permute.xlu0 %1848
        %1850 = vrot.lane.b32.xlu0 %v595, 32
        %v1851 = vpop.permute.xlu0 %1850
        %1852 = vrot.lane.b32.xlu0 %v598, 32
        %v1853 = vpop.permute.xlu0 %1852
        %1854 = vrot.lane.b32.xlu0 %v601, 32
        %v1855 = vpop.permute.xlu0 %1854
        %1856 = vrot.lane.b32.xlu0 %v604, 32
        %v1857 = vpop.permute.xlu0 %1856
        %1858 = vrot.lane.b32.xlu0 %v607, 32
        %v1859 = vpop.permute.xlu0 %1858
        %1860 = vrot.lane.b32.xlu0 %v610, 32
        %v1861 = vpop.permute.xlu0 %1860
        %1862 = vrot.lane.b32.xlu0 %v630, 32
        %v1863 = vpop.permute.xlu0 %1862
        %1864 = vrot.lane.b32.xlu0 %v633, 32
        %v1865 = vpop.permute.xlu0 %1864
        %1866 = vrot.lane.b32.xlu0 %v636, 32
        %v1867 = vpop.permute.xlu0 %1866
        %1868 = vrot.lane.b32.xlu0 %v639, 32
        %v1869 = vpop.permute.xlu0 %1868
        %1870 = vrot.lane.b32.xlu0 %v642, 32
        %v1871 = vpop.permute.xlu0 %1870
        %1872 = vrot.lane.b32.xlu0 %v645, 32
        %v1873 = vpop.permute.xlu0 %1872
        %1874 = vrot.lane.b32.xlu0 %v648, 32
        %v1875 = vpop.permute.xlu0 %1874
        %1876 = vrot.lane.b32.xlu0 %v651, 32
        %v1877 = vpop.permute.xlu0 %1876
        %v1878 = vsel %vm694, %v1847, 0
        %v1880 = vsel %vm694, %v1849, 0
        %v1882 = vsel %vm694, %v1851, 0
        %v1884 = vsel %vm694, %v1853, 0
        %v1886 = vsel %vm694, %v1855, 0
        %v1888 = vsel %vm694, %v1857, 0
        %v1890 = vsel %vm694, %v1859, 0
        %v1892 = vsel %vm694, %v1861, 0
        %v1894 = vsel %vm694, %v1863, 0
        %v1896 = vsel %vm694, %v1865, 0
        %v1898 = vsel %vm694, %v1867, 0
        %v1900 = vsel %vm694, %v1869, 0
        %v1902 = vsel %vm694, %v1871, 0
        %v1904 = vsel %vm694, %v1873, 0
        %v1906 = vsel %vm694, %v1875, 0
        %v1908 = vsel %vm694, %v1877, 0
        %1910 = vmatpush.xpose.msra.mxu0 0.0
        %1911 = vmatpush.xpose.msra.mxu0 0.0
        %1912 = vmatpush.xpose.msra.mxu0 0.0
        %1913 = vmatpush.xpose.msra.mxu0 0.0
        %1914 = vmatpush.xpose.msra.mxu0 0.0
        %1915 = vmatpush.xpose.msra.mxu0 0.0
        %1916 = vmatpush.xpose.msra.mxu0 0.0
        %1917 = vmatpush.xpose.msra.mxu0 0.0
        %1918 = vmatpush.xpose.msra.mxu0 %v1908
        %1919 = vmatpush.xpose.msra.mxu0 %v1906
        %1920 = vmatpush.xpose.msra.mxu0 %v1904
        %1921 = vmatpush.xpose.msra.mxu0 %v1902
        %1922 = vmatpush.xpose.msra.mxu0 %v1900
        %1923 = vmatpush.xpose.msra.mxu0 %v1898
        %1924 = vmatpush.xpose.msra.mxu0 %v1896
        %1925 = vmatpush.xpose.msra.mxu0 %v1894
        %1926 = vmatmul.f32.gmra.mxu0 %v1878
        %v1927 = vpop.f32.mrf.mxu0
        %v1928 = vadd.f32 0.0, %v1927
        %1929 = vmatmul.f32.gmra.mxu0 %v1880
        %v1930 = vpop.f32.mrf.mxu0
        %v1931 = vadd.f32 0.0, %v1930
        %1932 = vmatmul.f32.gmra.mxu0 %v1882
        %v1933 = vpop.f32.mrf.mxu0
        %v1934 = vadd.f32 0.0, %v1933
        %1935 = vmatmul.f32.gmra.mxu0 %v1884
        %v1936 = vpop.f32.mrf.mxu0
        %v1937 = vadd.f32 0.0, %v1936
        %1938 = vmatmul.f32.gmra.mxu0 %v1886
        %v1939 = vpop.f32.mrf.mxu0
        %v1940 = vadd.f32 0.0, %v1939
        %1941 = vmatmul.f32.gmra.mxu0 %v1888
        %v1942 = vpop.f32.mrf.mxu0
        %v1943 = vadd.f32 0.0, %v1942
        %1944 = vmatmul.f32.gmra.mxu0 %v1890
        %v1945 = vpop.f32.mrf.mxu0
        %v1946 = vadd.f32 0.0, %v1945
        %1947 = vmatmul.f32.gmra.mxu0 %v1892
        %v1948 = vpop.f32.mrf.mxu0
        %v1949 = vadd.f32 0.0, %v1948
        %1950 = vdwg.mxu0
        %v1951 = vmul.f32 %v1928, 0.17677669
        %v1952 = vmul.f32 %v1931, 0.17677669
        %v1953 = vmul.f32 %v1934, 0.17677669
        %v1954 = vmul.f32 %v1937, 0.17677669
        %v1955 = vmul.f32 %v1940, 0.17677669
        %v1956 = vmul.f32 %v1943, 0.17677669
        %v1957 = vmul.f32 %v1946, 0.17677669
        %v1958 = vmul.f32 %v1949, 0.17677669
        %v1959 = vsel %vm792, %v1951, -inf
        %1960 = vmax.xlane.f32.xlu0 %v1959
        %v1961 = vpop.xlane.xlu0 %1960
        %v1962 = vsel %vm792, %v1952, -inf
        %1963 = vmax.xlane.f32.xlu0 %v1962
        %v1964 = vpop.xlane.xlu0 %1963
        %v1965 = vsel %vm792, %v1953, -inf
        %1966 = vmax.xlane.f32.xlu0 %v1965
        %v1967 = vpop.xlane.xlu0 %1966
        %v1968 = vsel %vm792, %v1954, -inf
        %1969 = vmax.xlane.f32.xlu0 %v1968
        %v1970 = vpop.xlane.xlu0 %1969
        %v1971 = vsel %vm792, %v1955, -inf
        %1972 = vmax.xlane.f32.xlu0 %v1971
        %v1973 = vpop.xlane.xlu0 %1972
        %v1974 = vsel %vm792, %v1956, -inf
        %1975 = vmax.xlane.f32.xlu0 %v1974
        %v1976 = vpop.xlane.xlu0 %1975
        %v1977 = vsel %vm792, %v1957, -inf
        %1978 = vmax.xlane.f32.xlu0 %v1977
        %v1979 = vpop.xlane.xlu0 %1978
        %v1980 = vsel %vm792, %v1958, -inf
        %1981 = vmax.xlane.f32.xlu0 %v1980
        %v1982 = vpop.xlane.xlu0 %1981
        %v1983 = vsub.f32 %v1951, %v1961
        %v1984 = vsub.f32 %v1952, %v1964
        %v1985 = vsub.f32 %v1953, %v1967
        %v1986 = vsub.f32 %v1954, %v1970
        %v1987 = vsub.f32 %v1955, %v1973
        %v1988 = vsub.f32 %v1956, %v1976
        %v1989 = vsub.f32 %v1957, %v1979
        %v1990 = vsub.f32 %v1958, %v1982
        %v1991 = vmul.f32 %v1983, 1.442695
        %v1992 = vpow.pop %v1991
        %v1993 = vmul.f32 %v1984, 1.442695
        %v1994 = vpow.pop %v1993
        %v1995 = vmul.f32 %v1985, 1.442695
        %v1996 = vpow.pop %v1995
        %v1997 = vmul.f32 %v1986, 1.442695
        %v1998 = vpow.pop %v1997
        %v1999 = vmul.f32 %v1987, 1.442695
        %v2000 = vpow.pop %v1999
        %v2001 = vmul.f32 %v1988, 1.442695
        %v2002 = vpow.pop %v2001
        %v2003 = vmul.f32 %v1989, 1.442695
        %v2004 = vpow.pop %v2003
        %v2005 = vmul.f32 %v1990, 1.442695
        %v2006 = vpow.pop %v2005
        %v2007 = vsel %vm792, %v1992, 0.0
        %2008 = vadd.xlane.f32.xlu0 %v2007
        %v2009 = vpop.xlane.xlu0 %2008
        %v2010 = vsel %vm792, %v1994, 0.0
        %2011 = vadd.xlane.f32.xlu0 %v2010
        %v2012 = vpop.xlane.xlu0 %2011
        %v2013 = vsel %vm792, %v1996, 0.0
        %2014 = vadd.xlane.f32.xlu0 %v2013
        %v2015 = vpop.xlane.xlu0 %2014
        %v2016 = vsel %vm792, %v1998, 0.0
        %2017 = vadd.xlane.f32.xlu0 %v2016
        %v2018 = vpop.xlane.xlu0 %2017
        %v2019 = vsel %vm792, %v2000, 0.0
        %2020 = vadd.xlane.f32.xlu0 %v2019
        %v2021 = vpop.xlane.xlu0 %2020
        %v2022 = vsel %vm792, %v2002, 0.0
        %2023 = vadd.xlane.f32.xlu0 %v2022
        %v2024 = vpop.xlane.xlu0 %2023
        %v2025 = vsel %vm792, %v2004, 0.0
        %2026 = vadd.xlane.f32.xlu0 %v2025
        %v2027 = vpop.xlane.xlu0 %2026
        %v2028 = vsel %vm792, %v2006, 0.0
        %2029 = vadd.xlane.f32.xlu0 %v2028
        %v2030 = vpop.xlane.xlu0 %2029
        %v2031 = vrcp.pop %v2009
        %v2032 = vmul.f32 %v2009, %v2031
        %v2033 = vsub.f32 1.0, %v2032
        %v2034 = vmul.f32 %v2031, %v2033
        %v2035 = vadd.f32 %v2031, %v2034
        %vm2036 = vweird.f32 %v2009
        %vm2037 = vweird.f32 %v2031
        %vm2038 = vmor %vm2036, %vm2037
        %v2039 = vsel %vm2038, %v2031, %v2035
        %v2040 = vand.u32 2147483647, %v2009
        %vm2041 = vcmp.eq.f32.partialorder %v2040, 8.507059e+37
        %v2042 = vand.u32 %v2009, 2147483648
        %v2043 = vor.u32 1.1754944e-38, %v2042
        %v2044 = vsel %vm2041, %v2043, %v2039
        %v2045 = vmul.f32 %v1992, %v2044
        %v2046 = vrcp.pop %v2012
        %v2047 = vmul.f32 %v2012, %v2046
        %v2048 = vsub.f32 1.0, %v2047
        %v2049 = vmul.f32 %v2046, %v2048
        %v2050 = vadd.f32 %v2046, %v2049
        %vm2051 = vweird.f32 %v2012
        %vm2052 = vweird.f32 %v2046
        %vm2053 = vmor %vm2051, %vm2052
        %v2054 = vsel %vm2053, %v2046, %v2050
        %v2055 = vand.u32 2147483647, %v2012
        %vm2056 = vcmp.eq.f32.partialorder %v2055, 8.507059e+37
        %v2057 = vand.u32 %v2012, 2147483648
        %v2058 = vor.u32 1.1754944e-38, %v2057
        %v2059 = vsel %vm2056, %v2058, %v2054
        %v2060 = vmul.f32 %v1994, %v2059
        %v2061 = vrcp.pop %v2015
        %v2062 = vmul.f32 %v2015, %v2061
        %v2063 = vsub.f32 1.0, %v2062
        %v2064 = vmul.f32 %v2061, %v2063
        %v2065 = vadd.f32 %v2061, %v2064
        %vm2066 = vweird.f32 %v2015
        %vm2067 = vweird.f32 %v2061
        %vm2068 = vmor %vm2066, %vm2067
        %v2069 = vsel %vm2068, %v2061, %v2065
        %v2070 = vand.u32 2147483647, %v2015
        %vm2071 = vcmp.eq.f32.partialorder %v2070, 8.507059e+37
        %v2072 = vand.u32 %v2015, 2147483648
        %v2073 = vor.u32 1.1754944e-38, %v2072
        %v2074 = vsel %vm2071, %v2073, %v2069
        %v2075 = vmul.f32 %v1996, %v2074
        %v2076 = vrcp.pop %v2018
        %v2077 = vmul.f32 %v2018, %v2076
        %v2078 = vsub.f32 1.0, %v2077
        %v2079 = vmul.f32 %v2076, %v2078
        %v2080 = vadd.f32 %v2076, %v2079
        %vm2081 = vweird.f32 %v2018
        %vm2082 = vweird.f32 %v2076
        %vm2083 = vmor %vm2081, %vm2082
        %v2084 = vsel %vm2083, %v2076, %v2080
        %v2085 = vand.u32 2147483647, %v2018
        %vm2086 = vcmp.eq.f32.partialorder %v2085, 8.507059e+37
        %v2087 = vand.u32 %v2018, 2147483648
        %v2088 = vor.u32 1.1754944e-38, %v2087
        %v2089 = vsel %vm2086, %v2088, %v2084
        %v2090 = vmul.f32 %v1998, %v2089
        %v2091 = vrcp.pop %v2021
        %v2092 = vmul.f32 %v2021, %v2091
        %v2093 = vsub.f32 1.0, %v2092
        %v2094 = vmul.f32 %v2091, %v2093
        %v2095 = vadd.f32 %v2091, %v2094
        %vm2096 = vweird.f32 %v2021
        %vm2097 = vweird.f32 %v2091
        %vm2098 = vmor %vm2096, %vm2097
        %v2099 = vsel %vm2098, %v2091, %v2095
        %v2100 = vand.u32 2147483647, %v2021
        %vm2101 = vcmp.eq.f32.partialorder %v2100, 8.507059e+37
        %v2102 = vand.u32 %v2021, 2147483648
        %v2103 = vor.u32 1.1754944e-38, %v2102
        %v2104 = vsel %vm2101, %v2103, %v2099
        %v2105 = vmul.f32 %v2000, %v2104
        %v2106 = vrcp.pop %v2024
        %v2107 = vmul.f32 %v2024, %v2106
        %v2108 = vsub.f32 1.0, %v2107
        %v2109 = vmul.f32 %v2106, %v2108
        %v2110 = vadd.f32 %v2106, %v2109
        %vm2111 = vweird.f32 %v2024
        %vm2112 = vweird.f32 %v2106
        %vm2113 = vmor %vm2111, %vm2112
        %v2114 = vsel %vm2113, %v2106, %v2110
        %v2115 = vand.u32 2147483647, %v2024
        %vm2116 = vcmp.eq.f32.partialorder %v2115, 8.507059e+37
        %v2117 = vand.u32 %v2024, 2147483648
        %v2118 = vor.u32 1.1754944e-38, %v2117
        %v2119 = vsel %vm2116, %v2118, %v2114
        %v2120 = vmul.f32 %v2002, %v2119
        %v2121 = vrcp.pop %v2027
        %v2122 = vmul.f32 %v2027, %v2121
        %v2123 = vsub.f32 1.0, %v2122
        %v2124 = vmul.f32 %v2121, %v2123
        %v2125 = vadd.f32 %v2121, %v2124
        %vm2126 = vweird.f32 %v2027
        %vm2127 = vweird.f32 %v2121
        %vm2128 = vmor %vm2126, %vm2127
        %v2129 = vsel %vm2128, %v2121, %v2125
        %v2130 = vand.u32 2147483647, %v2027
        %vm2131 = vcmp.eq.f32.partialorder %v2130, 8.507059e+37
        %v2132 = vand.u32 %v2027, 2147483648
        %v2133 = vor.u32 1.1754944e-38, %v2132
        %v2134 = vsel %vm2131, %v2133, %v2129
        %v2135 = vmul.f32 %v2004, %v2134
        %v2136 = vrcp.pop %v2030
        %v2137 = vmul.f32 %v2030, %v2136
        %v2138 = vsub.f32 1.0, %v2137
        %v2139 = vmul.f32 %v2136, %v2138
        %v2140 = vadd.f32 %v2136, %v2139
        %vm2141 = vweird.f32 %v2030
        %vm2142 = vweird.f32 %v2136
        %vm2143 = vmor %vm2141, %vm2142
        %v2144 = vsel %vm2143, %v2136, %v2140
        %v2145 = vand.u32 2147483647, %v2030
        %vm2146 = vcmp.eq.f32.partialorder %v2145, 8.507059e+37
        %v2147 = vand.u32 %v2030, 2147483648
        %v2148 = vor.u32 1.1754944e-38, %v2147
        %v2149 = vsel %vm2146, %v2148, %v2144
        %v2150 = vmul.f32 %v2006, %v2149
        %2151 = vrot.lane.b32.xlu0 %v671, 32
        %v2152 = vpop.permute.xlu0 %2151
        %2153 = vrot.lane.b32.xlu0 %v674, 32
        %v2154 = vpop.permute.xlu0 %2153
        %2155 = vrot.lane.b32.xlu0 %v677, 32
        %v2156 = vpop.permute.xlu0 %2155
        %2157 = vrot.lane.b32.xlu0 %v680, 32
        %v2158 = vpop.permute.xlu0 %2157
        %2159 = vrot.lane.b32.xlu0 %v683, 32
        %v2160 = vpop.permute.xlu0 %2159
        %2161 = vrot.lane.b32.xlu0 %v686, 32
        %v2162 = vpop.permute.xlu0 %2161
        %2163 = vrot.lane.b32.xlu0 %v689, 32
        %v2164 = vpop.permute.xlu0 %2163
        %2165 = vrot.lane.b32.xlu0 %v692, 32
        %v2166 = vpop.permute.xlu0 %2165
        %v2176 = vsel %vm792, %v2045, 0
        %v2179 = vsel %vm792, %v2060, 0
        %v2182 = vsel %vm792, %v2075, 0
        %v2185 = vsel %vm792, %v2090, 0
        %v2188 = vsel %vm792, %v2105, 0
        %v2191 = vsel %vm792, %v2120, 0
        %v2194 = vsel %vm792, %v2135, 0
        %v2197 = vsel %vm792, %v2150, 0
        %2199 = vmatpush.msra.mxu0 0.0
        %2200 = vmatpush.msra.mxu0 0.0
        %2201 = vmatpush.msra.mxu0 0.0
        %2202 = vmatpush.msra.mxu0 0.0
        %2203 = vmatpush.msra.mxu0 0.0
        %2204 = vmatpush.msra.mxu0 0.0
        %2205 = vmatpush.msra.mxu0 0.0
        %2206 = vmatpush.msra.mxu0 0.0
        %2207 = vmatpush.msra.mxu0 %v2166
        %2208 = vmatpush.msra.mxu0 %v2164
        %2209 = vmatpush.msra.mxu0 %v2162
        %2210 = vmatpush.msra.mxu0 %v2160
        %2211 = vmatpush.msra.mxu0 %v2158
        %2212 = vmatpush.msra.mxu0 %v2156
        %2213 = vmatpush.msra.mxu0 %v2154
        %2214 = vmatpush.msra.mxu0 %v2152
        %2215 = vmatmul.f32.gmra.mxu0 %v2176
        %v2216 = vpop.f32.mrf.mxu0
        %v2217 = vadd.f32 0.0, %v2216
        %2218 = vmatmul.f32.gmra.mxu0 %v2179
        %v2219 = vpop.f32.mrf.mxu0
        %v2220 = vadd.f32 0.0, %v2219
        %2221 = vmatmul.f32.gmra.mxu0 %v2182
        %v2222 = vpop.f32.mrf.mxu0
        %v2223 = vadd.f32 0.0, %v2222
        %2224 = vmatmul.f32.gmra.mxu0 %v2185
        %v2225 = vpop.f32.mrf.mxu0
        %v2226 = vadd.f32 0.0, %v2225
        %2227 = vmatmul.f32.gmra.mxu0 %v2188
        %v2228 = vpop.f32.mrf.mxu0
        %v2229 = vadd.f32 0.0, %v2228
        %2230 = vmatmul.f32.gmra.mxu0 %v2191
        %v2231 = vpop.f32.mrf.mxu0
        %v2232 = vadd.f32 0.0, %v2231
        %2233 = vmatmul.f32.gmra.mxu0 %v2194
        %v2234 = vpop.f32.mrf.mxu0
        %v2235 = vadd.f32 0.0, %v2234
        %2236 = vmatmul.f32.gmra.mxu0 %v2197
        %v2237 = vpop.f32.mrf.mxu0
        %v2238 = vadd.f32 0.0, %v2237
        %2239 = vdwg.mxu0
        %2248 = vrot.lane.b32.xlu0 %v1429, 32
        %v2249 = vpop.permute.xlu0 %2248
        %2250 = vrot.lane.b32.xlu0 %v1432, 32
        %v2251 = vpop.permute.xlu0 %2250
        %2252 = vrot.lane.b32.xlu0 %v1435, 32
        %v2253 = vpop.permute.xlu0 %2252
        %2254 = vrot.lane.b32.xlu0 %v1438, 32
        %v2255 = vpop.permute.xlu0 %2254
        %2256 = vrot.lane.b32.xlu0 %v1441, 32
        %v2257 = vpop.permute.xlu0 %2256
        %2258 = vrot.lane.b32.xlu0 %v1444, 32
        %v2259 = vpop.permute.xlu0 %2258
        %2260 = vrot.lane.b32.xlu0 %v1447, 32
        %v2261 = vpop.permute.xlu0 %2260
        %2262 = vrot.lane.b32.xlu0 %v1450, 32
        %v2263 = vpop.permute.xlu0 %2262
        %2280 = vrot.lane.b32.xlu0 %v1823, 64
        %v2281 = vpop.permute.xlu0 %2280
        %2282 = vrot.lane.b32.xlu0 %v1826, 64
        %v2283 = vpop.permute.xlu0 %2282
        %2284 = vrot.lane.b32.xlu0 %v1829, 64
        %v2285 = vpop.permute.xlu0 %2284
        %2286 = vrot.lane.b32.xlu0 %v1832, 64
        %v2287 = vpop.permute.xlu0 %2286
        %2288 = vrot.lane.b32.xlu0 %v1835, 64
        %v2289 = vpop.permute.xlu0 %2288
        %2290 = vrot.lane.b32.xlu0 %v1838, 64
        %v2291 = vpop.permute.xlu0 %2290
        %2292 = vrot.lane.b32.xlu0 %v1841, 64
        %v2293 = vpop.permute.xlu0 %2292
        %2294 = vrot.lane.b32.xlu0 %v1844, 64
        %v2295 = vpop.permute.xlu0 %2294
        %2312 = vrot.lane.b32.xlu0 %v2217, 96
        %v2313 = vpop.permute.xlu0 %2312
        %2314 = vrot.lane.b32.xlu0 %v2220, 96
        %v2315 = vpop.permute.xlu0 %2314
        %2316 = vrot.lane.b32.xlu0 %v2223, 96
        %v2317 = vpop.permute.xlu0 %2316
        %2318 = vrot.lane.b32.xlu0 %v2226, 96
        %v2319 = vpop.permute.xlu0 %2318
        %2320 = vrot.lane.b32.xlu0 %v2229, 96
        %v2321 = vpop.permute.xlu0 %2320
        %2322 = vrot.lane.b32.xlu0 %v2232, 96
        %v2323 = vpop.permute.xlu0 %2322
        %2324 = vrot.lane.b32.xlu0 %v2235, 96
        %v2325 = vpop.permute.xlu0 %2324
        %2326 = vrot.lane.b32.xlu0 %v2238, 96
        %v2327 = vpop.permute.xlu0 %2326
        %v2336 = vsel %vm694, %v1027, %v2249
        %v2337 = vsel %vm694, %v1030, %v2251
        %v2338 = vsel %vm694, %v1033, %v2253
        %v2339 = vsel %vm694, %v1036, %v2255
        %v2340 = vsel %vm694, %v1039, %v2257
        %v2341 = vsel %vm694, %v1042, %v2259
        %v2342 = vsel %vm694, %v1045, %v2261
        %v2343 = vsel %vm694, %v1048, %v2263
        %v2344 = vsel %vm792, %v2336, %v2281
        %v2345 = vsel %vm792, %v2337, %v2283
        %v2346 = vsel %vm792, %v2338, %v2285
        %v2347 = vsel %vm792, %v2339, %v2287
        %v2348 = vsel %vm792, %v2340, %v2289
        %v2349 = vsel %vm792, %v2341, %v2291
        %v2350 = vsel %vm792, %v2342, %v2293
        %v2351 = vsel %vm792, %v2343, %v2295
        %vm2352 = vcmask 785408
        %v2353 = vsel %vm2352, %v2344, %v2313
        %v2354 = vsel %vm2352, %v2345, %v2315
        %v2355 = vsel %vm2352, %v2346, %v2317
        %v2356 = vsel %vm2352, %v2347, %v2319
        %v2357 = vsel %vm2352, %v2348, %v2321
        %v2358 = vsel %vm2352, %v2349, %v2323
        %v2359 = vsel %vm2352, %v2350, %v2325
        %v2360 = vsel %vm2352, %v2351, %v2327
        %v2361 = vld [vmem:[#allocation7] sm:$0xff]
        %v2362 = vld [vmem:[#allocation7 + $0x8] sm:$0xff]
        %v2363 = vld [vmem:[#allocation7 + $0x10] sm:$0xff]
        %v2364 = vld [vmem:[#allocation7 + $0x18] sm:$0xff]
        %v2365 = vld [vmem:[#allocation7 + $0x20] sm:$0xff]
        %v2366 = vld [vmem:[#allocation7 + $0x28] sm:$0xff]
        %v2367 = vld [vmem:[#allocation7 + $0x30] sm:$0xff]
        %v2368 = vld [vmem:[#allocation7 + $0x38] sm:$0xff]
        %v2369 = vld [vmem:[#allocation7 + $0x40] sm:$0xff]
        %v2370 = vld [vmem:[#allocation7 + $0x48] sm:$0xff]
        %v2371 = vld [vmem:[#allocation7 + $0x50] sm:$0xff]
        %v2372 = vld [vmem:[#allocation7 + $0x58] sm:$0xff]
        %v2373 = vld [vmem:[#allocation7 + $0x60] sm:$0xff]
        %v2374 = vld [vmem:[#allocation7 + $0x68] sm:$0xff]
        %v2375 = vld [vmem:[#allocation7 + $0x70] sm:$0xff]
        %v2376 = vld [vmem:[#allocation7 + $0x78] sm:$0xff]
        %v2377 = vld [vmem:[%s3] sm:$0x1]
        %v2379 = vperm.slane %v2377, 0
        %2381 = vmatpush.msra.mxu0 %v2376
        %2382 = vmatpush.msra.mxu0 %v2375
        %2383 = vmatpush.msra.mxu0 %v2374
        %2384 = vmatpush.msra.mxu0 %v2373
        %2385 = vmatpush.msra.mxu0 %v2372
        %2386 = vmatpush.msra.mxu0 %v2371
        %2387 = vmatpush.msra.mxu0 %v2370
        %2388 = vmatpush.msra.mxu0 %v2369
        %2389 = vmatpush.msra.mxu0 %v2368
        %2390 = vmatpush.msra.mxu0 %v2367
        %2391 = vmatpush.msra.mxu0 %v2366
        %2392 = vmatpush.msra.mxu0 %v2365
        %2393 = vmatpush.msra.mxu0 %v2364
        %2394 = vmatpush.msra.mxu0 %v2363
        %2395 = vmatpush.msra.mxu0 %v2362
        %2396 = vmatpush.msra.mxu0 %v2361
        %2397 = vmatmul.f32.gmra.mxu0 %v2353
        %v2398 = vpop.f32.mrf.mxu0
        %v2399 = vadd.f32 %v2379, %v2398
        %2400 = vmatmul.f32.gmra.mxu0 %v2354
        %v2401 = vpop.f32.mrf.mxu0
        %v2402 = vadd.f32 %v2379, %v2401
        %2403 = vmatmul.f32.gmra.mxu0 %v2355
        %v2404 = vpop.f32.mrf.mxu0
        %v2405 = vadd.f32 %v2379, %v2404
        %2406 = vmatmul.f32.gmra.mxu0 %v2356
        %v2407 = vpop.f32.mrf.mxu0
        %v2408 = vadd.f32 %v2379, %v2407
        %2409 = vmatmul.f32.gmra.mxu0 %v2357
        %v2410 = vpop.f32.mrf.mxu0
        %v2411 = vadd.f32 %v2379, %v2410
        %2412 = vmatmul.f32.gmra.mxu0 %v2358
        %v2413 = vpop.f32.mrf.mxu0
        %v2414 = vadd.f32 %v2379, %v2413
        %2415 = vmatmul.f32.gmra.mxu0 %v2359
        %v2416 = vpop.f32.mrf.mxu0
        %v2417 = vadd.f32 %v2379, %v2416
        %2418 = vmatmul.f32.gmra.mxu0 %v2360
        %v2419 = vpop.f32.mrf.mxu0
        %v2420 = vadd.f32 %v2379, %v2419
        %2421 = vdwg.mxu0
        %v2422 = vadd.f32 %v515, %v2399
        %v2423 = vadd.f32 %v516, %v2402
        %v2424 = vadd.f32 %v517, %v2405
        %v2425 = vadd.f32 %v518, %v2408
        %v2426 = vadd.f32 %v519, %v2411
        %v2427 = vadd.f32 %v520, %v2414
        %v2428 = vadd.f32 %v521, %v2417
        %v2429 = vadd.f32 %v522, %v2420
        %v2430 = vld [vmem:[%s4] sm:$0x1]
        %v2431 = vld [vmem:[#allocation8] sm:$0x1]
        %2432 = vadd.xlane.f32.xlu0 %v2422
        %v2433 = vpop.xlane.xlu0 %2432
        %2434 = vadd.xlane.f32.xlu0 %v2423
        %v2435 = vpop.xlane.xlu0 %2434
        %2436 = vadd.xlane.f32.xlu0 %v2424
        %v2437 = vpop.xlane.xlu0 %2436
        %2438 = vadd.xlane.f32.xlu0 %v2425
        %v2439 = vpop.xlane.xlu0 %2438
        %2440 = vadd.xlane.f32.xlu0 %v2426
        %v2441 = vpop.xlane.xlu0 %2440
        %2442 = vadd.xlane.f32.xlu0 %v2427
        %v2443 = vpop.xlane.xlu0 %2442
        %2444 = vadd.xlane.f32.xlu0 %v2428
        %v2445 = vpop.xlane.xlu0 %2444
        %2446 = vadd.xlane.f32.xlu0 %v2429
        %v2447 = vpop.xlane.xlu0 %2446
        %v2448 = vrcp.pop 128.0
        %v2449 = vmul.f32 128.0, %v2448
        %v2450 = vsub.f32 1.0, %v2449
        %v2451 = vmul.f32 %v2448, %v2450
        %v2452 = vadd.f32 %v2448, %v2451
        %vm2453 = vweird.f32 %v2448
        %v2454 = vsel %vm2453, %v2448, %v2452
        %v2455 = vmul.f32 %v2433, %v2454
        %v2456 = vmul.f32 %v2435, %v2454
        %v2457 = vmul.f32 %v2437, %v2454
        %v2458 = vmul.f32 %v2439, %v2454
        %v2459 = vmul.f32 %v2441, %v2454
        %v2460 = vmul.f32 %v2443, %v2454
        %v2461 = vmul.f32 %v2445, %v2454
        %v2462 = vmul.f32 %v2447, %v2454
        %v2463 = vmul.f32 %v2422, %v2422
        %v2464 = vmul.f32 %v2423, %v2423
        %v2465 = vmul.f32 %v2424, %v2424
        %v2466 = vmul.f32 %v2425, %v2425
        %v2467 = vmul.f32 %v2426, %v2426
        %v2468 = vmul.f32 %v2427, %v2427
        %v2469 = vmul.f32 %v2428, %v2428
        %v2470 = vmul.f32 %v2429, %v2429
        %2471 = vadd.xlane.f32.xlu0 %v2463
        %v2472 = vpop.xlane.xlu0 %2471
        %2473 = vadd.xlane.f32.xlu0 %v2464
        %v2474 = vpop.xlane.xlu0 %2473
        %2475 = vadd.xlane.f32.xlu0 %v2465
        %v2476 = vpop.xlane.xlu0 %2475
        %2477 = vadd.xlane.f32.xlu0 %v2466
        %v2478 = vpop.xlane.xlu0 %2477
        %2479 = vadd.xlane.f32.xlu0 %v2467
        %v2480 = vpop.xlane.xlu0 %2479
        %2481 = vadd.xlane.f32.xlu0 %v2468
        %v2482 = vpop.xlane.xlu0 %2481
        %2483 = vadd.xlane.f32.xlu0 %v2469
        %v2484 = vpop.xlane.xlu0 %2483
        %2485 = vadd.xlane.f32.xlu0 %v2470
        %v2486 = vpop.xlane.xlu0 %2485
        %v2487 = vmul.f32 %v2472, %v2454
        %v2488 = vmul.f32 %v2474, %v2454
        %v2489 = vmul.f32 %v2476, %v2454
        %v2490 = vmul.f32 %v2478, %v2454
        %v2491 = vmul.f32 %v2480, %v2454
        %v2492 = vmul.f32 %v2482, %v2454
        %v2493 = vmul.f32 %v2484, %v2454
        %v2494 = vmul.f32 %v2486, %v2454
        %v2495 = vmul.f32 %v2455, %v2455
        %v2496 = vmul.f32 %v2456, %v2456
        %v2497 = vmul.f32 %v2457, %v2457
        %v2498 = vmul.f32 %v2458, %v2458
        %v2499 = vmul.f32 %v2459, %v2459
        %v2500 = vmul.f32 %v2460, %v2460
        %v2501 = vmul.f32 %v2461, %v2461
        %v2502 = vmul.f32 %v2462, %v2462
        %v2503 = vsub.f32 %v2487, %v2495
        %v2504 = vsub.f32 %v2488, %v2496
        %v2505 = vsub.f32 %v2489, %v2497
        %v2506 = vsub.f32 %v2490, %v2498
        %v2507 = vsub.f32 %v2491, %v2499
        %v2508 = vsub.f32 %v2492, %v2500
        %v2509 = vsub.f32 %v2493, %v2501
        %v2510 = vsub.f32 %v2494, %v2502
        %v2511 = vmax.f32 %v2503, 0.0
        %v2512 = vmax.f32 %v2504, 0.0
        %v2513 = vmax.f32 %v2505, 0.0
        %v2514 = vmax.f32 %v2506, 0.0
        %v2515 = vmax.f32 %v2507, 0.0
        %v2516 = vmax.f32 %v2508, 0.0
        %v2517 = vmax.f32 %v2509, 0.0
        %v2518 = vmax.f32 %v2510, 0.0
        %v2519 = vsub.f32 %v2422, %v2455
        %v2520 = vsub.f32 %v2423, %v2456
        %v2521 = vsub.f32 %v2424, %v2457
        %v2522 = vsub.f32 %v2425, %v2458
        %v2523 = vsub.f32 %v2426, %v2459
        %v2524 = vsub.f32 %v2427, %v2460
        %v2525 = vsub.f32 %v2428, %v2461
        %v2526 = vsub.f32 %v2429, %v2462
        %v2527 = vadd.f32 %v2511, 1e-06
        %v2528 = vadd.f32 %v2512, 1e-06
        %v2529 = vadd.f32 %v2513, 1e-06
        %v2530 = vadd.f32 %v2514, 1e-06
        %v2531 = vadd.f32 %v2515, 1e-06
        %v2532 = vadd.f32 %v2516, 1e-06
        %v2533 = vadd.f32 %v2517, 1e-06
        %v2534 = vadd.f32 %v2518, 1e-06
        %v2535 = vrsqrt.pop %v2527
        %v2536 = vmul.f32 %v2535, %v2527
        %v2537 = vmul.f32 %v2536, %v2535
        %v2538 = vmul.f32 0.5, %v2537
        %v2539 = vsub.f32 1.5, %v2538
        %v2540 = vmul.f32 %v2535, %v2539
        %vm2541 = vweird.f32 %v2527
        %vm2542 = vweird.f32 %v2535
        %vm2543 = vmor %vm2541, %vm2542
        %v2544 = vsel %vm2543, %v2535, %v2540
        %v2545 = vrsqrt.pop %v2528
        %v2546 = vmul.f32 %v2545, %v2528
        %v2547 = vmul.f32 %v2546, %v2545
        %v2548 = vmul.f32 0.5, %v2547
        %v2549 = vsub.f32 1.5, %v2548
        %v2550 = vmul.f32 %v2545, %v2549
        %vm2551 = vweird.f32 %v2528
        %vm2552 = vweird.f32 %v2545
        %vm2553 = vmor %vm2551, %vm2552
        %v2554 = vsel %vm2553, %v2545, %v2550
        %v2555 = vrsqrt.pop %v2529
        %v2556 = vmul.f32 %v2555, %v2529
        %v2557 = vmul.f32 %v2556, %v2555
        %v2558 = vmul.f32 0.5, %v2557
        %v2559 = vsub.f32 1.5, %v2558
        %v2560 = vmul.f32 %v2555, %v2559
        %vm2561 = vweird.f32 %v2529
        %vm2562 = vweird.f32 %v2555
        %vm2563 = vmor %vm2561, %vm2562
        %v2564 = vsel %vm2563, %v2555, %v2560
        %v2565 = vrsqrt.pop %v2530
        %v2566 = vmul.f32 %v2565, %v2530
        %v2567 = vmul.f32 %v2566, %v2565
        %v2568 = vmul.f32 0.5, %v2567
        %v2569 = vsub.f32 1.5, %v2568
        %v2570 = vmul.f32 %v2565, %v2569
        %vm2571 = vweird.f32 %v2530
        %vm2572 = vweird.f32 %v2565
        %vm2573 = vmor %vm2571, %vm2572
        %v2574 = vsel %vm2573, %v2565, %v2570
        %v2575 = vrsqrt.pop %v2531
        %v2576 = vmul.f32 %v2575, %v2531
        %v2577 = vmul.f32 %v2576, %v2575
        %v2578 = vmul.f32 0.5, %v2577
        %v2579 = vsub.f32 1.5, %v2578
        %v2580 = vmul.f32 %v2575, %v2579
        %vm2581 = vweird.f32 %v2531
        %vm2582 = vweird.f32 %v2575
        %vm2583 = vmor %vm2581, %vm2582
        %v2584 = vsel %vm2583, %v2575, %v2580
        %v2585 = vrsqrt.pop %v2532
        %v2586 = vmul.f32 %v2585, %v2532
        %v2587 = vmul.f32 %v2586, %v2585
        %v2588 = vmul.f32 0.5, %v2587
        %v2589 = vsub.f32 1.5, %v2588
        %v2590 = vmul.f32 %v2585, %v2589
        %vm2591 = vweird.f32 %v2532
        %vm2592 = vweird.f32 %v2585
        %vm2593 = vmor %vm2591, %vm2592
        %v2594 = vsel %vm2593, %v2585, %v2590
        %v2595 = vrsqrt.pop %v2533
        %v2596 = vmul.f32 %v2595, %v2533
        %v2597 = vmul.f32 %v2596, %v2595
        %v2598 = vmul.f32 0.5, %v2597
        %v2599 = vsub.f32 1.5, %v2598
        %v2600 = vmul.f32 %v2595, %v2599
        %vm2601 = vweird.f32 %v2533
        %vm2602 = vweird.f32 %v2595
        %vm2603 = vmor %vm2601, %vm2602
        %v2604 = vsel %vm2603, %v2595, %v2600
        %v2605 = vrsqrt.pop %v2534
        %v2606 = vmul.f32 %v2605, %v2534
        %v2607 = vmul.f32 %v2606, %v2605
        %v2608 = vmul.f32 0.5, %v2607
        %v2609 = vsub.f32 1.5, %v2608
        %v2610 = vmul.f32 %v2605, %v2609
        %vm2611 = vweird.f32 %v2534
        %vm2612 = vweird.f32 %v2605
        %vm2613 = vmor %vm2611, %vm2612
        %v2614 = vsel %vm2613, %v2605, %v2610
        %v2615 = vmul.f32 %v2519, %v2544
        %v2616 = vmul.f32 %v2520, %v2554
        %v2617 = vmul.f32 %v2521, %v2564
        %v2618 = vmul.f32 %v2522, %v2574
        %v2619 = vmul.f32 %v2523, %v2584
        %v2620 = vmul.f32 %v2524, %v2594
        %v2621 = vmul.f32 %v2525, %v2604
        %v2622 = vmul.f32 %v2526, %v2614
        %v2624 = vperm.slane %v2430, 0
        %v2626 = vmul.f32 %v2615, %v2624
        %v2627 = vmul.f32 %v2616, %v2624
        %v2628 = vmul.f32 %v2617, %v2624
        %v2629 = vmul.f32 %v2618, %v2624
        %v2630 = vmul.f32 %v2619, %v2624
        %v2631 = vmul.f32 %v2620, %v2624
        %v2632 = vmul.f32 %v2621, %v2624
        %v2633 = vmul.f32 %v2622, %v2624
        %v2635 = vperm.slane %v2431, 0
        %v2637 = vadd.f32 %v2626, %v2635
        %v2638 = vadd.f32 %v2627, %v2635
        %v2639 = vadd.f32 %v2628, %v2635
        %v2640 = vadd.f32 %v2629, %v2635
        %v2641 = vadd.f32 %v2630, %v2635
        %v2642 = vadd.f32 %v2631, %v2635
        %v2643 = vadd.f32 %v2632, %v2635
        %v2644 = vadd.f32 %v2633, %v2635
        %v2645 = vld [vmem:[#allocation10] sm:$0xff]
        %v2646 = vld [vmem:[#allocation10 + $0x8] sm:$0xff]
        %v2647 = vld [vmem:[#allocation10 + $0x10] sm:$0xff]
        %v2648 = vld [vmem:[#allocation10 + $0x18] sm:$0xff]
        %v2649 = vld [vmem:[#allocation10 + $0x20] sm:$0xff]
        %v2650 = vld [vmem:[#allocation10 + $0x28] sm:$0xff]
        %v2651 = vld [vmem:[#allocation10 + $0x30] sm:$0xff]
        %v2652 = vld [vmem:[#allocation10 + $0x38] sm:$0xff]
        %v2653 = vld [vmem:[#allocation10 + $0x40] sm:$0xff]
        %v2654 = vld [vmem:[#allocation10 + $0x48] sm:$0xff]
        %v2655 = vld [vmem:[#allocation10 + $0x50] sm:$0xff]
        %v2656 = vld [vmem:[#allocation10 + $0x58] sm:$0xff]
        %v2657 = vld [vmem:[#allocation10 + $0x60] sm:$0xff]
        %v2658 = vld [vmem:[#allocation10 + $0x68] sm:$0xff]
        %v2659 = vld [vmem:[#allocation10 + $0x70] sm:$0xff]
        %v2660 = vld [vmem:[#allocation10 + $0x78] sm:$0xff]
        %v2661 = vld [vmem:[#allocation10 + $0x80] sm:$0xff]
        %v2662 = vld [vmem:[#allocation10 + $0x88] sm:$0xff]
        %v2663 = vld [vmem:[#allocation10 + $0x90] sm:$0xff]
        %v2664 = vld [vmem:[#allocation10 + $0x98] sm:$0xff]
        %v2665 = vld [vmem:[#allocation10 + $0xa0] sm:$0xff]
        %v2666 = vld [vmem:[#allocation10 + $0xa8] sm:$0xff]
        %v2667 = vld [vmem:[#allocation10 + $0xb0] sm:$0xff]
        %v2668 = vld [vmem:[#allocation10 + $0xb8] sm:$0xff]
        %v2669 = vld [vmem:[#allocation10 + $0xc0] sm:$0xff]
        %v2670 = vld [vmem:[#allocation10 + $0xc8] sm:$0xff]
        %v2671 = vld [vmem:[#allocation10 + $0xd0] sm:$0xff]
        %v2672 = vld [vmem:[#allocation10 + $0xd8] sm:$0xff]
        %v2673 = vld [vmem:[#allocation10 + $0xe0] sm:$0xff]
        %v2674 = vld [vmem:[#allocation10 + $0xe8] sm:$0xff]
        %v2675 = vld [vmem:[#allocation10 + $0xf0] sm:$0xff]
        %v2676 = vld [vmem:[#allocation10 + $0xf8] sm:$0xff]
        %v2677 = vld [vmem:[#allocation10 + $0x100] sm:$0xff]
        %v2678 = vld [vmem:[#allocation10 + $0x108] sm:$0xff]
        %v2679 = vld [vmem:[#allocation10 + $0x110] sm:$0xff]
        %v2680 = vld [vmem:[#allocation10 + $0x118] sm:$0xff]
        %v2681 = vld [vmem:[#allocation10 + $0x120] sm:$0xff]
        %v2682 = vld [vmem:[#allocation10 + $0x128] sm:$0xff]
        %v2683 = vld [vmem:[#allocation10 + $0x130] sm:$0xff]
        %v2684 = vld [vmem:[#allocation10 + $0x138] sm:$0xff]
        %v2685 = vld [vmem:[#allocation10 + $0x140] sm:$0xff]
        %v2686 = vld [vmem:[#allocation10 + $0x148] sm:$0xff]
        %v2687 = vld [vmem:[#allocation10 + $0x150] sm:$0xff]
        %v2688 = vld [vmem:[#allocation10 + $0x158] sm:$0xff]
        %v2689 = vld [vmem:[#allocation10 + $0x160] sm:$0xff]
        %v2690 = vld [vmem:[#allocation10 + $0x168] sm:$0xff]
        %v2691 = vld [vmem:[#allocation10 + $0x170] sm:$0xff]
        %v2692 = vld [vmem:[#allocation10 + $0x178] sm:$0xff]
        %v2693 = vld [vmem:[#allocation10 + $0x180] sm:$0xff]
        %v2694 = vld [vmem:[#allocation10 + $0x188] sm:$0xff]
        %v2695 = vld [vmem:[#allocation10 + $0x190] sm:$0xff]
        %v2696 = vld [vmem:[#allocation10 + $0x198] sm:$0xff]
        %v2697 = vld [vmem:[#allocation10 + $0x1a0] sm:$0xff]
        %v2698 = vld [vmem:[#allocation10 + $0x1a8] sm:$0xff]
        %v2699 = vld [vmem:[#allocation10 + $0x1b0] sm:$0xff]
        %v2700 = vld [vmem:[#allocation10 + $0x1b8] sm:$0xff]
        %v2701 = vld [vmem:[#allocation10 + $0x1c0] sm:$0xff]
        %v2702 = vld [vmem:[#allocation10 + $0x1c8] sm:$0xff]
        %v2703 = vld [vmem:[#allocation10 + $0x1d0] sm:$0xff]
        %v2704 = vld [vmem:[#allocation10 + $0x1d8] sm:$0xff]
        %v2705 = vld [vmem:[#allocation10 + $0x1e0] sm:$0xff]
        %v2706 = vld [vmem:[#allocation10 + $0x1e8] sm:$0xff]
        %v2707 = vld [vmem:[#allocation10 + $0x1f0] sm:$0xff]
        %v2708 = vld [vmem:[#allocation10 + $0x1f8] sm:$0xff]
        %v2709 = vld [vmem:[%s7] sm:$0xf]
        %v2711 = vperm.slane %v2709, 0
        %v2712 = vperm.slane %v2709, 1
        %v2713 = vperm.slane %v2709, 2
        %v2714 = vperm.slane %v2709, 3
        %2719 = vmatpush.msra.mxu0 %v2705
        %2720 = vmatpush.msra.mxu0 %v2701
        %2721 = vmatpush.msra.mxu0 %v2697
        %2722 = vmatpush.msra.mxu0 %v2693
        %2723 = vmatpush.msra.mxu0 %v2689
        %2724 = vmatpush.msra.mxu0 %v2685
        %2725 = vmatpush.msra.mxu0 %v2681
        %2726 = vmatpush.msra.mxu0 %v2677
        %2727 = vmatpush.msra.mxu0 %v2673
        %2728 = vmatpush.msra.mxu0 %v2669
        %2729 = vmatpush.msra.mxu0 %v2665
        %2730 = vmatpush.msra.mxu0 %v2661
        %2731 = vmatpush.msra.mxu0 %v2657
        %2732 = vmatpush.msra.mxu0 %v2653
        %2733 = vmatpush.msra.mxu0 %v2649
        %2734 = vmatpush.msra.mxu0 %v2645
        %2735 = vmatmul.f32.gmra.mxu0 %v2637
        %v2736 = vpop.f32.mrf.mxu0
        %v2737 = vadd.f32 %v2711, %v2736
        %2738 = vmatmul.f32.gmra.mxu0 %v2638
        %v2739 = vpop.f32.mrf.mxu0
        %v2740 = vadd.f32 %v2711, %v2739
        %2741 = vmatmul.f32.gmra.mxu0 %v2639
        %v2742 = vpop.f32.mrf.mxu0
        %v2743 = vadd.f32 %v2711, %v2742
        %2744 = vmatmul.f32.gmra.mxu0 %v2640
        %v2745 = vpop.f32.mrf.mxu0
        %v2746 = vadd.f32 %v2711, %v2745
        %2747 = vmatmul.f32.gmra.mxu0 %v2641
        %v2748 = vpop.f32.mrf.mxu0
        %v2749 = vadd.f32 %v2711, %v2748
        %2750 = vmatmul.f32.gmra.mxu0 %v2642
        %v2751 = vpop.f32.mrf.mxu0
        %v2752 = vadd.f32 %v2711, %v2751
        %2753 = vmatmul.f32.gmra.mxu0 %v2643
        %v2754 = vpop.f32.mrf.mxu0
        %v2755 = vadd.f32 %v2711, %v2754
        %2756 = vmatmul.f32.gmra.mxu0 %v2644
        %v2757 = vpop.f32.mrf.mxu0
        %v2758 = vadd.f32 %v2711, %v2757
        %2759 = vdwg.mxu0
        %2760 = vmatpush.msra.mxu0 %v2706
        %2761 = vmatpush.msra.mxu0 %v2702
        %2762 = vmatpush.msra.mxu0 %v2698
        %2763 = vmatpush.msra.mxu0 %v2694
        %2764 = vmatpush.msra.mxu0 %v2690
        %2765 = vmatpush.msra.mxu0 %v2686
        %2766 = vmatpush.msra.mxu0 %v2682
        %2767 = vmatpush.msra.mxu0 %v2678
        %2768 = vmatpush.msra.mxu0 %v2674
        %2769 = vmatpush.msra.mxu0 %v2670
        %2770 = vmatpush.msra.mxu0 %v2666
        %2771 = vmatpush.msra.mxu0 %v2662
        %2772 = vmatpush.msra.mxu0 %v2658
        %2773 = vmatpush.msra.mxu0 %v2654
        %2774 = vmatpush.msra.mxu0 %v2650
        %2775 = vmatpush.msra.mxu0 %v2646
        %2776 = vmatmul.f32.gmra.mxu0 %v2637
        %v2777 = vpop.f32.mrf.mxu0
        %v2778 = vadd.f32 %v2712, %v2777
        %2779 = vmatmul.f32.gmra.mxu0 %v2638
        %v2780 = vpop.f32.mrf.mxu0
        %v2781 = vadd.f32 %v2712, %v2780
        %2782 = vmatmul.f32.gmra.mxu0 %v2639
        %v2783 = vpop.f32.mrf.mxu0
        %v2784 = vadd.f32 %v2712, %v2783
        %2785 = vmatmul.f32.gmra.mxu0 %v2640
        %v2786 = vpop.f32.mrf.mxu0
        %v2787 = vadd.f32 %v2712, %v2786
        %2788 = vmatmul.f32.gmra.mxu0 %v2641
        %v2789 = vpop.f32.mrf.mxu0
        %v2790 = vadd.f32 %v2712, %v2789
        %2791 = vmatmul.f32.gmra.mxu0 %v2642
        %v2792 = vpop.f32.mrf.mxu0
        %v2793 = vadd.f32 %v2712, %v2792
        %2794 = vmatmul.f32.gmra.mxu0 %v2643
        %v2795 = vpop.f32.mrf.mxu0
        %v2796 = vadd.f32 %v2712, %v2795
        %2797 = vmatmul.f32.gmra.mxu0 %v2644
        %v2798 = vpop.f32.mrf.mxu0
        %v2799 = vadd.f32 %v2712, %v2798
        %2800 = vdwg.mxu0
        %2801 = vmatpush.msra.mxu0 %v2707
        %2802 = vmatpush.msra.mxu0 %v2703
        %2803 = vmatpush.msra.mxu0 %v2699
        %2804 = vmatpush.msra.mxu0 %v2695
        %2805 = vmatpush.msra.mxu0 %v2691
        %2806 = vmatpush.msra.mxu0 %v2687
        %2807 = vmatpush.msra.mxu0 %v2683
        %2808 = vmatpush.msra.mxu0 %v2679
        %2809 = vmatpush.msra.mxu0 %v2675
        %2810 = vmatpush.msra.mxu0 %v2671
        %2811 = vmatpush.msra.mxu0 %v2667
        %2812 = vmatpush.msra.mxu0 %v2663
        %2813 = vmatpush.msra.mxu0 %v2659
        %2814 = vmatpush.msra.mxu0 %v2655
        %2815 = vmatpush.msra.mxu0 %v2651
        %2816 = vmatpush.msra.mxu0 %v2647
        %2817 = vmatmul.f32.gmra.mxu0 %v2637
        %v2818 = vpop.f32.mrf.mxu0
        %v2819 = vadd.f32 %v2713, %v2818
        %2820 = vmatmul.f32.gmra.mxu0 %v2638
        %v2821 = vpop.f32.mrf.mxu0
        %v2822 = vadd.f32 %v2713, %v2821
        %2823 = vmatmul.f32.gmra.mxu0 %v2639
        %v2824 = vpop.f32.mrf.mxu0
        %v2825 = vadd.f32 %v2713, %v2824
        %2826 = vmatmul.f32.gmra.mxu0 %v2640
        %v2827 = vpop.f32.mrf.mxu0
        %v2828 = vadd.f32 %v2713, %v2827
        %2829 = vmatmul.f32.gmra.mxu0 %v2641
        %v2830 = vpop.f32.mrf.mxu0
        %v2831 = vadd.f32 %v2713, %v2830
        %2832 = vmatmul.f32.gmra.mxu0 %v2642
        %v2833 = vpop.f32.mrf.mxu0
        %v2834 = vadd.f32 %v2713, %v2833
        %2835 = vmatmul.f32.gmra.mxu0 %v2643
        %v2836 = vpop.f32.mrf.mxu0
        %v2837 = vadd.f32 %v2713, %v2836
        %2838 = vmatmul.f32.gmra.mxu0 %v2644
        %v2839 = vpop.f32.mrf.mxu0
        %v2840 = vadd.f32 %v2713, %v2839
        %2841 = vdwg.mxu0
        %2842 = vmatpush.msra.mxu0 %v2708
        %2843 = vmatpush.msra.mxu0 %v2704
        %2844 = vmatpush.msra.mxu0 %v2700
        %2845 = vmatpush.msra.mxu0 %v2696
        %2846 = vmatpush.msra.mxu0 %v2692
        %2847 = vmatpush.msra.mxu0 %v2688
        %2848 = vmatpush.msra.mxu0 %v2684
        %2849 = vmatpush.msra.mxu0 %v2680
        %2850 = vmatpush.msra.mxu0 %v2676
        %2851 = vmatpush.msra.mxu0 %v2672
        %2852 = vmatpush.msra.mxu0 %v2668
        %2853 = vmatpush.msra.mxu0 %v2664
        %2854 = vmatpush.msra.mxu0 %v2660
        %2855 = vmatpush.msra.mxu0 %v2656
        %2856 = vmatpush.msra.mxu0 %v2652
        %2857 = vmatpush.msra.mxu0 %v2648
        %2858 = vmatmul.f32.gmra.mxu0 %v2637
        %v2859 = vpop.f32.mrf.mxu0
        %v2860 = vadd.f32 %v2714, %v2859
        %2861 = vmatmul.f32.gmra.mxu0 %v2638
        %v2862 = vpop.f32.mrf.mxu0
        %v2863 = vadd.f32 %v2714, %v2862
        %2864 = vmatmul.f32.gmra.mxu0 %v2639
        %v2865 = vpop.f32.mrf.mxu0
        %v2866 = vadd.f32 %v2714, %v2865
        %2867 = vmatmul.f32.gmra.mxu0 %v2640
        %v2868 = vpop.f32.mrf.mxu0
        %v2869 = vadd.f32 %v2714, %v2868
        %2870 = vmatmul.f32.gmra.mxu0 %v2641
        %v2871 = vpop.f32.mrf.mxu0
        %v2872 = vadd.f32 %v2714, %v2871
        %2873 = vmatmul.f32.gmra.mxu0 %v2642
        %v2874 = vpop.f32.mrf.mxu0
        %v2875 = vadd.f32 %v2714, %v2874
        %2876 = vmatmul.f32.gmra.mxu0 %v2643
        %v2877 = vpop.f32.mrf.mxu0
        %v2878 = vadd.f32 %v2714, %v2877
        %2879 = vmatmul.f32.gmra.mxu0 %v2644
        %v2880 = vpop.f32.mrf.mxu0
        %v2881 = vadd.f32 %v2714, %v2880
        %2882 = vdwg.mxu0
        %v2883 = vmul.f32 %v2737, 0.5
        %v2884 = vmul.f32 %v2778, 0.5
        %v2885 = vmul.f32 %v2819, 0.5
        %v2886 = vmul.f32 %v2860, 0.5
        %v2887 = vmul.f32 %v2740, 0.5
        %v2888 = vmul.f32 %v2781, 0.5
        %v2889 = vmul.f32 %v2822, 0.5
        %v2890 = vmul.f32 %v2863, 0.5
        %v2891 = vmul.f32 %v2743, 0.5
        %v2892 = vmul.f32 %v2784, 0.5
        %v2893 = vmul.f32 %v2825, 0.5
        %v2894 = vmul.f32 %v2866, 0.5
        %v2895 = vmul.f32 %v2746, 0.5
        %v2896 = vmul.f32 %v2787, 0.5
        %v2897 = vmul.f32 %v2828, 0.5
        %v2898 = vmul.f32 %v2869, 0.5
        %v2899 = vmul.f32 %v2749, 0.5
        %v2900 = vmul.f32 %v2790, 0.5
        %v2901 = vmul.f32 %v2831, 0.5
        %v2902 = vmul.f32 %v2872, 0.5
        %v2903 = vmul.f32 %v2752, 0.5
        %v2904 = vmul.f32 %v2793, 0.5
        %v2905 = vmul.f32 %v2834, 0.5
        %v2906 = vmul.f32 %v2875, 0.5
        %v2907 = vmul.f32 %v2755, 0.5
        %v2908 = vmul.f32 %v2796, 0.5
        %v2909 = vmul.f32 %v2837, 0.5
        %v2910 = vmul.f32 %v2878, 0.5
        %v2911 = vmul.f32 %v2758, 0.5
        %v2912 = vmul.f32 %v2799, 0.5
        %v2913 = vmul.f32 %v2840, 0.5
        %v2914 = vmul.f32 %v2881, 0.5
        %v2915 = vmul.f32 %v2737, 0.70710677
        %v2916 = vmul.f32 %v2778, 0.70710677
        %v2917 = vmul.f32 %v2819, 0.70710677
        %v2918 = vmul.f32 %v2860, 0.70710677
        %v2919 = vmul.f32 %v2740, 0.70710677
        %v2920 = vmul.f32 %v2781, 0.70710677
        %v2921 = vmul.f32 %v2822, 0.70710677
        %v2922 = vmul.f32 %v2863, 0.70710677
        %v2923 = vmul.f32 %v2743, 0.70710677
        %v2924 = vmul.f32 %v2784, 0.70710677
        %v2925 = vmul.f32 %v2825, 0.70710677
        %v2926 = vmul.f32 %v2866, 0.70710677
        %v2927 = vmul.f32 %v2746, 0.70710677
        %v2928 = vmul.f32 %v2787, 0.70710677
        %v2929 = vmul.f32 %v2828, 0.70710677
        %v2930 = vmul.f32 %v2869, 0.70710677
        %v2931 = vmul.f32 %v2749, 0.70710677
        %v2932 = vmul.f32 %v2790, 0.70710677
        %v2933 = vmul.f32 %v2831, 0.70710677
        %v2934 = vmul.f32 %v2872, 0.70710677
        %v2935 = vmul.f32 %v2752, 0.70710677
        %v2936 = vmul.f32 %v2793, 0.70710677
        %v2937 = vmul.f32 %v2834, 0.70710677
        %v2938 = vmul.f32 %v2875, 0.70710677
        %v2939 = vmul.f32 %v2755, 0.70710677
        %v2940 = vmul.f32 %v2796, 0.70710677
        %v2941 = vmul.f32 %v2837, 0.70710677
        %v2942 = vmul.f32 %v2878, 0.70710677
        %v2943 = vmul.f32 %v2758, 0.70710677
        %v2944 = vmul.f32 %v2799, 0.70710677
        %v2945 = vmul.f32 %v2840, 0.70710677
        %v2946 = vmul.f32 %v2881, 0.70710677
        %v2947 = vand.u32 2147483647, %v2915
        %v2948 = vand.u32 2147483647, %v2916
        %v2949 = vand.u32 2147483647, %v2917
        %v2950 = vand.u32 2147483647, %v2918
        %v2951 = vand.u32 2147483647, %v2919
        %v2952 = vand.u32 2147483647, %v2920
        %v2953 = vand.u32 2147483647, %v2921
        %v2954 = vand.u32 2147483647, %v2922
        %v2955 = vand.u32 2147483647, %v2923
        %v2956 = vand.u32 2147483647, %v2924
        %v2957 = vand.u32 2147483647, %v2925
        %v2958 = vand.u32 2147483647, %v2926
        %v2959 = vand.u32 2147483647, %v2927
        %v2960 = vand.u32 2147483647, %v2928
        %v2961 = vand.u32 2147483647, %v2929
        %v2962 = vand.u32 2147483647, %v2930
        %v2963 = vand.u32 2147483647, %v2931
        %v2964 = vand.u32 2147483647, %v2932
        %v2965 = vand.u32 2147483647, %v2933
        %v2966 = vand.u32 2147483647, %v2934
        %v2967 = vand.u32 2147483647, %v2935
        %v2968 = vand.u32 2147483647, %v2936
        %v2969 = vand.u32 2147483647, %v2937
        %v2970 = vand.u32 2147483647, %v2938
        %v2971 = vand.u32 2147483647, %v2939
        %v2972 = vand.u32 2147483647, %v2940
        %v2973 = vand.u32 2147483647, %v2941
        %v2974 = vand.u32 2147483647, %v2942
        %v2975 = vand.u32 2147483647, %v2943
        %v2976 = vand.u32 2147483647, %v2944
        %v2977 = vand.u32 2147483647, %v2945
        %v2978 = vand.u32 2147483647, %v2946
        %v2979 = vmul.f32 %v2947, 0.3275911
        %v2980 = vmul.f32 %v2948, 0.3275911
        %v2981 = vmul.f32 %v2949, 0.3275911
        %v2982 = vmul.f32 %v2950, 0.3275911
        %v2983 = vmul.f32 %v2951, 0.3275911
        %v2984 = vmul.f32 %v2952, 0.3275911
        %v2985 = vmul.f32 %v2953, 0.3275911
        %v2986 = vmul.f32 %v2954, 0.3275911
        %v2987 = vmul.f32 %v2955, 0.3275911
        %v2988 = vmul.f32 %v2956, 0.3275911
        %v2989 = vmul.f32 %v2957, 0.3275911
        %v2990 = vmul.f32 %v2958, 0.3275911
        %v2991 = vmul.f32 %v2959, 0.3275911
        %v2992 = vmul.f32 %v2960, 0.3275911
        %v2993 = vmul.f32 %v2961, 0.3275911
        %v2994 = vmul.f32 %v2962, 0.3275911
        %v2995 = vmul.f32 %v2963, 0.3275911
        %v2996 = vmul.f32 %v2964, 0.3275911
        %v2997 = vmul.f32 %v2965, 0.3275911
        %v2998 = vmul.f32 %v2966, 0.3275911
        %v2999 = vmul.f32 %v2967, 0.3275911
        %v3000 = vmul.f32 %v2968, 0.3275911
        %v3001 = vmul.f32 %v2969, 0.3275911
        %v3002 = vmul.f32 %v2970, 0.3275911
        %v3003 = vmul.f32 %v2971, 0.3275911
        %v3004 = vmul.f32 %v2972, 0.3275911
        %v3005 = vmul.f32 %v2973, 0.3275911
        %v3006 = vmul.f32 %v2974, 0.3275911
        %v3007 = vmul.f32 %v2975, 0.3275911
        %v3008 = vmul.f32 %v2976, 0.3275911
        %v3009 = vmul.f32 %v2977, 0.3275911
        %v3010 = vmul.f32 %v2978, 0.3275911
        %v3011 = vadd.f32 %v2979, 1.0
        %v3012 = vadd.f32 %v2980, 1.0
        %v3013 = vadd.f32 %v2981, 1.0
        %v3014 = vadd.f32 %v2982, 1.0
        %v3015 = vadd.f32 %v2983, 1.0
        %v3016 = vadd.f32 %v2984, 1.0
        %v3017 = vadd.f32 %v2985, 1.0
        %v3018 = vadd.f32 %v2986, 1.0
        %v3019 = vadd.f32 %v2987, 1.0
        %v3020 = vadd.f32 %v2988, 1.0
        %v3021 = vadd.f32 %v2989, 1.0
        %v3022 = vadd.f32 %v2990, 1.0
        %v3023 = vadd.f32 %v2991, 1.0
        %v3024 = vadd.f32 %v2992, 1.0
        %v3025 = vadd.f32 %v2993, 1.0
        %v3026 = vadd.f32 %v2994, 1.0
        %v3027 = vadd.f32 %v2995, 1.0
        %v3028 = vadd.f32 %v2996, 1.0
        %v3029 = vadd.f32 %v2997, 1.0
        %v3030 = vadd.f32 %v2998, 1.0
        %v3031 = vadd.f32 %v2999, 1.0
        %v3032 = vadd.f32 %v3000, 1.0
        %v3033 = vadd.f32 %v3001, 1.0
        %v3034 = vadd.f32 %v3002, 1.0
        %v3035 = vadd.f32 %v3003, 1.0
        %v3036 = vadd.f32 %v3004, 1.0
        %v3037 = vadd.f32 %v3005, 1.0
        %v3038 = vadd.f32 %v3006, 1.0
        %v3039 = vadd.f32 %v3007, 1.0
        %v3040 = vadd.f32 %v3008, 1.0
        %v3041 = vadd.f32 %v3009, 1.0
        %v3042 = vadd.f32 %v3010, 1.0
        %v3043 = vrcp.pop %v3011
        %v3044 = vmul.f32 %v3011, %v3043
        %v3045 = vsub.f32 1.0, %v3044
        %v3046 = vmul.f32 %v3043, %v3045
        %v3047 = vadd.f32 %v3043, %v3046
        %vm3048 = vweird.f32 %v3011
        %vm3049 = vweird.f32 %v3043
        %vm3050 = vmor %vm3048, %vm3049
        %v3051 = vsel %vm3050, %v3043, %v3047
        %v3052 = vand.u32 2147483647, %v3011
        %vm3053 = vcmp.eq.f32.partialorder %v3052, 8.507059e+37
        %v3054 = vand.u32 %v3011, 2147483648
        %v3055 = vor.u32 1.1754944e-38, %v3054
        %v3056 = vsel %vm3053, %v3055, %v3051
        %v3057 = vmul.f32 1.0, %v3056
        %v3058 = vrcp.pop %v3012
        %v3059 = vmul.f32 %v3012, %v3058
        %v3060 = vsub.f32 1.0, %v3059
        %v3061 = vmul.f32 %v3058, %v3060
        %v3062 = vadd.f32 %v3058, %v3061
        %vm3063 = vweird.f32 %v3012
        %vm3064 = vweird.f32 %v3058
        %vm3065 = vmor %vm3063, %vm3064
        %v3066 = vsel %vm3065, %v3058, %v3062
        %v3067 = vand.u32 2147483647, %v3012
        %vm3068 = vcmp.eq.f32.partialorder %v3067, 8.507059e+37
        %v3069 = vand.u32 %v3012, 2147483648
        %v3070 = vor.u32 1.1754944e-38, %v3069
        %v3071 = vsel %vm3068, %v3070, %v3066
        %v3072 = vmul.f32 1.0, %v3071
        %v3073 = vrcp.pop %v3013
        %v3074 = vmul.f32 %v3013, %v3073
        %v3075 = vsub.f32 1.0, %v3074
        %v3076 = vmul.f32 %v3073, %v3075
        %v3077 = vadd.f32 %v3073, %v3076
        %vm3078 = vweird.f32 %v3013
        %vm3079 = vweird.f32 %v3073
        %vm3080 = vmor %vm3078, %vm3079
        %v3081 = vsel %vm3080, %v3073, %v3077
        %v3082 = vand.u32 2147483647, %v3013
        %vm3083 = vcmp.eq.f32.partialorder %v3082, 8.507059e+37
        %v3084 = vand.u32 %v3013, 2147483648
        %v3085 = vor.u32 1.1754944e-38, %v3084
        %v3086 = vsel %vm3083, %v3085, %v3081
        %v3087 = vmul.f32 1.0, %v3086
        %v3088 = vrcp.pop %v3014
        %v3089 = vmul.f32 %v3014, %v3088
        %v3090 = vsub.f32 1.0, %v3089
        %v3091 = vmul.f32 %v3088, %v3090
        %v3092 = vadd.f32 %v3088, %v3091
        %vm3093 = vweird.f32 %v3014
        %vm3094 = vweird.f32 %v3088
        %vm3095 = vmor %vm3093, %vm3094
        %v3096 = vsel %vm3095, %v3088, %v3092
        %v3097 = vand.u32 2147483647, %v3014
        %vm3098 = vcmp.eq.f32.partialorder %v3097, 8.507059e+37
        %v3099 = vand.u32 %v3014, 2147483648
        %v3100 = vor.u32 1.1754944e-38, %v3099
        %v3101 = vsel %vm3098, %v3100, %v3096
        %v3102 = vmul.f32 1.0, %v3101
        %v3103 = vrcp.pop %v3015
        %v3104 = vmul.f32 %v3015, %v3103
        %v3105 = vsub.f32 1.0, %v3104
        %v3106 = vmul.f32 %v3103, %v3105
        %v3107 = vadd.f32 %v3103, %v3106
        %vm3108 = vweird.f32 %v3015
        %vm3109 = vweird.f32 %v3103
        %vm3110 = vmor %vm3108, %vm3109
        %v3111 = vsel %vm3110, %v3103, %v3107
        %v3112 = vand.u32 2147483647, %v3015
        %vm3113 = vcmp.eq.f32.partialorder %v3112, 8.507059e+37
        %v3114 = vand.u32 %v3015, 2147483648
        %v3115 = vor.u32 1.1754944e-38, %v3114
        %v3116 = vsel %vm3113, %v3115, %v3111
        %v3117 = vmul.f32 1.0, %v3116
        %v3118 = vrcp.pop %v3016
        %v3119 = vmul.f32 %v3016, %v3118
        %v3120 = vsub.f32 1.0, %v3119
        %v3121 = vmul.f32 %v3118, %v3120
        %v3122 = vadd.f32 %v3118, %v3121
        %vm3123 = vweird.f32 %v3016
        %vm3124 = vweird.f32 %v3118
        %vm3125 = vmor %vm3123, %vm3124
        %v3126 = vsel %vm3125, %v3118, %v3122
        %v3127 = vand.u32 2147483647, %v3016
        %vm3128 = vcmp.eq.f32.partialorder %v3127, 8.507059e+37
        %v3129 = vand.u32 %v3016, 2147483648
        %v3130 = vor.u32 1.1754944e-38, %v3129
        %v3131 = vsel %vm3128, %v3130, %v3126
        %v3132 = vmul.f32 1.0, %v3131
        %v3133 = vrcp.pop %v3017
        %v3134 = vmul.f32 %v3017, %v3133
        %v3135 = vsub.f32 1.0, %v3134
        %v3136 = vmul.f32 %v3133, %v3135
        %v3137 = vadd.f32 %v3133, %v3136
        %vm3138 = vweird.f32 %v3017
        %vm3139 = vweird.f32 %v3133
        %vm3140 = vmor %vm3138, %vm3139
        %v3141 = vsel %vm3140, %v3133, %v3137
        %v3142 = vand.u32 2147483647, %v3017
        %vm3143 = vcmp.eq.f32.partialorder %v3142, 8.507059e+37
        %v3144 = vand.u32 %v3017, 2147483648
        %v3145 = vor.u32 1.1754944e-38, %v3144
        %v3146 = vsel %vm3143, %v3145, %v3141
        %v3147 = vmul.f32 1.0, %v3146
        %v3148 = vrcp.pop %v3018
        %v3149 = vmul.f32 %v3018, %v3148
        %v3150 = vsub.f32 1.0, %v3149
        %v3151 = vmul.f32 %v3148, %v3150
        %v3152 = vadd.f32 %v3148, %v3151
        %vm3153 = vweird.f32 %v3018
        %vm3154 = vweird.f32 %v3148
        %vm3155 = vmor %vm3153, %vm3154
        %v3156 = vsel %vm3155, %v3148, %v3152
        %v3157 = vand.u32 2147483647, %v3018
        %vm3158 = vcmp.eq.f32.partialorder %v3157, 8.507059e+37
        %v3159 = vand.u32 %v3018, 2147483648
        %v3160 = vor.u32 1.1754944e-38, %v3159
        %v3161 = vsel %vm3158, %v3160, %v3156
        %v3162 = vmul.f32 1.0, %v3161
        %v3163 = vrcp.pop %v3019
        %v3164 = vmul.f32 %v3019, %v3163
        %v3165 = vsub.f32 1.0, %v3164
        %v3166 = vmul.f32 %v3163, %v3165
        %v3167 = vadd.f32 %v3163, %v3166
        %vm3168 = vweird.f32 %v3019
        %vm3169 = vweird.f32 %v3163
        %vm3170 = vmor %vm3168, %vm3169
        %v3171 = vsel %vm3170, %v3163, %v3167
        %v3172 = vand.u32 2147483647, %v3019
        %vm3173 = vcmp.eq.f32.partialorder %v3172, 8.507059e+37
        %v3174 = vand.u32 %v3019, 2147483648
        %v3175 = vor.u32 1.1754944e-38, %v3174
        %v3176 = vsel %vm3173, %v3175, %v3171
        %v3177 = vmul.f32 1.0, %v3176
        %v3178 = vrcp.pop %v3020
        %v3179 = vmul.f32 %v3020, %v3178
        %v3180 = vsub.f32 1.0, %v3179
        %v3181 = vmul.f32 %v3178, %v3180
        %v3182 = vadd.f32 %v3178, %v3181
        %vm3183 = vweird.f32 %v3020
        %vm3184 = vweird.f32 %v3178
        %vm3185 = vmor %vm3183, %vm3184
        %v3186 = vsel %vm3185, %v3178, %v3182
        %v3187 = vand.u32 2147483647, %v3020
        %vm3188 = vcmp.eq.f32.partialorder %v3187, 8.507059e+37
        %v3189 = vand.u32 %v3020, 2147483648
        %v3190 = vor.u32 1.1754944e-38, %v3189
        %v3191 = vsel %vm3188, %v3190, %v3186
        %v3192 = vmul.f32 1.0, %v3191
        %v3193 = vrcp.pop %v3021
        %v3194 = vmul.f32 %v3021, %v3193
        %v3195 = vsub.f32 1.0, %v3194
        %v3196 = vmul.f32 %v3193, %v3195
        %v3197 = vadd.f32 %v3193, %v3196
        %vm3198 = vweird.f32 %v3021
        %vm3199 = vweird.f32 %v3193
        %vm3200 = vmor %vm3198, %vm3199
        %v3201 = vsel %vm3200, %v3193, %v3197
        %v3202 = vand.u32 2147483647, %v3021
        %vm3203 = vcmp.eq.f32.partialorder %v3202, 8.507059e+37
        %v3204 = vand.u32 %v3021, 2147483648
        %v3205 = vor.u32 1.1754944e-38, %v3204
        %v3206 = vsel %vm3203, %v3205, %v3201
        %v3207 = vmul.f32 1.0, %v3206
        %v3208 = vrcp.pop %v3022
        %v3209 = vmul.f32 %v3022, %v3208
        %v3210 = vsub.f32 1.0, %v3209
        %v3211 = vmul.f32 %v3208, %v3210
        %v3212 = vadd.f32 %v3208, %v3211
        %vm3213 = vweird.f32 %v3022
        %vm3214 = vweird.f32 %v3208
        %vm3215 = vmor %vm3213, %vm3214
        %v3216 = vsel %vm3215, %v3208, %v3212
        %v3217 = vand.u32 2147483647, %v3022
        %vm3218 = vcmp.eq.f32.partialorder %v3217, 8.507059e+37
        %v3219 = vand.u32 %v3022, 2147483648
        %v3220 = vor.u32 1.1754944e-38, %v3219
        %v3221 = vsel %vm3218, %v3220, %v3216
        %v3222 = vmul.f32 1.0, %v3221
        %v3223 = vrcp.pop %v3023
        %v3224 = vmul.f32 %v3023, %v3223
        %v3225 = vsub.f32 1.0, %v3224
        %v3226 = vmul.f32 %v3223, %v3225
        %v3227 = vadd.f32 %v3223, %v3226
        %vm3228 = vweird.f32 %v3023
        %vm3229 = vweird.f32 %v3223
        %vm3230 = vmor %vm3228, %vm3229
        %v3231 = vsel %vm3230, %v3223, %v3227
        %v3232 = vand.u32 2147483647, %v3023
        %vm3233 = vcmp.eq.f32.partialorder %v3232, 8.507059e+37
        %v3234 = vand.u32 %v3023, 2147483648
        %v3235 = vor.u32 1.1754944e-38, %v3234
        %v3236 = vsel %vm3233, %v3235, %v3231
        %v3237 = vmul.f32 1.0, %v3236
        %v3238 = vrcp.pop %v3024
        %v3239 = vmul.f32 %v3024, %v3238
        %v3240 = vsub.f32 1.0, %v3239
        %v3241 = vmul.f32 %v3238, %v3240
        %v3242 = vadd.f32 %v3238, %v3241
        %vm3243 = vweird.f32 %v3024
        %vm3244 = vweird.f32 %v3238
        %vm3245 = vmor %vm3243, %vm3244
        %v3246 = vsel %vm3245, %v3238, %v3242
        %v3247 = vand.u32 2147483647, %v3024
        %vm3248 = vcmp.eq.f32.partialorder %v3247, 8.507059e+37
        %v3249 = vand.u32 %v3024, 2147483648
        %v3250 = vor.u32 1.1754944e-38, %v3249
        %v3251 = vsel %vm3248, %v3250, %v3246
        %v3252 = vmul.f32 1.0, %v3251
        %v3253 = vrcp.pop %v3025
        %v3254 = vmul.f32 %v3025, %v3253
        %v3255 = vsub.f32 1.0, %v3254
        %v3256 = vmul.f32 %v3253, %v3255
        %v3257 = vadd.f32 %v3253, %v3256
        %vm3258 = vweird.f32 %v3025
        %vm3259 = vweird.f32 %v3253
        %vm3260 = vmor %vm3258, %vm3259
        %v3261 = vsel %vm3260, %v3253, %v3257
        %v3262 = vand.u32 2147483647, %v3025
        %vm3263 = vcmp.eq.f32.partialorder %v3262, 8.507059e+37
        %v3264 = vand.u32 %v3025, 2147483648
        %v3265 = vor.u32 1.1754944e-38, %v3264
        %v3266 = vsel %vm3263, %v3265, %v3261
        %v3267 = vmul.f32 1.0, %v3266
        %v3268 = vrcp.pop %v3026
        %v3269 = vmul.f32 %v3026, %v3268
        %v3270 = vsub.f32 1.0, %v3269
        %v3271 = vmul.f32 %v3268, %v3270
        %v3272 = vadd.f32 %v3268, %v3271
        %vm3273 = vweird.f32 %v3026
        %vm3274 = vweird.f32 %v3268
        %vm3275 = vmor %vm3273, %vm3274
        %v3276 = vsel %vm3275, %v3268, %v3272
        %v3277 = vand.u32 2147483647, %v3026
        %vm3278 = vcmp.eq.f32.partialorder %v3277, 8.507059e+37
        %v3279 = vand.u32 %v3026, 2147483648
        %v3280 = vor.u32 1.1754944e-38, %v3279
        %v3281 = vsel %vm3278, %v3280, %v3276
        %v3282 = vmul.f32 1.0, %v3281
        %v3283 = vrcp.pop %v3027
        %v3284 = vmul.f32 %v3027, %v3283
        %v3285 = vsub.f32 1.0, %v3284
        %v3286 = vmul.f32 %v3283, %v3285
        %v3287 = vadd.f32 %v3283, %v3286
        %vm3288 = vweird.f32 %v3027
        %vm3289 = vweird.f32 %v3283
        %vm3290 = vmor %vm3288, %vm3289
        %v3291 = vsel %vm3290, %v3283, %v3287
        %v3292 = vand.u32 2147483647, %v3027
        %vm3293 = vcmp.eq.f32.partialorder %v3292, 8.507059e+37
        %v3294 = vand.u32 %v3027, 2147483648
        %v3295 = vor.u32 1.1754944e-38, %v3294
        %v3296 = vsel %vm3293, %v3295, %v3291
        %v3297 = vmul.f32 1.0, %v3296
        %v3298 = vrcp.pop %v3028
        %v3299 = vmul.f32 %v3028, %v3298
        %v3300 = vsub.f32 1.0, %v3299
        %v3301 = vmul.f32 %v3298, %v3300
        %v3302 = vadd.f32 %v3298, %v3301
        %vm3303 = vweird.f32 %v3028
        %vm3304 = vweird.f32 %v3298
        %vm3305 = vmor %vm3303, %vm3304
        %v3306 = vsel %vm3305, %v3298, %v3302
        %v3307 = vand.u32 2147483647, %v3028
        %vm3308 = vcmp.eq.f32.partialorder %v3307, 8.507059e+37
        %v3309 = vand.u32 %v3028, 2147483648
        %v3310 = vor.u32 1.1754944e-38, %v3309
        %v3311 = vsel %vm3308, %v3310, %v3306
        %v3312 = vmul.f32 1.0, %v3311
        %v3313 = vrcp.pop %v3029
        %v3314 = vmul.f32 %v3029, %v3313
        %v3315 = vsub.f32 1.0, %v3314
        %v3316 = vmul.f32 %v3313, %v3315
        %v3317 = vadd.f32 %v3313, %v3316
        %vm3318 = vweird.f32 %v3029
        %vm3319 = vweird.f32 %v3313
        %vm3320 = vmor %vm3318, %vm3319
        %v3321 = vsel %vm3320, %v3313, %v3317
        %v3322 = vand.u32 2147483647, %v3029
        %vm3323 = vcmp.eq.f32.partialorder %v3322, 8.507059e+37
        %v3324 = vand.u32 %v3029, 2147483648
        %v3325 = vor.u32 1.1754944e-38, %v3324
        %v3326 = vsel %vm3323, %v3325, %v3321
        %v3327 = vmul.f32 1.0, %v3326
        %v3328 = vrcp.pop %v3030
        %v3329 = vmul.f32 %v3030, %v3328
        %v3330 = vsub.f32 1.0, %v3329
        %v3331 = vmul.f32 %v3328, %v3330
        %v3332 = vadd.f32 %v3328, %v3331
        %vm3333 = vweird.f32 %v3030
        %vm3334 = vweird.f32 %v3328
        %vm3335 = vmor %vm3333, %vm3334
        %v3336 = vsel %vm3335, %v3328, %v3332
        %v3337 = vand.u32 2147483647, %v3030
        %vm3338 = vcmp.eq.f32.partialorder %v3337, 8.507059e+37
        %v3339 = vand.u32 %v3030, 2147483648
        %v3340 = vor.u32 1.1754944e-38, %v3339
        %v3341 = vsel %vm3338, %v3340, %v3336
        %v3342 = vmul.f32 1.0, %v3341
        %v3343 = vrcp.pop %v3031
        %v3344 = vmul.f32 %v3031, %v3343
        %v3345 = vsub.f32 1.0, %v3344
        %v3346 = vmul.f32 %v3343, %v3345
        %v3347 = vadd.f32 %v3343, %v3346
        %vm3348 = vweird.f32 %v3031
        %vm3349 = vweird.f32 %v3343
        %vm3350 = vmor %vm3348, %vm3349
        %v3351 = vsel %vm3350, %v3343, %v3347
        %v3352 = vand.u32 2147483647, %v3031
        %vm3353 = vcmp.eq.f32.partialorder %v3352, 8.507059e+37
        %v3354 = vand.u32 %v3031, 2147483648
        %v3355 = vor.u32 1.1754944e-38, %v3354
        %v3356 = vsel %vm3353, %v3355, %v3351
        %v3357 = vmul.f32 1.0, %v3356
        %v3358 = vrcp.pop %v3032
        %v3359 = vmul.f32 %v3032, %v3358
        %v3360 = vsub.f32 1.0, %v3359
        %v3361 = vmul.f32 %v3358, %v3360
        %v3362 = vadd.f32 %v3358, %v3361
        %vm3363 = vweird.f32 %v3032
        %vm3364 = vweird.f32 %v3358
        %vm3365 = vmor %vm3363, %vm3364
        %v3366 = vsel %vm3365, %v3358, %v3362
        %v3367 = vand.u32 2147483647, %v3032
        %vm3368 = vcmp.eq.f32.partialorder %v3367, 8.507059e+37
        %v3369 = vand.u32 %v3032, 2147483648
        %v3370 = vor.u32 1.1754944e-38, %v3369
        %v3371 = vsel %vm3368, %v3370, %v3366
        %v3372 = vmul.f32 1.0, %v3371
        %v3373 = vrcp.pop %v3033
        %v3374 = vmul.f32 %v3033, %v3373
        %v3375 = vsub.f32 1.0, %v3374
        %v3376 = vmul.f32 %v3373, %v3375
        %v3377 = vadd.f32 %v3373, %v3376
        %vm3378 = vweird.f32 %v3033
        %vm3379 = vweird.f32 %v3373
        %vm3380 = vmor %vm3378, %vm3379
        %v3381 = vsel %vm3380, %v3373, %v3377
        %v3382 = vand.u32 2147483647, %v3033
        %vm3383 = vcmp.eq.f32.partialorder %v3382, 8.507059e+37
        %v3384 = vand.u32 %v3033, 2147483648
        %v3385 = vor.u32 1.1754944e-38, %v3384
        %v3386 = vsel %vm3383, %v3385, %v3381
        %v3387 = vmul.f32 1.0, %v3386
        %v3388 = vrcp.pop %v3034
        %v3389 = vmul.f32 %v3034, %v3388
        %v3390 = vsub.f32 1.0, %v3389
        %v3391 = vmul.f32 %v3388, %v3390
        %v3392 = vadd.f32 %v3388, %v3391
        %vm3393 = vweird.f32 %v3034
        %vm3394 = vweird.f32 %v3388
        %vm3395 = vmor %vm3393, %vm3394
        %v3396 = vsel %vm3395, %v3388, %v3392
        %v3397 = vand.u32 2147483647, %v3034
        %vm3398 = vcmp.eq.f32.partialorder %v3397, 8.507059e+37
        %v3399 = vand.u32 %v3034, 2147483648
        %v3400 = vor.u32 1.1754944e-38, %v3399
        %v3401 = vsel %vm3398, %v3400, %v3396
        %v3402 = vmul.f32 1.0, %v3401
        %v3403 = vrcp.pop %v3035
        %v3404 = vmul.f32 %v3035, %v3403
        %v3405 = vsub.f32 1.0, %v3404
        %v3406 = vmul.f32 %v3403, %v3405
        %v3407 = vadd.f32 %v3403, %v3406
        %vm3408 = vweird.f32 %v3035
        %vm3409 = vweird.f32 %v3403
        %vm3410 = vmor %vm3408, %vm3409
        %v3411 = vsel %vm3410, %v3403, %v3407
        %v3412 = vand.u32 2147483647, %v3035
        %vm3413 = vcmp.eq.f32.partialorder %v3412, 8.507059e+37
        %v3414 = vand.u32 %v3035, 2147483648
        %v3415 = vor.u32 1.1754944e-38, %v3414
        %v3416 = vsel %vm3413, %v3415, %v3411
        %v3417 = vmul.f32 1.0, %v3416
        %v3418 = vrcp.pop %v3036
        %v3419 = vmul.f32 %v3036, %v3418
        %v3420 = vsub.f32 1.0, %v3419
        %v3421 = vmul.f32 %v3418, %v3420
        %v3422 = vadd.f32 %v3418, %v3421
        %vm3423 = vweird.f32 %v3036
        %vm3424 = vweird.f32 %v3418
        %vm3425 = vmor %vm3423, %vm3424
        %v3426 = vsel %vm3425, %v3418, %v3422
        %v3427 = vand.u32 2147483647, %v3036
        %vm3428 = vcmp.eq.f32.partialorder %v3427, 8.507059e+37
        %v3429 = vand.u32 %v3036, 2147483648
        %v3430 = vor.u32 1.1754944e-38, %v3429
        %v3431 = vsel %vm3428, %v3430, %v3426
        %v3432 = vmul.f32 1.0, %v3431
        %v3433 = vrcp.pop %v3037
        %v3434 = vmul.f32 %v3037, %v3433
        %v3435 = vsub.f32 1.0, %v3434
        %v3436 = vmul.f32 %v3433, %v3435
        %v3437 = vadd.f32 %v3433, %v3436
        %vm3438 = vweird.f32 %v3037
        %vm3439 = vweird.f32 %v3433
        %vm3440 = vmor %vm3438, %vm3439
        %v3441 = vsel %vm3440, %v3433, %v3437
        %v3442 = vand.u32 2147483647, %v3037
        %vm3443 = vcmp.eq.f32.partialorder %v3442, 8.507059e+37
        %v3444 = vand.u32 %v3037, 2147483648
        %v3445 = vor.u32 1.1754944e-38, %v3444
        %v3446 = vsel %vm3443, %v3445, %v3441
        %v3447 = vmul.f32 1.0, %v3446
        %v3448 = vrcp.pop %v3038
        %v3449 = vmul.f32 %v3038, %v3448
        %v3450 = vsub.f32 1.0, %v3449
        %v3451 = vmul.f32 %v3448, %v3450
        %v3452 = vadd.f32 %v3448, %v3451
        %vm3453 = vweird.f32 %v3038
        %vm3454 = vweird.f32 %v3448
        %vm3455 = vmor %vm3453, %vm3454
        %v3456 = vsel %vm3455, %v3448, %v3452
        %v3457 = vand.u32 2147483647, %v3038
        %vm3458 = vcmp.eq.f32.partialorder %v3457, 8.507059e+37
        %v3459 = vand.u32 %v3038, 2147483648
        %v3460 = vor.u32 1.1754944e-38, %v3459
        %v3461 = vsel %vm3458, %v3460, %v3456
        %v3462 = vmul.f32 1.0, %v3461
        %v3463 = vrcp.pop %v3039
        %v3464 = vmul.f32 %v3039, %v3463
        %v3465 = vsub.f32 1.0, %v3464
        %v3466 = vmul.f32 %v3463, %v3465
        %v3467 = vadd.f32 %v3463, %v3466
        %vm3468 = vweird.f32 %v3039
        %vm3469 = vweird.f32 %v3463
        %vm3470 = vmor %vm3468, %vm3469
        %v3471 = vsel %vm3470, %v3463, %v3467
        %v3472 = vand.u32 2147483647, %v3039
        %vm3473 = vcmp.eq.f32.partialorder %v3472, 8.507059e+37
        %v3474 = vand.u32 %v3039, 2147483648
        %v3475 = vor.u32 1.1754944e-38, %v3474
        %v3476 = vsel %vm3473, %v3475, %v3471
        %v3477 = vmul.f32 1.0, %v3476
        %v3478 = vrcp.pop %v3040
        %v3479 = vmul.f32 %v3040, %v3478
        %v3480 = vsub.f32 1.0, %v3479
        %v3481 = vmul.f32 %v3478, %v3480
        %v3482 = vadd.f32 %v3478, %v3481
        %vm3483 = vweird.f32 %v3040
        %vm3484 = vweird.f32 %v3478
        %vm3485 = vmor %vm3483, %vm3484
        %v3486 = vsel %vm3485, %v3478, %v3482
        %v3487 = vand.u32 2147483647, %v3040
        %vm3488 = vcmp.eq.f32.partialorder %v3487, 8.507059e+37
        %v3489 = vand.u32 %v3040, 2147483648
        %v3490 = vor.u32 1.1754944e-38, %v3489
        %v3491 = vsel %vm3488, %v3490, %v3486
        %v3492 = vmul.f32 1.0, %v3491
        %v3493 = vrcp.pop %v3041
        %v3494 = vmul.f32 %v3041, %v3493
        %v3495 = vsub.f32 1.0, %v3494
        %v3496 = vmul.f32 %v3493, %v3495
        %v3497 = vadd.f32 %v3493, %v3496
        %vm3498 = vweird.f32 %v3041
        %vm3499 = vweird.f32 %v3493
        %vm3500 = vmor %vm3498, %vm3499
        %v3501 = vsel %vm3500, %v3493, %v3497
        %v3502 = vand.u32 2147483647, %v3041
        %vm3503 = vcmp.eq.f32.partialorder %v3502, 8.507059e+37
        %v3504 = vand.u32 %v3041, 2147483648
        %v3505 = vor.u32 1.1754944e-38, %v3504
        %v3506 = vsel %vm3503, %v3505, %v3501
        %v3507 = vmul.f32 1.0, %v3506
        %v3508 = vrcp.pop %v3042
        %v3509 = vmul.f32 %v3042, %v3508
        %v3510 = vsub.f32 1.0, %v3509
        %v3511 = vmul.f32 %v3508, %v3510
        %v3512 = vadd.f32 %v3508, %v3511
        %vm3513 = vweird.f32 %v3042
        %vm3514 = vweird.f32 %v3508
        %vm3515 = vmor %vm3513, %vm3514
        %v3516 = vsel %vm3515, %v3508, %v3512
        %v3517 = vand.u32 2147483647, %v3042
        %vm3518 = vcmp.eq.f32.partialorder %v3517, 8.507059e+37
        %v3519 = vand.u32 %v3042, 2147483648
        %v3520 = vor.u32 1.1754944e-38, %v3519
        %v3521 = vsel %vm3518, %v3520, %v3516
        %v3522 = vmul.f32 1.0, %v3521
        %v3523 = vmul.f32 %v3057, 1.0614054
        %v3524 = vmul.f32 %v3072, 1.0614054
        %v3525 = vmul.f32 %v3087, 1.0614054
        %v3526 = vmul.f32 %v3102, 1.0614054
        %v3527 = vmul.f32 %v3117, 1.0614054
        %v3528 = vmul.f32 %v3132, 1.0614054
        %v3529 = vmul.f32 %v3147, 1.0614054
        %v3530 = vmul.f32 %v3162, 1.0614054
        %v3531 = vmul.f32 %v3177, 1.0614054
        %v3532 = vmul.f32 %v3192, 1.0614054
        %v3533 = vmul.f32 %v3207, 1.0614054
        %v3534 = vmul.f32 %v3222, 1.0614054
        %v3535 = vmul.f32 %v3237, 1.0614054
        %v3536 = vmul.f32 %v3252, 1.0614054
        %v3537 = vmul.f32 %v3267, 1.0614054
        %v3538 = vmul.f32 %v3282, 1.0614054
        %v3539 = vmul.f32 %v3297, 1.0614054
        %v3540 = vmul.f32 %v3312, 1.0614054
        %v3541 = vmul.f32 %v3327, 1.0614054
        %v3542 = vmul.f32 %v3342, 1.0614054
        %v3543 = vmul.f32 %v3357, 1.0614054
        %v3544 = vmul.f32 %v3372, 1.0614054
        %v3545 = vmul.f32 %v3387, 1.0614054
        %v3546 = vmul.f32 %v3402, 1.0614054
        %v3547 = vmul.f32 %v3417, 1.0614054
        %v3548 = vmul.f32 %v3432, 1.0614054
        %v3549 = vmul.f32 %v3447, 1.0614054
        %v3550 = vmul.f32 %v3462, 1.0614054
        %v3551 = vmul.f32 %v3477, 1.0614054
        %v3552 = vmul.f32 %v3492, 1.0614054
        %v3553 = vmul.f32 %v3507, 1.0614054
        %v3554 = vmul.f32 %v3522, 1.0614054
        %v3555 = vadd.f32 %v3523, -1.4531521
        %v3556 = vadd.f32 %v3524, -1.4531521
        %v3557 = vadd.f32 %v3525, -1.4531521
        %v3558 = vadd.f32 %v3526, -1.4531521
        %v3559 = vadd.f32 %v3527, -1.4531521
        %v3560 = vadd.f32 %v3528, -1.4531521
        %v3561 = vadd.f32 %v3529, -1.4531521
        %v3562 = vadd.f32 %v3530, -1.4531521
        %v3563 = vadd.f32 %v3531, -1.4531521
        %v3564 = vadd.f32 %v3532, -1.4531521
        %v3565 = vadd.f32 %v3533, -1.4531521
        %v3566 = vadd.f32 %v3534, -1.4531521
        %v3567 = vadd.f32 %v3535, -1.4531521
        %v3568 = vadd.f32 %v3536, -1.4531521
        %v3569 = vadd.f32 %v3537, -1.4531521
        %v3570 = vadd.f32 %v3538, -1.4531521
        %v3571 = vadd.f32 %v3539, -1.4531521
        %v3572 = vadd.f32 %v3540, -1.4531521
        %v3573 = vadd.f32 %v3541, -1.4531521
        %v3574 = vadd.f32 %v3542, -1.4531521
        %v3575 = vadd.f32 %v3543, -1.4531521
        %v3576 = vadd.f32 %v3544, -1.4531521
        %v3577 = vadd.f32 %v3545, -1.4531521
        %v3578 = vadd.f32 %v3546, -1.4531521
        %v3579 = vadd.f32 %v3547, -1.4531521
        %v3580 = vadd.f32 %v3548, -1.4531521
        %v3581 = vadd.f32 %v3549, -1.4531521
        %v3582 = vadd.f32 %v3550, -1.4531521
        %v3583 = vadd.f32 %v3551, -1.4531521
        %v3584 = vadd.f32 %v3552, -1.4531521
        %v3585 = vadd.f32 %v3553, -1.4531521
        %v3586 = vadd.f32 %v3554, -1.4531521
        %v3587 = vmul.f32 %v3555, %v3057
        %v3588 = vmul.f32 %v3556, %v3072
        %v3589 = vmul.f32 %v3557, %v3087
        %v3590 = vmul.f32 %v3558, %v3102
        %v3591 = vmul.f32 %v3559, %v3117
        %v3592 = vmul.f32 %v3560, %v3132
        %v3593 = vmul.f32 %v3561, %v3147
        %v3594 = vmul.f32 %v3562, %v3162
        %v3595 = vmul.f32 %v3563, %v3177
        %v3596 = vmul.f32 %v3564, %v3192
        %v3597 = vmul.f32 %v3565, %v3207
        %v3598 = vmul.f32 %v3566, %v3222
        %v3599 = vmul.f32 %v3567, %v3237
        %v3600 = vmul.f32 %v3568, %v3252
        %v3601 = vmul.f32 %v3569, %v3267
        %v3602 = vmul.f32 %v3570, %v3282
        %v3603 = vmul.f32 %v3571, %v3297
        %v3604 = vmul.f32 %v3572, %v3312
        %v3605 = vmul.f32 %v3573, %v3327
        %v3606 = vmul.f32 %v3574, %v3342
        %v3607 = vmul.f32 %v3575, %v3357
        %v3608 = vmul.f32 %v3576, %v3372
        %v3609 = vmul.f32 %v3577, %v3387
        %v3610 = vmul.f32 %v3578, %v3402
        %v3611 = vmul.f32 %v3579, %v3417
        %v3612 = vmul.f32 %v3580, %v3432
        %v3613 = vmul.f32 %v3581, %v3447
        %v3614 = vmul.f32 %v3582, %v3462
        %v3615 = vmul.f32 %v3583, %v3477
        %v3616 = vmul.f32 %v3584, %v3492
        %v3617 = vmul.f32 %v3585, %v3507
        %v3618 = vmul.f32 %v3586, %v3522
        %v3619 = vadd.f32 %v3587, 1.4214138
        %v3620 = vadd.f32 %v3588, 1.4214138
        %v3621 = vadd.f32 %v3589, 1.4214138
        %v3622 = vadd.f32 %v3590, 1.4214138
        %v3623 = vadd.f32 %v3591, 1.4214138
        %v3624 = vadd.f32 %v3592, 1.4214138
        %v3625 = vadd.f32 %v3593, 1.4214138
        %v3626 = vadd.f32 %v3594, 1.4214138
        %v3627 = vadd.f32 %v3595, 1.4214138
        %v3628 = vadd.f32 %v3596, 1.4214138
        %v3629 = vadd.f32 %v3597, 1.4214138
        %v3630 = vadd.f32 %v3598, 1.4214138
        %v3631 = vadd.f32 %v3599, 1.4214138
        %v3632 = vadd.f32 %v3600, 1.4214138
        %v3633 = vadd.f32 %v3601, 1.4214138
        %v3634 = vadd.f32 %v3602, 1.4214138
        %v3635 = vadd.f32 %v3603, 1.4214138
        %v3636 = vadd.f32 %v3604, 1.4214138
        %v3637 = vadd.f32 %v3605, 1.4214138
        %v3638 = vadd.f32 %v3606, 1.4214138
        %v3639 = vadd.f32 %v3607, 1.4214138
        %v3640 = vadd.f32 %v3608, 1.4214138
        %v3641 = vadd.f32 %v3609, 1.4214138
        %v3642 = vadd.f32 %v3610, 1.4214138
        %v3643 = vadd.f32 %v3611, 1.4214138
        %v3644 = vadd.f32 %v3612, 1.4214138
        %v3645 = vadd.f32 %v3613, 1.4214138
        %v3646 = vadd.f32 %v3614, 1.4214138
        %v3647 = vadd.f32 %v3615, 1.4214138
        %v3648 = vadd.f32 %v3616, 1.4214138
        %v3649 = vadd.f32 %v3617, 1.4214138
        %v3650 = vadd.f32 %v3618, 1.4214138
        %v3651 = vmul.f32 %v3619, %v3057
        %v3652 = vmul.f32 %v3620, %v3072
        %v3653 = vmul.f32 %v3621, %v3087
        %v3654 = vmul.f32 %v3622, %v3102
        %v3655 = vmul.f32 %v3623, %v3117
        %v3656 = vmul.f32 %v3624, %v3132
        %v3657 = vmul.f32 %v3625, %v3147
        %v3658 = vmul.f32 %v3626, %v3162
        %v3659 = vmul.f32 %v3627, %v3177
        %v3660 = vmul.f32 %v3628, %v3192
        %v3661 = vmul.f32 %v3629, %v3207
        %v3662 = vmul.f32 %v3630, %v3222
        %v3663 = vmul.f32 %v3631, %v3237
        %v3664 = vmul.f32 %v3632, %v3252
        %v3665 = vmul.f32 %v3633, %v3267
        %v3666 = vmul.f32 %v3634, %v3282
        %v3667 = vmul.f32 %v3635, %v3297
        %v3668 = vmul.f32 %v3636, %v3312
        %v3669 = vmul.f32 %v3637, %v3327
        %v3670 = vmul.f32 %v3638, %v3342
        %v3671 = vmul.f32 %v3639, %v3357
        %v3672 = vmul.f32 %v3640, %v3372
        %v3673 = vmul.f32 %v3641, %v3387
        %v3674 = vmul.f32 %v3642, %v3402
        %v3675 = vmul.f32 %v3643, %v3417
        %v3676 = vmul.f32 %v3644, %v3432
        %v3677 = vmul.f32 %v3645, %v3447
        %v3678 = vmul.f32 %v3646, %v3462
        %v3679 = vmul.f32 %v3647, %v3477
        %v3680 = vmul.f32 %v3648, %v3492
        %v3681 = vmul.f32 %v3649, %v3507
        %v3682 = vmul.f32 %v3650, %v3522
        %v3683 = vadd.f32 %v3651, -0.28449672
        %v3684 = vadd.f32 %v3652, -0.28449672
        %v3685 = vadd.f32 %v3653, -0.28449672
        %v3686 = vadd.f32 %v3654, -0.28449672
        %v3687 = vadd.f32 %v3655, -0.28449672
        %v3688 = vadd.f32 %v3656, -0.28449672
        %v3689 = vadd.f32 %v3657, -0.28449672
        %v3690 = vadd.f32 %v3658, -0.28449672
        %v3691 = vadd.f32 %v3659, -0.28449672
        %v3692 = vadd.f32 %v3660, -0.28449672
        %v3693 = vadd.f32 %v3661, -0.28449672
        %v3694 = vadd.f32 %v3662, -0.28449672
        %v3695 = vadd.f32 %v3663, -0.28449672
        %v3696 = vadd.f32 %v3664, -0.28449672
        %v3697 = vadd.f32 %v3665, -0.28449672
        %v3698 = vadd.f32 %v3666, -0.28449672
        %v3699 = vadd.f32 %v3667, -0.28449672
        %v3700 = vadd.f32 %v3668, -0.28449672
        %v3701 = vadd.f32 %v3669, -0.28449672
        %v3702 = vadd.f32 %v3670, -0.28449672
        %v3703 = vadd.f32 %v3671, -0.28449672
        %v3704 = vadd.f32 %v3672, -0.28449672
        %v3705 = vadd.f32 %v3673, -0.28449672
        %v3706 = vadd.f32 %v3674, -0.28449672
        %v3707 = vadd.f32 %v3675, -0.28449672
        %v3708 = vadd.f32 %v3676, -0.28449672
        %v3709 = vadd.f32 %v3677, -0.28449672
        %v3710 = vadd.f32 %v3678, -0.28449672
        %v3711 = vadd.f32 %v3679, -0.28449672
        %v3712 = vadd.f32 %v3680, -0.28449672
        %v3713 = vadd.f32 %v3681, -0.28449672
        %v3714 = vadd.f32 %v3682, -0.28449672
        %v3715 = vmul.f32 %v3683, %v3057
        %v3716 = vmul.f32 %v3684, %v3072
        %v3717 = vmul.f32 %v3685, %v3087
        %v3718 = vmul.f32 %v3686, %v3102
        %v3719 = vmul.f32 %v3687, %v3117
        %v3720 = vmul.f32 %v3688, %v3132
        %v3721 = vmul.f32 %v3689, %v3147
        %v3722 = vmul.f32 %v3690, %v3162
        %v3723 = vmul.f32 %v3691, %v3177
        %v3724 = vmul.f32 %v3692, %v3192
        %v3725 = vmul.f32 %v3693, %v3207
        %v3726 = vmul.f32 %v3694, %v3222
        %v3727 = vmul.f32 %v3695, %v3237
        %v3728 = vmul.f32 %v3696, %v3252
        %v3729 = vmul.f32 %v3697, %v3267
        %v3730 = vmul.f32 %v3698, %v3282
        %v3731 = vmul.f32 %v3699, %v3297
        %v3732 = vmul.f32 %v3700, %v3312
        %v3733 = vmul.f32 %v3701, %v3327
        %v3734 = vmul.f32 %v3702, %v3342
        %v3735 = vmul.f32 %v3703, %v3357
        %v3736 = vmul.f32 %v3704, %v3372
        %v3737 = vmul.f32 %v3705, %v3387
        %v3738 = vmul.f32 %v3706, %v3402
        %v3739 = vmul.f32 %v3707, %v3417
        %v3740 = vmul.f32 %v3708, %v3432
        %v3741 = vmul.f32 %v3709, %v3447
        %v3742 = vmul.f32 %v3710, %v3462
        %v3743 = vmul.f32 %v3711, %v3477
        %v3744 = vmul.f32 %v3712, %v3492
        %v3745 = vmul.f32 %v3713, %v3507
        %v3746 = vmul.f32 %v3714, %v3522
        %v3747 = vadd.f32 %v3715, 0.2548296
        %v3748 = vadd.f32 %v3716, 0.2548296
        %v3749 = vadd.f32 %v3717, 0.2548296
        %v3750 = vadd.f32 %v3718, 0.2548296
        %v3751 = vadd.f32 %v3719, 0.2548296
        %v3752 = vadd.f32 %v3720, 0.2548296
        %v3753 = vadd.f32 %v3721, 0.2548296
        %v3754 = vadd.f32 %v3722, 0.2548296
        %v3755 = vadd.f32 %v3723, 0.2548296
        %v3756 = vadd.f32 %v3724, 0.2548296
        %v3757 = vadd.f32 %v3725, 0.2548296
        %v3758 = vadd.f32 %v3726, 0.2548296
        %v3759 = vadd.f32 %v3727, 0.2548296
        %v3760 = vadd.f32 %v3728, 0.2548296
        %v3761 = vadd.f32 %v3729, 0.2548296
        %v3762 = vadd.f32 %v3730, 0.2548296
        %v3763 = vadd.f32 %v3731, 0.2548296
        %v3764 = vadd.f32 %v3732, 0.2548296
        %v3765 = vadd.f32 %v3733, 0.2548296
        %v3766 = vadd.f32 %v3734, 0.2548296
        %v3767 = vadd.f32 %v3735, 0.2548296
        %v3768 = vadd.f32 %v3736, 0.2548296
        %v3769 = vadd.f32 %v3737, 0.2548296
        %v3770 = vadd.f32 %v3738, 0.2548296
        %v3771 = vadd.f32 %v3739, 0.2548296
        %v3772 = vadd.f32 %v3740, 0.2548296
        %v3773 = vadd.f32 %v3741, 0.2548296
        %v3774 = vadd.f32 %v3742, 0.2548296
        %v3775 = vadd.f32 %v3743, 0.2548296
        %v3776 = vadd.f32 %v3744, 0.2548296
        %v3777 = vadd.f32 %v3745, 0.2548296
        %v3778 = vadd.f32 %v3746, 0.2548296
        %v3779 = vmul.f32 %v3747, %v3057
        %v3780 = vmul.f32 %v3748, %v3072
        %v3781 = vmul.f32 %v3749, %v3087
        %v3782 = vmul.f32 %v3750, %v3102
        %v3783 = vmul.f32 %v3751, %v3117
        %v3784 = vmul.f32 %v3752, %v3132
        %v3785 = vmul.f32 %v3753, %v3147
        %v3786 = vmul.f32 %v3754, %v3162
        %v3787 = vmul.f32 %v3755, %v3177
        %v3788 = vmul.f32 %v3756, %v3192
        %v3789 = vmul.f32 %v3757, %v3207
        %v3790 = vmul.f32 %v3758, %v3222
        %v3791 = vmul.f32 %v3759, %v3237
        %v3792 = vmul.f32 %v3760, %v3252
        %v3793 = vmul.f32 %v3761, %v3267
        %v3794 = vmul.f32 %v3762, %v3282
        %v3795 = vmul.f32 %v3763, %v3297
        %v3796 = vmul.f32 %v3764, %v3312
        %v3797 = vmul.f32 %v3765, %v3327
        %v3798 = vmul.f32 %v3766, %v3342
        %v3799 = vmul.f32 %v3767, %v3357
        %v3800 = vmul.f32 %v3768, %v3372
        %v3801 = vmul.f32 %v3769, %v3387
        %v3802 = vmul.f32 %v3770, %v3402
        %v3803 = vmul.f32 %v3771, %v3417
        %v3804 = vmul.f32 %v3772, %v3432
        %v3805 = vmul.f32 %v3773, %v3447
        %v3806 = vmul.f32 %v3774, %v3462
        %v3807 = vmul.f32 %v3775, %v3477
        %v3808 = vmul.f32 %v3776, %v3492
        %v3809 = vmul.f32 %v3777, %v3507
        %v3810 = vmul.f32 %v3778, %v3522
        %v3811 = vsub.f32 0.0, %v2947
        %v3812 = vsub.f32 0.0, %v2948
        %v3813 = vsub.f32 0.0, %v2949
        %v3814 = vsub.f32 0.0, %v2950
        %v3815 = vsub.f32 0.0, %v2951
        %v3816 = vsub.f32 0.0, %v2952
        %v3817 = vsub.f32 0.0, %v2953
        %v3818 = vsub.f32 0.0, %v2954
        %v3819 = vsub.f32 0.0, %v2955
        %v3820 = vsub.f32 0.0, %v2956
        %v3821 = vsub.f32 0.0, %v2957
        %v3822 = vsub.f32 0.0, %v2958
        %v3823 = vsub.f32 0.0, %v2959
        %v3824 = vsub.f32 0.0, %v2960
        %v3825 = vsub.f32 0.0, %v2961
        %v3826 = vsub.f32 0.0, %v2962
        %v3827 = vsub.f32 0.0, %v2963
        %v3828 = vsub.f32 0.0, %v2964
        %v3829 = vsub.f32 0.0, %v2965
        %v3830 = vsub.f32 0.0, %v2966
        %v3831 = vsub.f32 0.0, %v2967
        %v3832 = vsub.f32 0.0, %v2968
        %v3833 = vsub.f32 0.0, %v2969
        %v3834 = vsub.f32 0.0, %v2970
        %v3835 = vsub.f32 0.0, %v2971
        %v3836 = vsub.f32 0.0, %v2972
        %v3837 = vsub.f32 0.0, %v2973
        %v3838 = vsub.f32 0.0, %v2974
        %v3839 = vsub.f32 0.0, %v2975
        %v3840 = vsub.f32 0.0, %v2976
        %v3841 = vsub.f32 0.0, %v2977
        %v3842 = vsub.f32 0.0, %v2978
        %v3843 = vmul.f32 %v3811, %v2947
        %v3844 = vmul.f32 %v3812, %v2948
        %v3845 = vmul.f32 %v3813, %v2949
        %v3846 = vmul.f32 %v3814, %v2950
        %v3847 = vmul.f32 %v3815, %v2951
        %v3848 = vmul.f32 %v3816, %v2952
        %v3849 = vmul.f32 %v3817, %v2953
        %v3850 = vmul.f32 %v3818, %v2954
        %v3851 = vmul.f32 %v3819, %v2955
        %v3852 = vmul.f32 %v3820, %v2956
        %v3853 = vmul.f32 %v3821, %v2957
        %v3854 = vmul.f32 %v3822, %v2958
        %v3855 = vmul.f32 %v3823, %v2959
        %v3856 = vmul.f32 %v3824, %v2960
        %v3857 = vmul.f32 %v3825, %v2961
        %v3858 = vmul.f32 %v3826, %v2962
        %v3859 = vmul.f32 %v3827, %v2963
        %v3860 = vmul.f32 %v3828, %v2964
        %v3861 = vmul.f32 %v3829, %v2965
        %v3862 = vmul.f32 %v3830, %v2966
        %v3863 = vmul.f32 %v3831, %v2967
        %v3864 = vmul.f32 %v3832, %v2968
        %v3865 = vmul.f32 %v3833, %v2969
        %v3866 = vmul.f32 %v3834, %v2970
        %v3867 = vmul.f32 %v3835, %v2971
        %v3868 = vmul.f32 %v3836, %v2972
        %v3869 = vmul.f32 %v3837, %v2973
        %v3870 = vmul.f32 %v3838, %v2974
        %v3871 = vmul.f32 %v3839, %v2975
        %v3872 = vmul.f32 %v3840, %v2976
        %v3873 = vmul.f32 %v3841, %v2977
        %v3874 = vmul.f32 %v3842, %v2978
        %v3875 = vmul.f32 %v3843, 1.442695
        %v3876 = vpow.pop %v3875
        %v3877 = vmul.f32 %v3844, 1.442695
        %v3878 = vpow.pop %v3877
        %v3879 = vmul.f32 %v3845, 1.442695
        %v3880 = vpow.pop %v3879
        %v3881 = vmul.f32 %v3846, 1.442695
        %v3882 = vpow.pop %v3881
        %v3883 = vmul.f32 %v3847, 1.442695
        %v3884 = vpow.pop %v3883
        %v3885 = vmul.f32 %v3848, 1.442695
        %v3886 = vpow.pop %v3885
        %v3887 = vmul.f32 %v3849, 1.442695
        %v3888 = vpow.pop %v3887
        %v3889 = vmul.f32 %v3850, 1.442695
        %v3890 = vpow.pop %v3889
        %v3891 = vmul.f32 %v3851, 1.442695
        %v3892 = vpow.pop %v3891
        %v3893 = vmul.f32 %v3852, 1.442695
        %v3894 = vpow.pop %v3893
        %v3895 = vmul.f32 %v3853, 1.442695
        %v3896 = vpow.pop %v3895
        %v3897 = vmul.f32 %v3854, 1.442695
        %v3898 = vpow.pop %v3897
        %v3899 = vmul.f32 %v3855, 1.442695
        %v3900 = vpow.pop %v3899
        %v3901 = vmul.f32 %v3856, 1.442695
        %v3902 = vpow.pop %v3901
        %v3903 = vmul.f32 %v3857, 1.442695
        %v3904 = vpow.pop %v3903
        %v3905 = vmul.f32 %v3858, 1.442695
        %v3906 = vpow.pop %v3905
        %v3907 = vmul.f32 %v3859, 1.442695
        %v3908 = vpow.pop %v3907
        %v3909 = vmul.f32 %v3860, 1.442695
        %v3910 = vpow.pop %v3909
        %v3911 = vmul.f32 %v3861, 1.442695
        %v3912 = vpow.pop %v3911
        %v3913 = vmul.f32 %v3862, 1.442695
        %v3914 = vpow.pop %v3913
        %v3915 = vmul.f32 %v3863, 1.442695
        %v3916 = vpow.pop %v3915
        %v3917 = vmul.f32 %v3864, 1.442695
        %v3918 = vpow.pop %v3917
        %v3919 = vmul.f32 %v3865, 1.442695
        %v3920 = vpow.pop %v3919
        %v3921 = vmul.f32 %v3866, 1.442695
        %v3922 = vpow.pop %v3921
        %v3923 = vmul.f32 %v3867, 1.442695
        %v3924 = vpow.pop %v3923
        %v3925 = vmul.f32 %v3868, 1.442695
        %v3926 = vpow.pop %v3925
        %v3927 = vmul.f32 %v3869, 1.442695
        %v3928 = vpow.pop %v3927
        %v3929 = vmul.f32 %v3870, 1.442695
        %v3930 = vpow.pop %v3929
        %v3931 = vmul.f32 %v3871, 1.442695
        %v3932 = vpow.pop %v3931
        %v3933 = vmul.f32 %v3872, 1.442695
        %v3934 = vpow.pop %v3933
        %v3935 = vmul.f32 %v3873, 1.442695
        %v3936 = vpow.pop %v3935
        %v3937 = vmul.f32 %v3874, 1.442695
        %v3938 = vpow.pop %v3937
        %v3939 = vmul.f32 %v3779, %v3876
        %v3940 = vmul.f32 %v3780, %v3878
        %v3941 = vmul.f32 %v3781, %v3880
        %v3942 = vmul.f32 %v3782, %v3882
        %v3943 = vmul.f32 %v3783, %v3884
        %v3944 = vmul.f32 %v3784, %v3886
        %v3945 = vmul.f32 %v3785, %v3888
        %v3946 = vmul.f32 %v3786, %v3890
        %v3947 = vmul.f32 %v3787, %v3892
        %v3948 = vmul.f32 %v3788, %v3894
        %v3949 = vmul.f32 %v3789, %v3896
        %v3950 = vmul.f32 %v3790, %v3898
        %v3951 = vmul.f32 %v3791, %v3900
        %v3952 = vmul.f32 %v3792, %v3902
        %v3953 = vmul.f32 %v3793, %v3904
        %v3954 = vmul.f32 %v3794, %v3906
        %v3955 = vmul.f32 %v3795, %v3908
        %v3956 = vmul.f32 %v3796, %v3910
        %v3957 = vmul.f32 %v3797, %v3912
        %v3958 = vmul.f32 %v3798, %v3914
        %v3959 = vmul.f32 %v3799, %v3916
        %v3960 = vmul.f32 %v3800, %v3918
        %v3961 = vmul.f32 %v3801, %v3920
        %v3962 = vmul.f32 %v3802, %v3922
        %v3963 = vmul.f32 %v3803, %v3924
        %v3964 = vmul.f32 %v3804, %v3926
        %v3965 = vmul.f32 %v3805, %v3928
        %v3966 = vmul.f32 %v3806, %v3930
        %v3967 = vmul.f32 %v3807, %v3932
        %v3968 = vmul.f32 %v3808, %v3934
        %v3969 = vmul.f32 %v3809, %v3936
        %v3970 = vmul.f32 %v3810, %v3938
        %v3971 = vsub.f32 1.0, %v3939
        %v3972 = vsub.f32 1.0, %v3940
        %v3973 = vsub.f32 1.0, %v3941
        %v3974 = vsub.f32 1.0, %v3942
        %v3975 = vsub.f32 1.0, %v3943
        %v3976 = vsub.f32 1.0, %v3944
        %v3977 = vsub.f32 1.0, %v3945
        %v3978 = vsub.f32 1.0, %v3946
        %v3979 = vsub.f32 1.0, %v3947
        %v3980 = vsub.f32 1.0, %v3948
        %v3981 = vsub.f32 1.0, %v3949
        %v3982 = vsub.f32 1.0, %v3950
        %v3983 = vsub.f32 1.0, %v3951
        %v3984 = vsub.f32 1.0, %v3952
        %v3985 = vsub.f32 1.0, %v3953
        %v3986 = vsub.f32 1.0, %v3954
        %v3987 = vsub.f32 1.0, %v3955
        %v3988 = vsub.f32 1.0, %v3956
        %v3989 = vsub.f32 1.0, %v3957
        %v3990 = vsub.f32 1.0, %v3958
        %v3991 = vsub.f32 1.0, %v3959
        %v3992 = vsub.f32 1.0, %v3960
        %v3993 = vsub.f32 1.0, %v3961
        %v3994 = vsub.f32 1.0, %v3962
        %v3995 = vsub.f32 1.0, %v3963
        %v3996 = vsub.f32 1.0, %v3964
        %v3997 = vsub.f32 1.0, %v3965
        %v3998 = vsub.f32 1.0, %v3966
        %v3999 = vsub.f32 1.0, %v3967
        %v4000 = vsub.f32 1.0, %v3968
        %v4001 = vsub.f32 1.0, %v3969
        %v4002 = vsub.f32 1.0, %v3970
        %vm4003 = vcmp.lt.f32.partialorder %v2915, 0.0
        %vm4004 = vcmp.lt.f32.partialorder %v2916, 0.0
        %vm4005 = vcmp.lt.f32.partialorder %v2917, 0.0
        %vm4006 = vcmp.lt.f32.partialorder %v2918, 0.0
        %vm4007 = vcmp.lt.f32.partialorder %v2919, 0.0
        %vm4008 = vcmp.lt.f32.partialorder %v2920, 0.0
        %vm4009 = vcmp.lt.f32.partialorder %v2921, 0.0
        %vm4010 = vcmp.lt.f32.partialorder %v2922, 0.0
        %vm4011 = vcmp.lt.f32.partialorder %v2923, 0.0
        %vm4012 = vcmp.lt.f32.partialorder %v2924, 0.0
        %vm4013 = vcmp.lt.f32.partialorder %v2925, 0.0
        %vm4014 = vcmp.lt.f32.partialorder %v2926, 0.0
        %vm4015 = vcmp.lt.f32.partialorder %v2927, 0.0
        %vm4016 = vcmp.lt.f32.partialorder %v2928, 0.0
        %vm4017 = vcmp.lt.f32.partialorder %v2929, 0.0
        %vm4018 = vcmp.lt.f32.partialorder %v2930, 0.0
        %vm4019 = vcmp.lt.f32.partialorder %v2931, 0.0
        %vm4020 = vcmp.lt.f32.partialorder %v2932, 0.0
        %vm4021 = vcmp.lt.f32.partialorder %v2933, 0.0
        %vm4022 = vcmp.lt.f32.partialorder %v2934, 0.0
        %vm4023 = vcmp.lt.f32.partialorder %v2935, 0.0
        %vm4024 = vcmp.lt.f32.partialorder %v2936, 0.0
        %vm4025 = vcmp.lt.f32.partialorder %v2937, 0.0
        %vm4026 = vcmp.lt.f32.partialorder %v2938, 0.0
        %vm4027 = vcmp.lt.f32.partialorder %v2939, 0.0
        %vm4028 = vcmp.lt.f32.partialorder %v2940, 0.0
        %vm4029 = vcmp.lt.f32.partialorder %v2941, 0.0
        %vm4030 = vcmp.lt.f32.partialorder %v2942, 0.0
        %vm4031 = vcmp.lt.f32.partialorder %v2943, 0.0
        %vm4032 = vcmp.lt.f32.partialorder %v2944, 0.0
        %vm4033 = vcmp.lt.f32.partialorder %v2945, 0.0
        %vm4034 = vcmp.lt.f32.partialorder %v2946, 0.0
        %v4035 = vsub.f32 0.0, %v3971
        %v4036 = vsub.f32 0.0, %v3972
        %v4037 = vsub.f32 0.0, %v3973
        %v4038 = vsub.f32 0.0, %v3974
        %v4039 = vsub.f32 0.0, %v3975
        %v4040 = vsub.f32 0.0, %v3976
        %v4041 = vsub.f32 0.0, %v3977
        %v4042 = vsub.f32 0.0, %v3978
        %v4043 = vsub.f32 0.0, %v3979
        %v4044 = vsub.f32 0.0, %v3980
        %v4045 = vsub.f32 0.0, %v3981
        %v4046 = vsub.f32 0.0, %v3982
        %v4047 = vsub.f32 0.0, %v3983
        %v4048 = vsub.f32 0.0, %v3984
        %v4049 = vsub.f32 0.0, %v3985
        %v4050 = vsub.f32 0.0, %v3986
        %v4051 = vsub.f32 0.0, %v3987
        %v4052 = vsub.f32 0.0, %v3988
        %v4053 = vsub.f32 0.0, %v3989
        %v4054 = vsub.f32 0.0, %v3990
        %v4055 = vsub.f32 0.0, %v3991
        %v4056 = vsub.f32 0.0, %v3992
        %v4057 = vsub.f32 0.0, %v3993
        %v4058 = vsub.f32 0.0, %v3994
        %v4059 = vsub.f32 0.0, %v3995
        %v4060 = vsub.f32 0.0, %v3996
        %v4061 = vsub.f32 0.0, %v3997
        %v4062 = vsub.f32 0.0, %v3998
        %v4063 = vsub.f32 0.0, %v3999
        %v4064 = vsub.f32 0.0, %v4000
        %v4065 = vsub.f32 0.0, %v4001
        %v4066 = vsub.f32 0.0, %v4002
        %v4067 = vsel %vm4003, %v4035, %v3971
        %v4068 = vsel %vm4004, %v4036, %v3972
        %v4069 = vsel %vm4005, %v4037, %v3973
        %v4070 = vsel %vm4006, %v4038, %v3974
        %v4071 = vsel %vm4007, %v4039, %v3975
        %v4072 = vsel %vm4008, %v4040, %v3976
        %v4073 = vsel %vm4009, %v4041, %v3977
        %v4074 = vsel %vm4010, %v4042, %v3978
        %v4075 = vsel %vm4011, %v4043, %v3979
        %v4076 = vsel %vm4012, %v4044, %v3980
        %v4077 = vsel %vm4013, %v4045, %v3981
        %v4078 = vsel %vm4014, %v4046, %v3982
        %v4079 = vsel %vm4015, %v4047, %v3983
        %v4080 = vsel %vm4016, %v4048, %v3984
        %v4081 = vsel %vm4017, %v4049, %v3985
        %v4082 = vsel %vm4018, %v4050, %v3986
        %v4083 = vsel %vm4019, %v4051, %v3987
        %v4084 = vsel %vm4020, %v4052, %v3988
        %v4085 = vsel %vm4021, %v4053, %v3989
        %v4086 = vsel %vm4022, %v4054, %v3990
        %v4087 = vsel %vm4023, %v4055, %v3991
        %v4088 = vsel %vm4024, %v4056, %v3992
        %v4089 = vsel %vm4025, %v4057, %v3993
        %v4090 = vsel %vm4026, %v4058, %v3994
        %v4091 = vsel %vm4027, %v4059, %v3995
        %v4092 = vsel %vm4028, %v4060, %v3996
        %v4093 = vsel %vm4029, %v4061, %v3997
        %v4094 = vsel %vm4030, %v4062, %v3998
        %v4095 = vsel %vm4031, %v4063, %v3999
        %v4096 = vsel %vm4032, %v4064, %v4000
        %v4097 = vsel %vm4033, %v4065, %v4001
        %v4098 = vsel %vm4034, %v4066, %v4002
        %v4099 = vadd.f32 %v4067, 1.0
        %v4100 = vadd.f32 %v4068, 1.0
        %v4101 = vadd.f32 %v4069, 1.0
        %v4102 = vadd.f32 %v4070, 1.0
        %v4103 = vadd.f32 %v4071, 1.0
        %v4104 = vadd.f32 %v4072, 1.0
        %v4105 = vadd.f32 %v4073, 1.0
        %v4106 = vadd.f32 %v4074, 1.0
        %v4107 = vadd.f32 %v4075, 1.0
        %v4108 = vadd.f32 %v4076, 1.0
        %v4109 = vadd.f32 %v4077, 1.0
        %v4110 = vadd.f32 %v4078, 1.0
        %v4111 = vadd.f32 %v4079, 1.0
        %v4112 = vadd.f32 %v4080, 1.0
        %v4113 = vadd.f32 %v4081, 1.0
        %v4114 = vadd.f32 %v4082, 1.0
        %v4115 = vadd.f32 %v4083, 1.0
        %v4116 = vadd.f32 %v4084, 1.0
        %v4117 = vadd.f32 %v4085, 1.0
        %v4118 = vadd.f32 %v4086, 1.0
        %v4119 = vadd.f32 %v4087, 1.0
        %v4120 = vadd.f32 %v4088, 1.0
        %v4121 = vadd.f32 %v4089, 1.0
        %v4122 = vadd.f32 %v4090, 1.0
        %v4123 = vadd.f32 %v4091, 1.0
        %v4124 = vadd.f32 %v4092, 1.0
        %v4125 = vadd.f32 %v4093, 1.0
        %v4126 = vadd.f32 %v4094, 1.0
        %v4127 = vadd.f32 %v4095, 1.0
        %v4128 = vadd.f32 %v4096, 1.0
        %v4129 = vadd.f32 %v4097, 1.0
        %v4130 = vadd.f32 %v4098, 1.0
        %v4131 = vmul.f32 %v2883, %v4099
        %v4132 = vmul.f32 %v2884, %v4100
        %v4133 = vmul.f32 %v2885, %v4101
        %v4134 = vmul.f32 %v2886, %v4102
        %v4135 = vmul.f32 %v2887, %v4103
        %v4136 = vmul.f32 %v2888, %v4104
        %v4137 = vmul.f32 %v2889, %v4105
        %v4138 = vmul.f32 %v2890, %v4106
        %v4139 = vmul.f32 %v2891, %v4107
        %v4140 = vmul.f32 %v2892, %v4108
        %v4141 = vmul.f32 %v2893, %v4109
        %v4142 = vmul.f32 %v2894, %v4110
        %v4143 = vmul.f32 %v2895, %v4111
        %v4144 = vmul.f32 %v2896, %v4112
        %v4145 = vmul.f32 %v2897, %v4113
        %v4146 = vmul.f32 %v2898, %v4114
        %v4147 = vmul.f32 %v2899, %v4115
        %v4148 = vmul.f32 %v2900, %v4116
        %v4149 = vmul.f32 %v2901, %v4117
        %v4150 = vmul.f32 %v2902, %v4118
        %v4151 = vmul.f32 %v2903, %v4119
        %v4152 = vmul.f32 %v2904, %v4120
        %v4153 = vmul.f32 %v2905, %v4121
        %v4154 = vmul.f32 %v2906, %v4122
        %v4155 = vmul.f32 %v2907, %v4123
        %v4156 = vmul.f32 %v2908, %v4124
        %v4157 = vmul.f32 %v2909, %v4125
        %v4158 = vmul.f32 %v2910, %v4126
        %v4159 = vmul.f32 %v2911, %v4127
        %v4160 = vmul.f32 %v2912, %v4128
        %v4161 = vmul.f32 %v2913, %v4129
        %v4162 = vmul.f32 %v2914, %v4130
        %v4163 = vld [vmem:[#allocation11] sm:$0xff]
        %v4164 = vld [vmem:[#allocation11 + $0x8] sm:$0xff]
        %v4165 = vld [vmem:[#allocation11 + $0x10] sm:$0xff]
        %v4166 = vld [vmem:[#allocation11 + $0x18] sm:$0xff]
        %v4167 = vld [vmem:[#allocation11 + $0x20] sm:$0xff]
        %v4168 = vld [vmem:[#allocation11 + $0x28] sm:$0xff]
        %v4169 = vld [vmem:[#allocation11 + $0x30] sm:$0xff]
        %v4170 = vld [vmem:[#allocation11 + $0x38] sm:$0xff]
        %v4171 = vld [vmem:[#allocation11 + $0x40] sm:$0xff]
        %v4172 = vld [vmem:[#allocation11 + $0x48] sm:$0xff]
        %v4173 = vld [vmem:[#allocation11 + $0x50] sm:$0xff]
        %v4174 = vld [vmem:[#allocation11 + $0x58] sm:$0xff]
        %v4175 = vld [vmem:[#allocation11 + $0x60] sm:$0xff]
        %v4176 = vld [vmem:[#allocation11 + $0x68] sm:$0xff]
        %v4177 = vld [vmem:[#allocation11 + $0x70] sm:$0xff]
        %v4178 = vld [vmem:[#allocation11 + $0x78] sm:$0xff]
        %v4179 = vld [vmem:[#allocation11 + $0x80] sm:$0xff]
        %v4180 = vld [vmem:[#allocation11 + $0x88] sm:$0xff]
        %v4181 = vld [vmem:[#allocation11 + $0x90] sm:$0xff]
        %v4182 = vld [vmem:[#allocation11 + $0x98] sm:$0xff]
        %v4183 = vld [vmem:[#allocation11 + $0xa0] sm:$0xff]
        %v4184 = vld [vmem:[#allocation11 + $0xa8] sm:$0xff]
        %v4185 = vld [vmem:[#allocation11 + $0xb0] sm:$0xff]
        %v4186 = vld [vmem:[#allocation11 + $0xb8] sm:$0xff]
        %v4187 = vld [vmem:[#allocation11 + $0xc0] sm:$0xff]
        %v4188 = vld [vmem:[#allocation11 + $0xc8] sm:$0xff]
        %v4189 = vld [vmem:[#allocation11 + $0xd0] sm:$0xff]
        %v4190 = vld [vmem:[#allocation11 + $0xd8] sm:$0xff]
        %v4191 = vld [vmem:[#allocation11 + $0xe0] sm:$0xff]
        %v4192 = vld [vmem:[#allocation11 + $0xe8] sm:$0xff]
        %v4193 = vld [vmem:[#allocation11 + $0xf0] sm:$0xff]
        %v4194 = vld [vmem:[#allocation11 + $0xf8] sm:$0xff]
        %v4195 = vld [vmem:[#allocation11 + $0x100] sm:$0xff]
        %v4196 = vld [vmem:[#allocation11 + $0x108] sm:$0xff]
        %v4197 = vld [vmem:[#allocation11 + $0x110] sm:$0xff]
        %v4198 = vld [vmem:[#allocation11 + $0x118] sm:$0xff]
        %v4199 = vld [vmem:[#allocation11 + $0x120] sm:$0xff]
        %v4200 = vld [vmem:[#allocation11 + $0x128] sm:$0xff]
        %v4201 = vld [vmem:[#allocation11 + $0x130] sm:$0xff]
        %v4202 = vld [vmem:[#allocation11 + $0x138] sm:$0xff]
        %v4203 = vld [vmem:[#allocation11 + $0x140] sm:$0xff]
        %v4204 = vld [vmem:[#allocation11 + $0x148] sm:$0xff]
        %v4205 = vld [vmem:[#allocation11 + $0x150] sm:$0xff]
        %v4206 = vld [vmem:[#allocation11 + $0x158] sm:$0xff]
        %v4207 = vld [vmem:[#allocation11 + $0x160] sm:$0xff]
        %v4208 = vld [vmem:[#allocation11 + $0x168] sm:$0xff]
        %v4209 = vld [vmem:[#allocation11 + $0x170] sm:$0xff]
        %v4210 = vld [vmem:[#allocation11 + $0x178] sm:$0xff]
        %v4211 = vld [vmem:[#allocation11 + $0x180] sm:$0xff]
        %v4212 = vld [vmem:[#allocation11 + $0x188] sm:$0xff]
        %v4213 = vld [vmem:[#allocation11 + $0x190] sm:$0xff]
        %v4214 = vld [vmem:[#allocation11 + $0x198] sm:$0xff]
        %v4215 = vld [vmem:[#allocation11 + $0x1a0] sm:$0xff]
        %v4216 = vld [vmem:[#allocation11 + $0x1a8] sm:$0xff]
        %v4217 = vld [vmem:[#allocation11 + $0x1b0] sm:$0xff]
        %v4218 = vld [vmem:[#allocation11 + $0x1b8] sm:$0xff]
        %v4219 = vld [vmem:[#allocation11 + $0x1c0] sm:$0xff]
        %v4220 = vld [vmem:[#allocation11 + $0x1c8] sm:$0xff]
        %v4221 = vld [vmem:[#allocation11 + $0x1d0] sm:$0xff]
        %v4222 = vld [vmem:[#allocation11 + $0x1d8] sm:$0xff]
        %v4223 = vld [vmem:[#allocation11 + $0x1e0] sm:$0xff]
        %v4224 = vld [vmem:[#allocation11 + $0x1e8] sm:$0xff]
        %v4225 = vld [vmem:[#allocation11 + $0x1f0] sm:$0xff]
        %v4226 = vld [vmem:[#allocation11 + $0x1f8] sm:$0xff]
        %v4227 = vld [vmem:[%s9] sm:$0x1]
        %v4229 = vperm.slane %v4227, 0
        %4231 = vmatpush.msra.mxu0 %v4178
        %4232 = vmatpush.msra.mxu0 %v4177
        %4233 = vmatpush.msra.mxu0 %v4176
        %4234 = vmatpush.msra.mxu0 %v4175
        %4235 = vmatpush.msra.mxu0 %v4174
        %4236 = vmatpush.msra.mxu0 %v4173
        %4237 = vmatpush.msra.mxu0 %v4172
        %4238 = vmatpush.msra.mxu0 %v4171
        %4239 = vmatpush.msra.mxu0 %v4170
        %4240 = vmatpush.msra.mxu0 %v4169
        %4241 = vmatpush.msra.mxu0 %v4168
        %4242 = vmatpush.msra.mxu0 %v4167
        %4243 = vmatpush.msra.mxu0 %v4166
        %4244 = vmatpush.msra.mxu0 %v4165
        %4245 = vmatpush.msra.mxu0 %v4164
        %4246 = vmatpush.msra.mxu0 %v4163
        %4247 = vmatmul.f32.gmra.mxu0 %v4131
        %v4248 = vpop.f32.mrf.mxu0
        %v4249 = vadd.f32 %v4229, %v4248
        %4250 = vmatmul.f32.gmra.mxu0 %v4135
        %v4251 = vpop.f32.mrf.mxu0
        %v4252 = vadd.f32 %v4229, %v4251
        %4253 = vmatmul.f32.gmra.mxu0 %v4139
        %v4254 = vpop.f32.mrf.mxu0
        %v4255 = vadd.f32 %v4229, %v4254
        %4256 = vmatmul.f32.gmra.mxu0 %v4143
        %v4257 = vpop.f32.mrf.mxu0
        %v4258 = vadd.f32 %v4229, %v4257
        %4259 = vmatmul.f32.gmra.mxu0 %v4147
        %v4260 = vpop.f32.mrf.mxu0
        %v4261 = vadd.f32 %v4229, %v4260
        %4262 = vmatmul.f32.gmra.mxu0 %v4151
        %v4263 = vpop.f32.mrf.mxu0
        %v4264 = vadd.f32 %v4229, %v4263
        %4265 = vmatmul.f32.gmra.mxu0 %v4155
        %v4266 = vpop.f32.mrf.mxu0
        %v4267 = vadd.f32 %v4229, %v4266
        %4268 = vmatmul.f32.gmra.mxu0 %v4159
        %v4269 = vpop.f32.mrf.mxu0
        %v4270 = vadd.f32 %v4229, %v4269
        %4271 = vdwg.mxu0
        %4272 = vmatpush.msra.mxu0 %v4194
        %4273 = vmatpush.msra.mxu0 %v4193
        %4274 = vmatpush.msra.mxu0 %v4192
        %4275 = vmatpush.msra.mxu0 %v4191
        %4276 = vmatpush.msra.mxu0 %v4190
        %4277 = vmatpush.msra.mxu0 %v4189
        %4278 = vmatpush.msra.mxu0 %v4188
        %4279 = vmatpush.msra.mxu0 %v4187
        %4280 = vmatpush.msra.mxu0 %v4186
        %4281 = vmatpush.msra.mxu0 %v4185
        %4282 = vmatpush.msra.mxu0 %v4184
        %4283 = vmatpush.msra.mxu0 %v4183
        %4284 = vmatpush.msra.mxu0 %v4182
        %4285 = vmatpush.msra.mxu0 %v4181
        %4286 = vmatpush.msra.mxu0 %v4180
        %4287 = vmatpush.msra.mxu0 %v4179
        %4288 = vmatmul.f32.gmra.mxu0 %v4132
        %v4289 = vpop.f32.mrf.mxu0
        %v4290 = vadd.f32 %v4249, %v4289
        %4291 = vmatmul.f32.gmra.mxu0 %v4136
        %v4292 = vpop.f32.mrf.mxu0
        %v4293 = vadd.f32 %v4252, %v4292
        %4294 = vmatmul.f32.gmra.mxu0 %v4140
        %v4295 = vpop.f32.mrf.mxu0
        %v4296 = vadd.f32 %v4255, %v4295
        %4297 = vmatmul.f32.gmra.mxu0 %v4144
        %v4298 = vpop.f32.mrf.mxu0
        %v4299 = vadd.f32 %v4258, %v4298
        %4300 = vmatmul.f32.gmra.mxu0 %v4148
        %v4301 = vpop.f32.mrf.mxu0
        %v4302 = vadd.f32 %v4261, %v4301
        %4303 = vmatmul.f32.gmra.mxu0 %v4152
        %v4304 = vpop.f32.mrf.mxu0
        %v4305 = vadd.f32 %v4264, %v4304
        %4306 = vmatmul.f32.gmra.mxu0 %v4156
        %v4307 = vpop.f32.mrf.mxu0
        %v4308 = vadd.f32 %v4267, %v4307
        %4309 = vmatmul.f32.gmra.mxu0 %v4160
        %v4310 = vpop.f32.mrf.mxu0
        %v4311 = vadd.f32 %v4270, %v4310
        %4312 = vdwg.mxu0
        %4313 = vmatpush.msra.mxu0 %v4210
        %4314 = vmatpush.msra.mxu0 %v4209
        %4315 = vmatpush.msra.mxu0 %v4208
        %4316 = vmatpush.msra.mxu0 %v4207
        %4317 = vmatpush.msra.mxu0 %v4206
        %4318 = vmatpush.msra.mxu0 %v4205
        %4319 = vmatpush.msra.mxu0 %v4204
        %4320 = vmatpush.msra.mxu0 %v4203
        %4321 = vmatpush.msra.mxu0 %v4202
        %4322 = vmatpush.msra.mxu0 %v4201
        %4323 = vmatpush.msra.mxu0 %v4200
        %4324 = vmatpush.msra.mxu0 %v4199
        %4325 = vmatpush.msra.mxu0 %v4198
        %4326 = vmatpush.msra.mxu0 %v4197
        %4327 = vmatpush.msra.mxu0 %v4196
        %4328 = vmatpush.msra.mxu0 %v4195
        %4329 = vmatmul.f32.gmra.mxu0 %v4133
        %v4330 = vpop.f32.mrf.mxu0
        %v4331 = vadd.f32 %v4290, %v4330
        %4332 = vmatmul.f32.gmra.mxu0 %v4137
        %v4333 = vpop.f32.mrf.mxu0
        %v4334 = vadd.f32 %v4293, %v4333
        %4335 = vmatmul.f32.gmra.mxu0 %v4141
        %v4336 = vpop.f32.mrf.mxu0
        %v4337 = vadd.f32 %v4296, %v4336
        %4338 = vmatmul.f32.gmra.mxu0 %v4145
        %v4339 = vpop.f32.mrf.mxu0
        %v4340 = vadd.f32 %v4299, %v4339
        %4341 = vmatmul.f32.gmra.mxu0 %v4149
        %v4342 = vpop.f32.mrf.mxu0
        %v4343 = vadd.f32 %v4302, %v4342
        %4344 = vmatmul.f32.gmra.mxu0 %v4153
        %v4345 = vpop.f32.mrf.mxu0
        %v4346 = vadd.f32 %v4305, %v4345
        %4347 = vmatmul.f32.gmra.mxu0 %v4157
        %v4348 = vpop.f32.mrf.mxu0
        %v4349 = vadd.f32 %v4308, %v4348
        %4350 = vmatmul.f32.gmra.mxu0 %v4161
        %v4351 = vpop.f32.mrf.mxu0
        %v4352 = vadd.f32 %v4311, %v4351
        %4353 = vdwg.mxu0
        %4354 = vmatpush.msra.mxu0 %v4226
        %4355 = vmatpush.msra.mxu0 %v4225
        %4356 = vmatpush.msra.mxu0 %v4224
        %4357 = vmatpush.msra.mxu0 %v4223
        %4358 = vmatpush.msra.mxu0 %v4222
        %4359 = vmatpush.msra.mxu0 %v4221
        %4360 = vmatpush.msra.mxu0 %v4220
        %4361 = vmatpush.msra.mxu0 %v4219
        %4362 = vmatpush.msra.mxu0 %v4218
        %4363 = vmatpush.msra.mxu0 %v4217
        %4364 = vmatpush.msra.mxu0 %v4216
        %4365 = vmatpush.msra.mxu0 %v4215
        %4366 = vmatpush.msra.mxu0 %v4214
        %4367 = vmatpush.msra.mxu0 %v4213
        %4368 = vmatpush.msra.mxu0 %v4212
        %4369 = vmatpush.msra.mxu0 %v4211
        %4370 = vmatmul.f32.gmra.mxu0 %v4134
        %v4371 = vpop.f32.mrf.mxu0
        %v4372 = vadd.f32 %v4331, %v4371
        %4373 = vmatmul.f32.gmra.mxu0 %v4138
        %v4374 = vpop.f32.mrf.mxu0
        %v4375 = vadd.f32 %v4334, %v4374
        %4376 = vmatmul.f32.gmra.mxu0 %v4142
        %v4377 = vpop.f32.mrf.mxu0
        %v4378 = vadd.f32 %v4337, %v4377
        %4379 = vmatmul.f32.gmra.mxu0 %v4146
        %v4380 = vpop.f32.mrf.mxu0
        %v4381 = vadd.f32 %v4340, %v4380
        %4382 = vmatmul.f32.gmra.mxu0 %v4150
        %v4383 = vpop.f32.mrf.mxu0
        %v4384 = vadd.f32 %v4343, %v4383
        %4385 = vmatmul.f32.gmra.mxu0 %v4154
        %v4386 = vpop.f32.mrf.mxu0
        %v4387 = vadd.f32 %v4346, %v4386
        %4388 = vmatmul.f32.gmra.mxu0 %v4158
        %v4389 = vpop.f32.mrf.mxu0
        %v4390 = vadd.f32 %v4349, %v4389
        %4391 = vmatmul.f32.gmra.mxu0 %v4162
        %v4392 = vpop.f32.mrf.mxu0
        %v4393 = vadd.f32 %v4352, %v4392
        %4394 = vdwg.mxu0
        %v4395 = vadd.f32 %v2637, %v4372
        %v4396 = vadd.f32 %v2638, %v4375
        %v4397 = vadd.f32 %v2639, %v4378
        %v4398 = vadd.f32 %v2640, %v4381
        %v4399 = vadd.f32 %v2641, %v4384
        %v4400 = vadd.f32 %v2642, %v4387
        %v4401 = vadd.f32 %v2643, %v4390
        %v4402 = vadd.f32 %v2644, %v4393
        %v4403 = vld [vmem:[%s10] sm:$0x1]
        %v4404 = vld [vmem:[%s11] sm:$0x1]
        %4405 = vadd.xlane.f32.xlu0 %v4395
        %v4406 = vpop.xlane.xlu0 %4405
        %4407 = vadd.xlane.f32.xlu0 %v4396
        %v4408 = vpop.xlane.xlu0 %4407
        %4409 = vadd.xlane.f32.xlu0 %v4397
        %v4410 = vpop.xlane.xlu0 %4409
        %4411 = vadd.xlane.f32.xlu0 %v4398
        %v4412 = vpop.xlane.xlu0 %4411
        %4413 = vadd.xlane.f32.xlu0 %v4399
        %v4414 = vpop.xlane.xlu0 %4413
        %4415 = vadd.xlane.f32.xlu0 %v4400
        %v4416 = vpop.xlane.xlu0 %4415
        %4417 = vadd.xlane.f32.xlu0 %v4401
        %v4418 = vpop.xlane.xlu0 %4417
        %4419 = vadd.xlane.f32.xlu0 %v4402
        %v4420 = vpop.xlane.xlu0 %4419
        %v4421 = vmul.f32 %v4406, %v2454
        %v4422 = vmul.f32 %v4408, %v2454
        %v4423 = vmul.f32 %v4410, %v2454
        %v4424 = vmul.f32 %v4412, %v2454
        %v4425 = vmul.f32 %v4414, %v2454
        %v4426 = vmul.f32 %v4416, %v2454
        %v4427 = vmul.f32 %v4418, %v2454
        %v4428 = vmul.f32 %v4420, %v2454
        %v4429 = vmul.f32 %v4395, %v4395
        %v4430 = vmul.f32 %v4396, %v4396
        %v4431 = vmul.f32 %v4397, %v4397
        %v4432 = vmul.f32 %v4398, %v4398
        %v4433 = vmul.f32 %v4399, %v4399
        %v4434 = vmul.f32 %v4400, %v4400
        %v4435 = vmul.f32 %v4401, %v4401
        %v4436 = vmul.f32 %v4402, %v4402
        %4437 = vadd.xlane.f32.xlu0 %v4429
        %v4438 = vpop.xlane.xlu0 %4437
        %4439 = vadd.xlane.f32.xlu0 %v4430
        %v4440 = vpop.xlane.xlu0 %4439
        %4441 = vadd.xlane.f32.xlu0 %v4431
        %v4442 = vpop.xlane.xlu0 %4441
        %4443 = vadd.xlane.f32.xlu0 %v4432
        %v4444 = vpop.xlane.xlu0 %4443
        %4445 = vadd.xlane.f32.xlu0 %v4433
        %v4446 = vpop.xlane.xlu0 %4445
        %4447 = vadd.xlane.f32.xlu0 %v4434
        %v4448 = vpop.xlane.xlu0 %4447
        %4449 = vadd.xlane.f32.xlu0 %v4435
        %v4450 = vpop.xlane.xlu0 %4449
        %4451 = vadd.xlane.f32.xlu0 %v4436
        %v4452 = vpop.xlane.xlu0 %4451
        %v4453 = vmul.f32 %v4438, %v2454
        %v4454 = vmul.f32 %v4440, %v2454
        %v4455 = vmul.f32 %v4442, %v2454
        %v4456 = vmul.f32 %v4444, %v2454
        %v4457 = vmul.f32 %v4446, %v2454
        %v4458 = vmul.f32 %v4448, %v2454
        %v4459 = vmul.f32 %v4450, %v2454
        %v4460 = vmul.f32 %v4452, %v2454
        %v4461 = vmul.f32 %v4421, %v4421
        %v4462 = vmul.f32 %v4422, %v4422
        %v4463 = vmul.f32 %v4423, %v4423
        %v4464 = vmul.f32 %v4424, %v4424
        %v4465 = vmul.f32 %v4425, %v4425
        %v4466 = vmul.f32 %v4426, %v4426
        %v4467 = vmul.f32 %v4427, %v4427
        %v4468 = vmul.f32 %v4428, %v4428
        %v4469 = vsub.f32 %v4453, %v4461
        %v4470 = vsub.f32 %v4454, %v4462
        %v4471 = vsub.f32 %v4455, %v4463
        %v4472 = vsub.f32 %v4456, %v4464
        %v4473 = vsub.f32 %v4457, %v4465
        %v4474 = vsub.f32 %v4458, %v4466
        %v4475 = vsub.f32 %v4459, %v4467
        %v4476 = vsub.f32 %v4460, %v4468
        %v4477 = vmax.f32 %v4469, 0.0
        %v4478 = vmax.f32 %v4470, 0.0
        %v4479 = vmax.f32 %v4471, 0.0
        %v4480 = vmax.f32 %v4472, 0.0
        %v4481 = vmax.f32 %v4473, 0.0
        %v4482 = vmax.f32 %v4474, 0.0
        %v4483 = vmax.f32 %v4475, 0.0
        %v4484 = vmax.f32 %v4476, 0.0
        %v4485 = vsub.f32 %v4395, %v4421
        %v4486 = vsub.f32 %v4396, %v4422
        %v4487 = vsub.f32 %v4397, %v4423
        %v4488 = vsub.f32 %v4398, %v4424
        %v4489 = vsub.f32 %v4399, %v4425
        %v4490 = vsub.f32 %v4400, %v4426
        %v4491 = vsub.f32 %v4401, %v4427
        %v4492 = vsub.f32 %v4402, %v4428
        %v4493 = vadd.f32 %v4477, 1e-06
        %v4494 = vadd.f32 %v4478, 1e-06
        %v4495 = vadd.f32 %v4479, 1e-06
        %v4496 = vadd.f32 %v4480, 1e-06
        %v4497 = vadd.f32 %v4481, 1e-06
        %v4498 = vadd.f32 %v4482, 1e-06
        %v4499 = vadd.f32 %v4483, 1e-06
        %v4500 = vadd.f32 %v4484, 1e-06
        %v4501 = vrsqrt.pop %v4493
        %v4502 = vmul.f32 %v4501, %v4493
        %v4503 = vmul.f32 %v4502, %v4501
        %v4504 = vmul.f32 0.5, %v4503
        %v4505 = vsub.f32 1.5, %v4504
        %v4506 = vmul.f32 %v4501, %v4505
        %vm4507 = vweird.f32 %v4493
        %vm4508 = vweird.f32 %v4501
        %vm4509 = vmor %vm4507, %vm4508
        %v4510 = vsel %vm4509, %v4501, %v4506
        %v4511 = vrsqrt.pop %v4494
        %v4512 = vmul.f32 %v4511, %v4494
        %v4513 = vmul.f32 %v4512, %v4511
        %v4514 = vmul.f32 0.5, %v4513
        %v4515 = vsub.f32 1.5, %v4514
        %v4516 = vmul.f32 %v4511, %v4515
        %vm4517 = vweird.f32 %v4494
        %vm4518 = vweird.f32 %v4511
        %vm4519 = vmor %vm4517, %vm4518
        %v4520 = vsel %vm4519, %v4511, %v4516
        %v4521 = vrsqrt.pop %v4495
        %v4522 = vmul.f32 %v4521, %v4495
        %v4523 = vmul.f32 %v4522, %v4521
        %v4524 = vmul.f32 0.5, %v4523
        %v4525 = vsub.f32 1.5, %v4524
        %v4526 = vmul.f32 %v4521, %v4525
        %vm4527 = vweird.f32 %v4495
        %vm4528 = vweird.f32 %v4521
        %vm4529 = vmor %vm4527, %vm4528
        %v4530 = vsel %vm4529, %v4521, %v4526
        %v4531 = vrsqrt.pop %v4496
        %v4532 = vmul.f32 %v4531, %v4496
        %v4533 = vmul.f32 %v4532, %v4531
        %v4534 = vmul.f32 0.5, %v4533
        %v4535 = vsub.f32 1.5, %v4534
        %v4536 = vmul.f32 %v4531, %v4535
        %vm4537 = vweird.f32 %v4496
        %vm4538 = vweird.f32 %v4531
        %vm4539 = vmor %vm4537, %vm4538
        %v4540 = vsel %vm4539, %v4531, %v4536
        %v4541 = vrsqrt.pop %v4497
        %v4542 = vmul.f32 %v4541, %v4497
        %v4543 = vmul.f32 %v4542, %v4541
        %v4544 = vmul.f32 0.5, %v4543
        %v4545 = vsub.f32 1.5, %v4544
        %v4546 = vmul.f32 %v4541, %v4545
        %vm4547 = vweird.f32 %v4497
        %vm4548 = vweird.f32 %v4541
        %vm4549 = vmor %vm4547, %vm4548
        %v4550 = vsel %vm4549, %v4541, %v4546
        %v4551 = vrsqrt.pop %v4498
        %v4552 = vmul.f32 %v4551, %v4498
        %v4553 = vmul.f32 %v4552, %v4551
        %v4554 = vmul.f32 0.5, %v4553
        %v4555 = vsub.f32 1.5, %v4554
        %v4556 = vmul.f32 %v4551, %v4555
        %vm4557 = vweird.f32 %v4498
        %vm4558 = vweird.f32 %v4551
        %vm4559 = vmor %vm4557, %vm4558
        %v4560 = vsel %vm4559, %v4551, %v4556
        %v4561 = vrsqrt.pop %v4499
        %v4562 = vmul.f32 %v4561, %v4499
        %v4563 = vmul.f32 %v4562, %v4561
        %v4564 = vmul.f32 0.5, %v4563
        %v4565 = vsub.f32 1.5, %v4564
        %v4566 = vmul.f32 %v4561, %v4565
        %vm4567 = vweird.f32 %v4499
        %vm4568 = vweird.f32 %v4561
        %vm4569 = vmor %vm4567, %vm4568
        %v4570 = vsel %vm4569, %v4561, %v4566
        %v4571 = vrsqrt.pop %v4500
        %v4572 = vmul.f32 %v4571, %v4500
        %v4573 = vmul.f32 %v4572, %v4571
        %v4574 = vmul.f32 0.5, %v4573
        %v4575 = vsub.f32 1.5, %v4574
        %v4576 = vmul.f32 %v4571, %v4575
        %vm4577 = vweird.f32 %v4500
        %vm4578 = vweird.f32 %v4571
        %vm4579 = vmor %vm4577, %vm4578
        %v4580 = vsel %vm4579, %v4571, %v4576
        %v4581 = vmul.f32 %v4485, %v4510
        %v4582 = vmul.f32 %v4486, %v4520
        %v4583 = vmul.f32 %v4487, %v4530
        %v4584 = vmul.f32 %v4488, %v4540
        %v4585 = vmul.f32 %v4489, %v4550
        %v4586 = vmul.f32 %v4490, %v4560
        %v4587 = vmul.f32 %v4491, %v4570
        %v4588 = vmul.f32 %v4492, %v4580
        %v4590 = vperm.slane %v4403, 0
        %v4592 = vmul.f32 %v4581, %v4590
        %v4593 = vmul.f32 %v4582, %v4590
        %v4594 = vmul.f32 %v4583, %v4590
        %v4595 = vmul.f32 %v4584, %v4590
        %v4596 = vmul.f32 %v4585, %v4590
        %v4597 = vmul.f32 %v4586, %v4590
        %v4598 = vmul.f32 %v4587, %v4590
        %v4599 = vmul.f32 %v4588, %v4590
        %v4601 = vperm.slane %v4404, 0
        %v4603 = vadd.f32 %v4592, %v4601
        %v4604 = vadd.f32 %v4593, %v4601
        %v4605 = vadd.f32 %v4594, %v4601
        %v4606 = vadd.f32 %v4595, %v4601
        %v4607 = vadd.f32 %v4596, %v4601
        %v4608 = vadd.f32 %v4597, %v4601
        %v4609 = vadd.f32 %v4598, %v4601
        %v4610 = vadd.f32 %v4599, %v4601
        %4611 = vst [vmem:[%s514] sm:$0xff] %v4603
        %4612 = vst [vmem:[%s514 + $0x8] sm:$0xff] %v4604
        %4613 = vst [vmem:[%s514 + $0x10] sm:$0xff] %v4605
        %4614 = vst [vmem:[%s514 + $0x18] sm:$0xff] %v4606
        %4615 = vst [vmem:[%s514 + $0x20] sm:$0xff] %v4607
        %4616 = vst [vmem:[%s514 + $0x28] sm:$0xff] %v4608
        %4617 = vst [vmem:[%s514 + $0x30] sm:$0xff] %v4609
        %4618 = vst [vmem:[%s514 + $0x38] sm:$0xff] %v4610
        %s4619 = sand.u32 %s297, 1
        %s4620 = scalar_lea.sflag [#allocation4], %s4619
        %s4621 = sand.u32 %s297, 1
        %s4622 = smul.addr %s4621, 64
        %s4623 = scalar_lea.vmem [#allocation13], %s4622
        // Predicated region
        $region93: #{tpu_custom_call.1} parent=67 // pred_check
          %p4624 = pneg %p307
        $region94: #{tpu_custom_call.1} parent=67 // pred_check_branch
          %4626 = sbr.rel (%p4624) target = $region96
        $region95: #{tpu_custom_call.1} parent=67 // pred_region
          %4628 = vsyncadd %s4620, 0
          %s4629 = smul.addr %s32, 8
          %s4630 = smul.addr %s4629, 8
          %s4631 = scalar_lea.hbm %s12, %s4630
          %s4632 = sshll.u32 %s4623, 4
          %s4633 = int_to_ptr.vmem [resolvable:$true] %s4632
          %s4634 = sshll.u32 %s4631, 4
          %s4635 = int_to_ptr.hbm [resolvable:$true] %s4634
          %4640 = dma.vmem_to_hbm [thread:$0]  %s4633, 1024, %s4635, %s4620, 128, 128, 8
        $region96: #{tpu_custom_call.1} parent=67 // pred_fallthru
          _
      $region68: #{tpu_custom_call.1} parent=5 // pred_fallthru
        _
      %p4641 = scmp.le.s32.totalorder 2, %s27
      // Predicated region
      $region97: #{tpu_custom_call.1} parent=5 // pred_check
        %p4642 = pneg %p4641
      $region98: #{tpu_custom_call.1} parent=5 // pred_check_branch
        %4644 = sbr.rel (%p4642) target = $region100
      $region99: #{tpu_custom_call.1} parent=5 // pred_region
        %s4645 = ssub.s32 %s27, 2
        // Predicated region
        $region101: #{tpu_custom_call.1} parent=99 // pred_check
          %p4646 = pneg %p313
        $region102: #{tpu_custom_call.1} parent=99 // pred_check_branch
          %4648 = sbr.rel (%p4646) target = $region104
        $region103: #{tpu_custom_call.1} parent=99 // pred_region
          %s4649 = sand.u32 %s298, 1
          %s4650 = scalar_lea.sflag [#allocation4], %s4649
          %s4651 = sand.u32 %s298, 1
          %s4652 = smul.addr %s4651, 64
          %s4653 = scalar_lea.vmem [#allocation13], %s4652
          %4655 = dma.done %s4650, 1024
        $region104: #{tpu_custom_call.1} parent=99 // pred_fallthru
          _
      $region100: #{tpu_custom_call.1} parent=5 // pred_fallthru
        _
    $region6: #{tpu_custom_call.1} parent=1 // loop_footer
      %s31 = sadd.s32 1, %s27
    $region7: #{tpu_custom_call.1} parent=1 // loop_footer_branch
      %26 = sbr.rel target = $region3
    $region8: #{tpu_custom_call.1} parent=1 // loop_exit
      _
    %4656 = vsyncpa [#allocation3], 1
    %s4657 = scalar_lea.sflag [#allocation3], 1
    %4658 = vsyncpa %s4657, 1
    %4659 = vsyncpa [#allocation6], 1
    %4660 = vsyncpa [#allocation9], 1
    %4661 = vsyncpa [#allocation12], 1
    %4662 = vsyncpa [#allocation4], 1
    %s4663 = scalar_lea.sflag [#allocation4], 1
    %4664 = vsyncpa %s4663, 1

</llo_original>
